<compile_context>
chip_gen: v6e
topology: v6e:2x2x1
jax: 0.10.0
libtpu: 0.0.40
codegen_flags: <defaults>
</compile_context>

<pallas_src>
import functools
import math

import jax
import jax.numpy as jnp
from jax import lax
from jax.experimental import pallas as pl
from jax.experimental.pallas import tpu as pltpu

# ---- model dimensions (small, TPU-tile friendly) ----
D = 128      # hidden size (lane dim)
V = 256      # vocab size
F = 256      # FFN hidden
L = 16       # encoder sequence length per hop
T = 8        # decoder (labels) length
T_INT = 8    # "max_decoder_length" used by intermediate hops
HOP = 3      # number of hops
B = 2        # batch
NEG = -1e9

# ---- packed weight slab layouts (static, 128-lane / 8-sublane aligned) ----
_WA_LAYOUT = (("enc_wq", D), ("enc_wkv", 2 * D), ("enc_wo", D), ("enc_w1", F),
              ("dec_wq", D), ("dec_wkv", 2 * D), ("dec_wo", D), ("dec_w1", F),
              ("xa_wq", D), ("xa_wkv", 2 * D), ("xa_wo", D))
_WB_LAYOUT = (("enc_w2", F), ("dec_w2", F), ("embed", V))


def _offsets(layout):
    offs, o = {}, 0
    for name, width in layout:
        offs[name] = (o, width)
        o += width
    return offs, o


_WA_OFF, _WA_TOT = _offsets(_WA_LAYOUT)   # [D, 16*D]  = [128, 2048]
_WB_OFF, _WB_TOT = _offsets(_WB_LAYOUT)   # [2F+V, D]  = [768, 128]


def _bf16(x):
    return x.astype(jnp.bfloat16)


def _mm(x, w):
    """[M,K] @ [K,N] on the MXU: bf16 operands, f32 accumulation."""
    return lax.dot_general(_bf16(x), _bf16(w), (((1,), (0,)), ((), ())),
                           preferred_element_type=jnp.float32)


def _attn2d(q, k, v, bias, scale):
    """Masked SDPA for one batch element. q:[Lq,D], k/v:[Sk,D], bias ~ [*,Sk]."""
    s = lax.dot_general(_bf16(q), _bf16(k), (((1,), (1,)), ((), ())),
                        preferred_element_type=jnp.float32) * scale + bias
    s = s - jnp.max(s, axis=-1, keepdims=True)
    p = jnp.exp(s)
    p = p * pl.reciprocal(jnp.sum(p, axis=-1, keepdims=True), approx=True)
    return _mm(p, v)


def _wa(ref, name):
    o, w = _WA_OFF[name]
    return ref[:, o:o + w]


def _wb(ref, name):
    o, w = _WB_OFF[name]
    return ref[o:o + w, :]


# ---------------- fused forward kernel (one batch element per grid step) ----------------

def _fused_forward_kernel(x_enc_ref, enc_mask_ref, y_ref, dec_mask_full_ref,
                          labels_ref, lmask_ref, wa_ref, wb_ref,
                          out_ref, kv_cache, h_cache, *, hop):
    Stot = x_enc_ref.shape[1]
    Lh = Stot // hop
    Td = y_ref.shape[1]
    Dm = D
    scale = 1.0 / math.sqrt(Dm)

    # ---- weight views (static lane/sublane-aligned slices of the two slabs) ----
    enc_wq = _wa(wa_ref, "enc_wq")
    enc_wkv = _wa(wa_ref, "enc_wkv")
    enc_wo = _wa(wa_ref, "enc_wo")
    enc_w1 = _wa(wa_ref, "enc_w1")
    dec_wq = _wa(wa_ref, "dec_wq")
    dec_wkv = _wa(wa_ref, "dec_wkv")
    dec_wo = _wa(wa_ref, "dec_wo")
    dec_w1 = _wa(wa_ref, "dec_w1")
    xa_wq = _wa(wa_ref, "xa_wq")
    xa_wkv = _wa(wa_ref, "xa_wkv")
    xa_wo = _wa(wa_ref, "xa_wo")
    enc_w2 = _wb(wb_ref, "enc_w2")
    dec_w2 = _wb(wb_ref, "dec_w2")
    embed = _wb(wb_ref, "embed")

    x_all = x_enc_ref[0]                                  # [hop*L, D] bf16
    enc_mask = enc_mask_ref[0]                            # [1, hop*L] f32
    enc_bias = (1.0 - enc_mask) * NEG                     # hoisted out of the hop loop

    # ---- encoder hops (unrolled; each attends over all encoder states so far) ----
    pooled = []                                           # [1, D] f32 per intermediate hop
    for i in range(hop):
        Sk = (i + 1) * Lh
        x_i = x_all[i * Lh:(i + 1) * Lh, :]               # [L, D] bf16
        # KV only for the new rows of this hop; older blocks already sit in the cache.
        kv_cache[i * Lh:(i + 1) * Lh, :] = _mm(x_i, enc_wkv).astype(jnp.bfloat16)
        q = _mm(x_i, enc_wq)                              # [L, D] f32 (Q only for this hop)
        kv_all = kv_cache[0:Sk, :]                        # [Sk, 2D] bf16
        a = _attn2d(q, kv_all[:, 0:Dm], kv_all[:, Dm:2 * Dm],
                    enc_bias[:, :Sk], scale)              # [L, D] f32
        h = x_i.astype(jnp.float32) + _mm(a, enc_wo)
        h = h + _mm(jax.nn.relu(_mm(h, enc_w1)), enc_w2)
        hb = h.astype(jnp.bfloat16)
        h_cache[i * Lh:(i + 1) * Lh, :] = hb              # encoder state for cross-attn
        if i < hop - 1:
            # Later hops attend to h_i (not x_i): refresh this block's KV once.
            kv_cache[i * Lh:(i + 1) * Lh, :] = _mm(hb, enc_wkv).astype(jnp.bfloat16)
            # TODO(synk): reference calls EncoderDecoder.intermediate_forward which
            # autoregressively generates intermediate decoder tokens (past_key_values);
            # approximated by broadcasting the pooled encoder state of this hop.
            pooled.append(jnp.mean(h, axis=0, keepdims=True))     # [1, D]

    # ---- final decoder self-attention over past + current tokens (causal) ----
    y = y_ref[0]                                          # [T, D] bf16
    n_pool = hop - 1
    P = n_pool * T_INT
    S_dec = P + Td
    if n_pool > 0:
        pool_mat = jnp.concatenate(pooled, axis=0).astype(jnp.bfloat16)   # [hop-1, D]
        kv_rows = _mm(jnp.concatenate([pool_mat, y], axis=0), dec_wkv)    # [hop-1+T, 2D]
        kv_pool = kv_rows[0:n_pool, :]
        kv_y = kv_rows[n_pool:, :]
        # Each past block is T_INT identical rows -> project once, broadcast the KV rows.
        kv_past = [jnp.broadcast_to(kv_pool[j:j + 1, :], (T_INT, 2 * Dm))
                   for j in range(n_pool)]
        kv_dec = jnp.concatenate(kv_past + [kv_y], axis=0)                # [P+T, 2D]
    else:
        kv_dec = _mm(y, dec_wkv)

    q_dec = _mm(y, dec_wq)                                # [T, D]
    dec_mask_full = dec_mask_full_ref[0]                  # [1, P+T] f32
    pad_bias = (1.0 - dec_mask_full) * NEG
    qi = lax.broadcasted_iota(jnp.int32, (Td, S_dec), 0)
    kj = lax.broadcasted_iota(jnp.int32, (Td, S_dec), 1)
    causal = jnp.where(kj <= qi + P, 0.0, NEG)            # [T, P+T]
    a = _attn2d(q_dec, kv_dec[:, 0:Dm], kv_dec[:, Dm:2 * Dm],
                pad_bias + causal, scale)
    hd = y.astype(jnp.float32) + _mm(a, dec_wo)

    # ---- cross attention over accumulated encoder states (read from cache) ----
    h_all = h_cache[...]                                  # [hop*L, D] bf16
    qx = _mm(hd, xa_wq)
    kvx = _mm(h_all, xa_wkv)                              # [hop*L, 2D]
    ax = _attn2d(qx, kvx[:, 0:Dm], kvx[:, Dm:2 * Dm], enc_bias, scale)
    hd = hd + _mm(ax, xa_wo)

    # ---- decoder FFN + LM head (tied embedding) + masked cross-entropy partials ----
    hd = hd + _mm(jax.nn.relu(_mm(hd, dec_w1)), dec_w2)
    logits = lax.dot_general(_bf16(hd), embed, (((1,), (1,)), ((), ())),
                             preferred_element_type=jnp.float32)          # [T, V]
    labels_col = labels_ref[0]                            # [T, 1] int32
    vocab_iota = lax.broadcasted_iota(jnp.int32, (Td, V), 1)
    tgt = jnp.sum(jnp.where(vocab_iota == labels_col, logits, 0.0),
                  axis=-1, keepdims=True)                                 # [T, 1]
    m = jnp.max(logits, axis=-1, keepdims=True)
    lse = jnp.log(jnp.sum(jnp.exp(logits - m), axis=-1, keepdims=True)) + m
    lmask = lmask_ref[0]                                  # [T, 1] f32
    tok = (lse - tgt) * lmask
    num = jnp.sum(tok, keepdims=True)                     # [1, 1]
    den = jnp.sum(lmask, keepdims=True)                   # [1, 1]
    out_ref[...] = jnp.concatenate([num, den], axis=-1).reshape(1, 1, 2)


# ---------------- parameters (deterministic init, packed + bf16) ----------------

def init_params(key):
    ks = jax.random.split(key, 17)
    s = 0.02
    w = lambda k, shape: jax.random.normal(k, shape, jnp.float32) * s
    embed = w(ks[0], (V, D))
    enc_wq, enc_wk, enc_wv = w(ks[1], (D, D)), w(ks[2], (D, D)), w(ks[3], (D, D))
    enc_wo = w(ks[4], (D, D))
    enc_w1, enc_w2 = w(ks[5], (D, F)), w(ks[6], (F, D))
    dec_wq, dec_wk, dec_wv = w(ks[7], (D, D)), w(ks[8], (D, D)), w(ks[9], (D, D))
    dec_wo = w(ks[10], (D, D))
    xa_wq, xa_wk, xa_wv = w(ks[11], (D, D)), w(ks[12], (D, D)), w(ks[13], (D, D))
    xa_wo = w(ks[14], (D, D))
    dec_w1, dec_w2 = w(ks[15], (D, F)), w(ks[16], (F, D))

    pieces = dict(
        enc_wq=enc_wq, enc_wkv=jnp.concatenate([enc_wk, enc_wv], axis=1),
        enc_wo=enc_wo, enc_w1=enc_w1,
        dec_wq=dec_wq, dec_wkv=jnp.concatenate([dec_wk, dec_wv], axis=1),
        dec_wo=dec_wo, dec_w1=dec_w1,
        xa_wq=xa_wq, xa_wkv=jnp.concatenate([xa_wk, xa_wv], axis=1),
        xa_wo=xa_wo)
    wa = _bf16(jnp.concatenate([pieces[name] for name, _ in _WA_LAYOUT], axis=1))
    wb = _bf16(jnp.concatenate([enc_w2, dec_w2, embed], axis=0))
    return dict(wa=wa, wb=wb)


# ---------------- forward (XLA glue: embeddings / masks, one fused kernel) ----------------

def double_model_forward(params, hop, total_input_ids, total_attention_mask,
                         decoder_input_ids, decoder_attention_mask, labels):
    batch = total_input_ids.shape[0]
    Stot = total_input_ids.shape[1]
    Td = decoder_input_ids.shape[1]
    P = (hop - 1) * T_INT

    e_off, e_w = _WB_OFF["embed"]
    embed = params['wb'][e_off:e_off + e_w]               # [V, D] bf16 (tied table)

    # Embedding gathers stay in XLA (data-dependent gather); activations are bf16.
    x_enc = embed[total_input_ids]                        # [B, hop*L, D]
    y_dec = embed[decoder_input_ids]                      # [B, T, D]
    enc_mask3 = total_attention_mask.astype(jnp.float32)[:, None, :]         # [B,1,S]
    dec_mask = decoder_attention_mask.astype(jnp.float32)
    dec_mask_full3 = jnp.concatenate(
        [jnp.ones((batch, P), jnp.float32), dec_mask], axis=-1)[:, None, :]  # [B,1,P+T]
    labels3 = labels.astype(jnp.int32)[:, :, None]                           # [B,T,1]
    lmask3 = dec_mask[:, :, None]                                            # [B,T,1]

    inputs = (x_enc, enc_mask3, y_dec, dec_mask_full3, labels3, lmask3,
              params['wa'], params['wb'])

    kern = functools.partial(_fused_forward_kernel, hop=hop)
    partials = pl.pallas_call(
        kern,
        out_shape=jax.ShapeDtypeStruct((batch, 1, 2), jnp.float32),
        grid=(batch,),
        in_specs=[
            pl.BlockSpec((1, Stot, D), lambda b: (b, 0, 0)),
            pl.BlockSpec((1, 1, Stot), lambda b: (b, 0, 0)),
            pl.BlockSpec((1, Td, D), lambda b: (b, 0, 0)),
            pl.BlockSpec((1, 1, P + Td), lambda b: (b, 0, 0)),
            pl.BlockSpec((1, Td, 1), lambda b: (b, 0, 0)),
            pl.BlockSpec((1, Td, 1), lambda b: (b, 0, 0)),
            pl.BlockSpec((D, _WA_TOT), lambda b: (0, 0)),
            pl.BlockSpec((_WB_TOT, D), lambda b: (0, 0)),
        ],
        out_specs=pl.BlockSpec((1, 1, 2), lambda b: (b, 0, 0)),
        scratch_shapes=[
            pltpu.VMEM((Stot, 2 * D), jnp.bfloat16),   # encoder self-attn KV cache
            pltpu.VMEM((Stot, D), jnp.bfloat16),       # encoder state cache (cross-attn)
        ],
        compiler_params=pltpu.CompilerParams(dimension_semantics=("parallel",)),
    )(*inputs)

    num = jnp.sum(partials[:, 0, 0])
    den = jnp.maximum(jnp.sum(partials[:, 0, 1]), 1.0)
    return num / den


if __name__ == "__main__":
    params = init_params(jax.random.PRNGKey(42))

    key = jax.random.PRNGKey(0)
    k1, k2, k3 = jax.random.split(key, 3)
    hop = HOP
    total_input_ids = jax.random.randint(k1, (B, hop * L), 0, V, dtype=jnp.int32)
    total_attention_mask = jnp.ones((B, hop * L), jnp.int32)
    # pad out some tokens of the first hop of example 1 to exercise masking
    total_attention_mask = total_attention_mask.at[1, L - 4:L].set(0)
    decoder_input_ids = jax.random.randint(k2, (B, T), 0, V, dtype=jnp.int32)
    decoder_attention_mask = jnp.ones((B, T), jnp.int32).at[1, T - 2:].set(0)
    labels = jax.random.randint(k3, (B, T), 0, V, dtype=jnp.int32)

    fwd = jax.jit(double_model_forward, static_argnums=(1,))
    loss = fwd(params, hop, total_input_ids, total_attention_mask,
               decoder_input_ids, decoder_attention_mask, labels)
    jax.block_until_ready(loss)
    assert loss.shape == () and jnp.isfinite(loss)
    print("KERNEL_OK")
</pallas_src>

<mosaic_0001>
module attributes {stable_mosaic.version = 11 : i64} {
  func.func @_fused_forward_kernel(%arg0: i32, %arg1: memref<1x48x128xbf16, #tpu.memory_space<vmem>>, %arg2: memref<1x1x48xf32, #tpu.memory_space<vmem>>, %arg3: memref<1x8x128xbf16, #tpu.memory_space<vmem>>, %arg4: memref<1x1x24xf32, #tpu.memory_space<vmem>>, %arg5: memref<1x8x1xi32, #tpu.memory_space<vmem>>, %arg6: memref<1x8x1xf32, #tpu.memory_space<vmem>>, %arg7: memref<128x2048xbf16, #tpu.memory_space<vmem>>, %arg8: memref<768x128xbf16, #tpu.memory_space<vmem>>, %arg9: memref<1x1x2xf32, #tpu.memory_space<vmem>>, %arg10: memref<48x256xbf16, #tpu.memory_space<vmem>>, %arg11: memref<48x128xbf16, #tpu.memory_space<vmem>>) attributes {dimension_semantics = [#tpu.dimension_semantics<parallel>], iteration_bounds = array<i64: 2>, scalar_prefetch = 0 : i64, scratch_operands = 2 : i64, tpu.core_type = #tpu.core_type<tc>, window_params = [{transform_indices = @transform_0, window_bounds = array<i64: 1, 48, 128>}, {transform_indices = @transform_1, window_bounds = array<i64: 1, 1, 48>}, {transform_indices = @transform_2, window_bounds = array<i64: 1, 8, 128>}, {transform_indices = @transform_3, window_bounds = array<i64: 1, 1, 24>}, {transform_indices = @transform_4, window_bounds = array<i64: 1, 8, 1>}, {transform_indices = @transform_5, window_bounds = array<i64: 1, 8, 1>}, {pipeline_mode = #tpu.pipeline_mode<synchronous>, transform_indices = @transform_6, window_bounds = array<i64: 128, 2048>}, {pipeline_mode = #tpu.pipeline_mode<synchronous>, transform_indices = @transform_7, window_bounds = array<i64: 768, 128>}, {transform_indices = @transform_8, window_bounds = array<i64: 1, 1, 2>}]} {
    %c0 = arith.constant 0 : index
    %c0_0 = arith.constant 0 : index
    %0 = vector.load %arg7[%c0, %c0_0] : memref<128x2048xbf16, #tpu.memory_space<vmem>>, vector<128x128xbf16>
    %c0_1 = arith.constant 0 : index
    %c128 = arith.constant 128 : index
    %1 = vector.load %arg7[%c0_1, %c128] : memref<128x2048xbf16, #tpu.memory_space<vmem>>, vector<128x256xbf16>
    %c0_2 = arith.constant 0 : index
    %c384 = arith.constant 384 : index
    %2 = vector.load %arg7[%c0_2, %c384] : memref<128x2048xbf16, #tpu.memory_space<vmem>>, vector<128x128xbf16>
    %c0_3 = arith.constant 0 : index
    %c512 = arith.constant 512 : index
    %3 = vector.load %arg7[%c0_3, %c512] : memref<128x2048xbf16, #tpu.memory_space<vmem>>, vector<128x256xbf16>
    %c0_4 = arith.constant 0 : index
    %c768 = arith.constant 768 : index
    %4 = vector.load %arg7[%c0_4, %c768] : memref<128x2048xbf16, #tpu.memory_space<vmem>>, vector<128x128xbf16>
    %c0_5 = arith.constant 0 : index
    %c896 = arith.constant 896 : index
    %5 = vector.load %arg7[%c0_5, %c896] : memref<128x2048xbf16, #tpu.memory_space<vmem>>, vector<128x256xbf16>
    %c0_6 = arith.constant 0 : index
    %c1152 = arith.constant 1152 : index
    %6 = vector.load %arg7[%c0_6, %c1152] : memref<128x2048xbf16, #tpu.memory_space<vmem>>, vector<128x128xbf16>
    %c0_7 = arith.constant 0 : index
    %c1280 = arith.constant 1280 : index
    %7 = vector.load %arg7[%c0_7, %c1280] : memref<128x2048xbf16, #tpu.memory_space<vmem>>, vector<128x256xbf16>
    %c0_8 = arith.constant 0 : index
    %c1536 = arith.constant 1536 : index
    %8 = vector.load %arg7[%c0_8, %c1536] : memref<128x2048xbf16, #tpu.memory_space<vmem>>, vector<128x128xbf16>
    %c0_9 = arith.constant 0 : index
    %c1664 = arith.constant 1664 : index
    %9 = vector.load %arg7[%c0_9, %c1664] : memref<128x2048xbf16, #tpu.memory_space<vmem>>, vector<128x256xbf16>
    %c0_10 = arith.constant 0 : index
    %c1920 = arith.constant 1920 : index
    %10 = vector.load %arg7[%c0_10, %c1920] : memref<128x2048xbf16, #tpu.memory_space<vmem>>, vector<128x128xbf16>
    %c0_11 = arith.constant 0 : index
    %c0_12 = arith.constant 0 : index
    %11 = vector.load %arg8[%c0_11, %c0_12] : memref<768x128xbf16, #tpu.memory_space<vmem>>, vector<256x128xbf16>
    %c256 = arith.constant 256 : index
    %c0_13 = arith.constant 0 : index
    %12 = vector.load %arg8[%c256, %c0_13] : memref<768x128xbf16, #tpu.memory_space<vmem>>, vector<256x128xbf16>
    %c512_14 = arith.constant 512 : index
    %c0_15 = arith.constant 0 : index
    %13 = vector.load %arg8[%c512_14, %c0_15] : memref<768x128xbf16, #tpu.memory_space<vmem>>, vector<256x128xbf16>
    %c0_16 = arith.constant 0 : index
    %c0_17 = arith.constant 0 : index
    %c0_18 = arith.constant 0 : index
    %14 = vector.load %arg1[%c0_16, %c0_17, %c0_18] : memref<1x48x128xbf16, #tpu.memory_space<vmem>>, vector<1x48x128xbf16>
    %15 = vector.shape_cast %14 : vector<1x48x128xbf16> to vector<48x128xbf16>
    %c0_19 = arith.constant 0 : index
    %c0_20 = arith.constant 0 : index
    %c0_21 = arith.constant 0 : index
    %16 = vector.load %arg2[%c0_19, %c0_20, %c0_21] : memref<1x1x48xf32, #tpu.memory_space<vmem>>, vector<1x1x48xf32>
    %17 = vector.shape_cast %16 : vector<1x1x48xf32> to vector<1x48xf32>
    %cst = arith.constant 1.000000e+00 : f32
    %18 = vector.broadcast %cst : f32 to vector<1x48xf32>
    %19 = arith.subf %18, %17 : vector<1x48xf32>
    %cst_22 = arith.constant -1.000000e+09 : f32
    %20 = vector.broadcast %cst_22 : f32 to vector<1x48xf32>
    %21 = arith.mulf %19, %20 : vector<1x48xf32>
    %22 = vector.extract_strided_slice %15 {offsets = [0, 0], sizes = [16, 128], strides = [1, 1]} : vector<48x128xbf16> to vector<16x128xbf16>
    %cst_23 = arith.constant dense<0.000000e+00> : vector<16x256xf32>
    %23 = tpu.matmul %22, %1, %cst_23 {dimension_numbers = #tpu.dot_dimension_numbers<[1], [0], [0], [1], [0, 0, 1, 1], [], []>} : vector<16x128xbf16>, vector<128x256xbf16>, vector<16x256xf32> -> vector<16x256xf32>
    %24 = arith.truncf %23 : vector<16x256xf32> to vector<16x256xbf16>
    %c0_24 = arith.constant 0 : index
    %c0_25 = arith.constant 0 : index
    %25 = vector.load %arg10[%c0_24, %c0_25] : memref<48x256xbf16, #tpu.memory_space<vmem>>, vector<16x256xbf16>
    tpu.vector_store %arg10[%c0_24, %c0_25], %24 {strides = array<i32>} : memref<48x256xbf16, #tpu.memory_space<vmem>>, vector<16x256xbf16>,
    %cst_26 = arith.constant dense<0.000000e+00> : vector<16x128xf32>
    %26 = tpu.matmul %22, %0, %cst_26 {dimension_numbers = #tpu.dot_dimension_numbers<[1], [0], [0], [1], [0, 0, 1, 1], [], []>} : vector<16x128xbf16>, vector<128x128xbf16>, vector<16x128xf32> -> vector<16x128xf32>
    %c0_27 = arith.constant 0 : index
    %c0_28 = arith.constant 0 : index
    %27 = vector.load %arg10[%c0_27, %c0_28] : memref<48x256xbf16, #tpu.memory_space<vmem>>, vector<16x256xbf16>
    %28 = vector.extract_strided_slice %27 {offsets = [0, 0], sizes = [16, 128], strides = [1, 1]} : vector<16x256xbf16> to vector<16x128xbf16>
    %29 = vector.extract_strided_slice %27 {offsets = [0, 128], sizes = [16, 128], strides = [1, 1]} : vector<16x256xbf16> to vector<16x128xbf16>
    %30 = vector.extract_strided_slice %21 {offsets = [0, 0], sizes = [1, 16], strides = [1, 1]} : vector<1x48xf32> to vector<1x16xf32>
    %31 = arith.truncf %26 : vector<16x128xf32> to vector<16x128xbf16>
    %cst_29 = arith.constant dense<0.000000e+00> : vector<16x16xf32>
    %32 = tpu.matmul %31, %28, %cst_29 {dimension_numbers = #tpu.dot_dimension_numbers<[1], [1], [0], [0], [0, 0, 1, 0], [], []>} : vector<16x128xbf16>, vector<16x128xbf16>, vector<16x16xf32> -> vector<16x16xf32>
    %cst_30 = arith.constant 0.0883883461 : f32
    %33 = vector.broadcast %cst_30 : f32 to vector<16x16xf32>
    %34 = arith.mulf %32, %33 : vector<16x16xf32>
    %35 = vector.broadcast %30 : vector<1x16xf32> to vector<16x16xf32>
    %36 = arith.addf %34, %35 : vector<16x16xf32>
    %cst_31 = arith.constant dense<0xFF800000> : vector<16xf32>
    %37 = vector.multi_reduction <maximumf>, %36, %cst_31 [1] : vector<16x16xf32> to vector<16xf32>
    %38 = vector.shape_cast %37 : vector<16xf32> to vector<16x1xf32>
    %39 = vector.broadcast %38 : vector<16x1xf32> to vector<16x16xf32>
    %40 = arith.subf %36, %39 : vector<16x16xf32>
    %41 = math.exp %40 : vector<16x16xf32>
    %cst_32 = arith.constant dense<0.000000e+00> : vector<16xf32>
    %42 = vector.multi_reduction <add>, %41, %cst_32 [1] : vector<16x16xf32> to vector<16xf32>
    %43 = vector.shape_cast %42 : vector<16xf32> to vector<16x1xf32>
    %44 = tpu.reciprocal %43 {approx = true} : vector<16x1xf32> -> vector<16x1xf32>
    %45 = vector.broadcast %44 : vector<16x1xf32> to vector<16x16xf32>
    %46 = arith.mulf %41, %45 : vector<16x16xf32>
    %47 = arith.truncf %46 : vector<16x16xf32> to vector<16x16xbf16>
    %cst_33 = arith.constant dense<0.000000e+00> : vector<16x128xf32>
    %48 = tpu.matmul %47, %29, %cst_33 {dimension_numbers = #tpu.dot_dimension_numbers<[1], [0], [0], [1], [0, 0, 1, 1], [], []>} : vector<16x16xbf16>, vector<16x128xbf16>, vector<16x128xf32> -> vector<16x128xf32>
    %49 = arith.extf %22 : vector<16x128xbf16> to vector<16x128xf32>
    %50 = arith.truncf %48 : vector<16x128xf32> to vector<16x128xbf16>
    %cst_34 = arith.constant dense<0.000000e+00> : vector<16x128xf32>
    %51 = tpu.matmul %50, %2, %cst_34 {dimension_numbers = #tpu.dot_dimension_numbers<[1], [0], [0], [1], [0, 0, 1, 1], [], []>} : vector<16x128xbf16>, vector<128x128xbf16>, vector<16x128xf32> -> vector<16x128xf32>
    %52 = arith.addf %49, %51 : vector<16x128xf32>
    %53 = arith.truncf %52 : vector<16x128xf32> to vector<16x128xbf16>
    %cst_35 = arith.constant dense<0.000000e+00> : vector<16x256xf32>
    %54 = tpu.matmul %53, %3, %cst_35 {dimension_numbers = #tpu.dot_dimension_numbers<[1], [0], [0], [1], [0, 0, 1, 1], [], []>} : vector<16x128xbf16>, vector<128x256xbf16>, vector<16x256xf32> -> vector<16x256xf32>
    %cst_36 = arith.constant 0.000000e+00 : f32
    %55 = vector.broadcast %cst_36 : f32 to vector<16x256xf32>
    %56 = arith.maximumf %54, %55 : vector<16x256xf32>
    %57 = arith.truncf %56 : vector<16x256xf32> to vector<16x256xbf16>
    %cst_37 = arith.constant dense<0.000000e+00> : vector<16x128xf32>
    %58 = tpu.matmul %57, %11, %cst_37 {dimension_numbers = #tpu.dot_dimension_numbers<[1], [0], [0], [1], [0, 0, 1, 1], [], []>} : vector<16x256xbf16>, vector<256x128xbf16>, vector<16x128xf32> -> vector<16x128xf32>
    %59 = arith.addf %52, %58 : vector<16x128xf32>
    %60 = arith.truncf %59 : vector<16x128xf32> to vector<16x128xbf16>
    %c0_38 = arith.constant 0 : index
    %c0_39 = arith.constant 0 : index
    %61 = vector.load %arg11[%c0_38, %c0_39] : memref<48x128xbf16, #tpu.memory_space<vmem>>, vector<16x128xbf16>
    tpu.vector_store %arg11[%c0_38, %c0_39], %60 {strides = array<i32>} : memref<48x128xbf16, #tpu.memory_space<vmem>>, vector<16x128xbf16>,
    %cst_40 = arith.constant dense<0.000000e+00> : vector<16x256xf32>
    %62 = tpu.matmul %60, %1, %cst_40 {dimension_numbers = #tpu.dot_dimension_numbers<[1], [0], [0], [1], [0, 0, 1, 1], [], []>} : vector<16x128xbf16>, vector<128x256xbf16>, vector<16x256xf32> -> vector<16x256xf32>
    %63 = arith.truncf %62 : vector<16x256xf32> to vector<16x256xbf16>
    %c0_41 = arith.constant 0 : index
    %c0_42 = arith.constant 0 : index
    %64 = vector.load %arg10[%c0_41, %c0_42] : memref<48x256xbf16, #tpu.memory_space<vmem>>, vector<16x256xbf16>
    tpu.vector_store %arg10[%c0_41, %c0_42], %63 {strides = array<i32>} : memref<48x256xbf16, #tpu.memory_space<vmem>>, vector<16x256xbf16>,
    %cst_43 = arith.constant dense<0.000000e+00> : vector<128xf32>
    %65 = vector.multi_reduction <add>, %59, %cst_43 [0] : vector<16x128xf32> to vector<128xf32>
    %66 = vector.shape_cast %65 : vector<128xf32> to vector<1x128xf32>
    %cst_44 = arith.constant 1.600000e+01 : f32
    %67 = vector.broadcast %cst_44 : f32 to vector<1x128xf32>
    %68 = arith.divf %66, %67 : vector<1x128xf32>
    %69 = vector.extract_strided_slice %15 {offsets = [16, 0], sizes = [16, 128], strides = [1, 1]} : vector<48x128xbf16> to vector<16x128xbf16>
    %cst_45 = arith.constant dense<0.000000e+00> : vector<16x256xf32>
    %70 = tpu.matmul %69, %1, %cst_45 {dimension_numbers = #tpu.dot_dimension_numbers<[1], [0], [0], [1], [0, 0, 1, 1], [], []>} : vector<16x128xbf16>, vector<128x256xbf16>, vector<16x256xf32> -> vector<16x256xf32>
    %71 = arith.truncf %70 : vector<16x256xf32> to vector<16x256xbf16>
    %c16 = arith.constant 16 : index
    %c0_46 = arith.constant 0 : index
    %72 = vector.load %arg10[%c16, %c0_46] : memref<48x256xbf16, #tpu.memory_space<vmem>>, vector<16x256xbf16>
    tpu.vector_store %arg10[%c16, %c0_46], %71 {strides = array<i32>} : memref<48x256xbf16, #tpu.memory_space<vmem>>, vector<16x256xbf16>,
    %cst_47 = arith.constant dense<0.000000e+00> : vector<16x128xf32>
    %73 = tpu.matmul %69, %0, %cst_47 {dimension_numbers = #tpu.dot_dimension_numbers<[1], [0], [0], [1], [0, 0, 1, 1], [], []>} : vector<16x128xbf16>, vector<128x128xbf16>, vector<16x128xf32> -> vector<16x128xf32>
    %c0_48 = arith.constant 0 : index
    %c0_49 = arith.constant 0 : index
    %74 = vector.load %arg10[%c0_48, %c0_49] : memref<48x256xbf16, #tpu.memory_space<vmem>>, vector<32x256xbf16>
    %75 = vector.extract_strided_slice %74 {offsets = [0, 0], sizes = [32, 128], strides = [1, 1]} : vector<32x256xbf16> to vector<32x128xbf16>
    %76 = vector.extract_strided_slice %74 {offsets = [0, 128], sizes = [32, 128], strides = [1, 1]} : vector<32x256xbf16> to vector<32x128xbf16>
    %77 = vector.extract_strided_slice %21 {offsets = [0, 0], sizes = [1, 32], strides = [1, 1]} : vector<1x48xf32> to vector<1x32xf32>
    %78 = arith.truncf %73 : vector<16x128xf32> to vector<16x128xbf16>
    %cst_50 = arith.constant dense<0.000000e+00> : vector<16x32xf32>
    %79 = tpu.matmul %78, %75, %cst_50 {dimension_numbers = #tpu.dot_dimension_numbers<[1], [1], [0], [0], [0, 0, 1, 0], [], []>} : vector<16x128xbf16>, vector<32x128xbf16>, vector<16x32xf32> -> vector<16x32xf32>
    %cst_51 = arith.constant 0.0883883461 : f32
    %80 = vector.broadcast %cst_51 : f32 to vector<16x32xf32>
    %81 = arith.mulf %79, %80 : vector<16x32xf32>
    %82 = vector.broadcast %77 : vector<1x32xf32> to vector<16x32xf32>
    %83 = arith.addf %81, %82 : vector<16x32xf32>
    %cst_52 = arith.constant dense<0xFF800000> : vector<16xf32>
    %84 = vector.multi_reduction <maximumf>, %83, %cst_52 [1] : vector<16x32xf32> to vector<16xf32>
    %85 = vector.shape_cast %84 : vector<16xf32> to vector<16x1xf32>
    %86 = vector.broadcast %85 : vector<16x1xf32> to vector<16x32xf32>
    %87 = arith.subf %83, %86 : vector<16x32xf32>
    %88 = math.exp %87 : vector<16x32xf32>
    %cst_53 = arith.constant dense<0.000000e+00> : vector<16xf32>
    %89 = vector.multi_reduction <add>, %88, %cst_53 [1] : vector<16x32xf32> to vector<16xf32>
    %90 = vector.shape_cast %89 : vector<16xf32> to vector<16x1xf32>
    %91 = tpu.reciprocal %90 {approx = true} : vector<16x1xf32> -> vector<16x1xf32>
    %92 = vector.broadcast %91 : vector<16x1xf32> to vector<16x32xf32>
    %93 = arith.mulf %88, %92 : vector<16x32xf32>
    %94 = arith.truncf %93 : vector<16x32xf32> to vector<16x32xbf16>
    %cst_54 = arith.constant dense<0.000000e+00> : vector<16x128xf32>
    %95 = tpu.matmul %94, %76, %cst_54 {dimension_numbers = #tpu.dot_dimension_numbers<[1], [0], [0], [1], [0, 0, 1, 1], [], []>} : vector<16x32xbf16>, vector<32x128xbf16>, vector<16x128xf32> -> vector<16x128xf32>
    %96 = arith.extf %69 : vector<16x128xbf16> to vector<16x128xf32>
    %97 = arith.truncf %95 : vector<16x128xf32> to vector<16x128xbf16>
    %cst_55 = arith.constant dense<0.000000e+00> : vector<16x128xf32>
    %98 = tpu.matmul %97, %2, %cst_55 {dimension_numbers = #tpu.dot_dimension_numbers<[1], [0], [0], [1], [0, 0, 1, 1], [], []>} : vector<16x128xbf16>, vector<128x128xbf16>, vector<16x128xf32> -> vector<16x128xf32>
    %99 = arith.addf %96, %98 : vector<16x128xf32>
    %100 = arith.truncf %99 : vector<16x128xf32> to vector<16x128xbf16>
    %cst_56 = arith.constant dense<0.000000e+00> : vector<16x256xf32>
    %101 = tpu.matmul %100, %3, %cst_56 {dimension_numbers = #tpu.dot_dimension_numbers<[1], [0], [0], [1], [0, 0, 1, 1], [], []>} : vector<16x128xbf16>, vector<128x256xbf16>, vector<16x256xf32> -> vector<16x256xf32>
    %cst_57 = arith.constant 0.000000e+00 : f32
    %102 = vector.broadcast %cst_57 : f32 to vector<16x256xf32>
    %103 = arith.maximumf %101, %102 : vector<16x256xf32>
    %104 = arith.truncf %103 : vector<16x256xf32> to vector<16x256xbf16>
    %cst_58 = arith.constant dense<0.000000e+00> : vector<16x128xf32>
    %105 = tpu.matmul %104, %11, %cst_58 {dimension_numbers = #tpu.dot_dimension_numbers<[1], [0], [0], [1], [0, 0, 1, 1], [], []>} : vector<16x256xbf16>, vector<256x128xbf16>, vector<16x128xf32> -> vector<16x128xf32>
    %106 = arith.addf %99, %105 : vector<16x128xf32>
    %107 = arith.truncf %106 : vector<16x128xf32> to vector<16x128xbf16>
    %c16_59 = arith.constant 16 : index
    %c0_60 = arith.constant 0 : index
    %108 = vector.load %arg11[%c16_59, %c0_60] : memref<48x128xbf16, #tpu.memory_space<vmem>>, vector<16x128xbf16>
    tpu.vector_store %arg11[%c16_59, %c0_60], %107 {strides = array<i32>} : memref<48x128xbf16, #tpu.memory_space<vmem>>, vector<16x128xbf16>,
    %cst_61 = arith.constant dense<0.000000e+00> : vector<16x256xf32>
    %109 = tpu.matmul %107, %1, %cst_61 {dimension_numbers = #tpu.dot_dimension_numbers<[1], [0], [0], [1], [0, 0, 1, 1], [], []>} : vector<16x128xbf16>, vector<128x256xbf16>, vector<16x256xf32> -> vector<16x256xf32>
    %110 = arith.truncf %109 : vector<16x256xf32> to vector<16x256xbf16>
    %c16_62 = arith.constant 16 : index
    %c0_63 = arith.constant 0 : index
    %111 = vector.load %arg10[%c16_62, %c0_63] : memref<48x256xbf16, #tpu.memory_space<vmem>>, vector<16x256xbf16>
    tpu.vector_store %arg10[%c16_62, %c0_63], %110 {strides = array<i32>} : memref<48x256xbf16, #tpu.memory_space<vmem>>, vector<16x256xbf16>,
    %cst_64 = arith.constant dense<0.000000e+00> : vector<128xf32>
    %112 = vector.multi_reduction <add>, %106, %cst_64 [0] : vector<16x128xf32> to vector<128xf32>
    %113 = vector.shape_cast %112 : vector<128xf32> to vector<1x128xf32>
    %cst_65 = arith.constant 1.600000e+01 : f32
    %114 = vector.broadcast %cst_65 : f32 to vector<1x128xf32>
    %115 = arith.divf %113, %114 : vector<1x128xf32>
    %116 = vector.extract_strided_slice %15 {offsets = [32, 0], sizes = [16, 128], strides = [1, 1]} : vector<48x128xbf16> to vector<16x128xbf16>
    %cst_66 = arith.constant dense<0.000000e+00> : vector<16x256xf32>
    %117 = tpu.matmul %116, %1, %cst_66 {dimension_numbers = #tpu.dot_dimension_numbers<[1], [0], [0], [1], [0, 0, 1, 1], [], []>} : vector<16x128xbf16>, vector<128x256xbf16>, vector<16x256xf32> -> vector<16x256xf32>
    %118 = arith.truncf %117 : vector<16x256xf32> to vector<16x256xbf16>
    %c32 = arith.constant 32 : index
    %c0_67 = arith.constant 0 : index
    %119 = vector.load %arg10[%c32, %c0_67] : memref<48x256xbf16, #tpu.memory_space<vmem>>, vector<16x256xbf16>
    tpu.vector_store %arg10[%c32, %c0_67], %118 {strides = array<i32>} : memref<48x256xbf16, #tpu.memory_space<vmem>>, vector<16x256xbf16>,
    %cst_68 = arith.constant dense<0.000000e+00> : vector<16x128xf32>
    %120 = tpu.matmul %116, %0, %cst_68 {dimension_numbers = #tpu.dot_dimension_numbers<[1], [0], [0], [1], [0, 0, 1, 1], [], []>} : vector<16x128xbf16>, vector<128x128xbf16>, vector<16x128xf32> -> vector<16x128xf32>
    %c0_69 = arith.constant 0 : index
    %c0_70 = arith.constant 0 : index
    %121 = vector.load %arg10[%c0_69, %c0_70] : memref<48x256xbf16, #tpu.memory_space<vmem>>, vector<48x256xbf16>
    %122 = vector.extract_strided_slice %121 {offsets = [0, 0], sizes = [48, 128], strides = [1, 1]} : vector<48x256xbf16> to vector<48x128xbf16>
    %123 = vector.extract_strided_slice %121 {offsets = [0, 128], sizes = [48, 128], strides = [1, 1]} : vector<48x256xbf16> to vector<48x128xbf16>
    %124 = arith.truncf %120 : vector<16x128xf32> to vector<16x128xbf16>
    %cst_71 = arith.constant dense<0.000000e+00> : vector<16x48xf32>
    %125 = tpu.matmul %124, %122, %cst_71 {dimension_numbers = #tpu.dot_dimension_numbers<[1], [1], [0], [0], [0, 0, 1, 0], [], []>} : vector<16x128xbf16>, vector<48x128xbf16>, vector<16x48xf32> -> vector<16x48xf32>
    %cst_72 = arith.constant 0.0883883461 : f32
    %126 = vector.broadcast %cst_72 : f32 to vector<16x48xf32>
    %127 = arith.mulf %125, %126 : vector<16x48xf32>
    %128 = vector.broadcast %21 : vector<1x48xf32> to vector<16x48xf32>
    %129 = arith.addf %127, %128 : vector<16x48xf32>
    %cst_73 = arith.constant dense<0xFF800000> : vector<16xf32>
    %130 = vector.multi_reduction <maximumf>, %129, %cst_73 [1] : vector<16x48xf32> to vector<16xf32>
    %131 = vector.shape_cast %130 : vector<16xf32> to vector<16x1xf32>
    %132 = vector.broadcast %131 : vector<16x1xf32> to vector<16x48xf32>
    %133 = arith.subf %129, %132 : vector<16x48xf32>
    %134 = math.exp %133 : vector<16x48xf32>
    %cst_74 = arith.constant dense<0.000000e+00> : vector<16xf32>
    %135 = vector.multi_reduction <add>, %134, %cst_74 [1] : vector<16x48xf32> to vector<16xf32>
    %136 = vector.shape_cast %135 : vector<16xf32> to vector<16x1xf32>
    %137 = tpu.reciprocal %136 {approx = true} : vector<16x1xf32> -> vector<16x1xf32>
    %138 = vector.broadcast %137 : vector<16x1xf32> to vector<16x48xf32>
    %139 = arith.mulf %134, %138 : vector<16x48xf32>
    %140 = arith.truncf %139 : vector<16x48xf32> to vector<16x48xbf16>
    %cst_75 = arith.constant dense<0.000000e+00> : vector<16x128xf32>
    %141 = tpu.matmul %140, %123, %cst_75 {dimension_numbers = #tpu.dot_dimension_numbers<[1], [0], [0], [1], [0, 0, 1, 1], [], []>} : vector<16x48xbf16>, vector<48x128xbf16>, vector<16x128xf32> -> vector<16x128xf32>
    %142 = arith.extf %116 : vector<16x128xbf16> to vector<16x128xf32>
    %143 = arith.truncf %141 : vector<16x128xf32> to vector<16x128xbf16>
    %cst_76 = arith.constant dense<0.000000e+00> : vector<16x128xf32>
    %144 = tpu.matmul %143, %2, %cst_76 {dimension_numbers = #tpu.dot_dimension_numbers<[1], [0], [0], [1], [0, 0, 1, 1], [], []>} : vector<16x128xbf16>, vector<128x128xbf16>, vector<16x128xf32> -> vector<16x128xf32>
    %145 = arith.addf %142, %144 : vector<16x128xf32>
    %146 = arith.truncf %145 : vector<16x128xf32> to vector<16x128xbf16>
    %cst_77 = arith.constant dense<0.000000e+00> : vector<16x256xf32>
    %147 = tpu.matmul %146, %3, %cst_77 {dimension_numbers = #tpu.dot_dimension_numbers<[1], [0], [0], [1], [0, 0, 1, 1], [], []>} : vector<16x128xbf16>, vector<128x256xbf16>, vector<16x256xf32> -> vector<16x256xf32>
    %cst_78 = arith.constant 0.000000e+00 : f32
    %148 = vector.broadcast %cst_78 : f32 to vector<16x256xf32>
    %149 = arith.maximumf %147, %148 : vector<16x256xf32>
    %150 = arith.truncf %149 : vector<16x256xf32> to vector<16x256xbf16>
    %cst_79 = arith.constant dense<0.000000e+00> : vector<16x128xf32>
    %151 = tpu.matmul %150, %11, %cst_79 {dimension_numbers = #tpu.dot_dimension_numbers<[1], [0], [0], [1], [0, 0, 1, 1], [], []>} : vector<16x256xbf16>, vector<256x128xbf16>, vector<16x128xf32> -> vector<16x128xf32>
    %152 = arith.addf %145, %151 : vector<16x128xf32>
    %153 = arith.truncf %152 : vector<16x128xf32> to vector<16x128xbf16>
    %c32_80 = arith.constant 32 : index
    %c0_81 = arith.constant 0 : index
    %154 = vector.load %arg11[%c32_80, %c0_81] : memref<48x128xbf16, #tpu.memory_space<vmem>>, vector<16x128xbf16>
    tpu.vector_store %arg11[%c32_80, %c0_81], %153 {strides = array<i32>} : memref<48x128xbf16, #tpu.memory_space<vmem>>, vector<16x128xbf16>,
    %c0_82 = arith.constant 0 : index
    %c0_83 = arith.constant 0 : index
    %c0_84 = arith.constant 0 : index
    %155 = vector.load %arg3[%c0_82, %c0_83, %c0_84] : memref<1x8x128xbf16, #tpu.memory_space<vmem>>, vector<1x8x128xbf16>
    %156 = vector.shape_cast %155 : vector<1x8x128xbf16> to vector<8x128xbf16>
    %157 = tpu.concatenate %68, %115 in 0 : vector<1x128xf32>, vector<1x128xf32> -> vector<2x128xf32>
    %158 = arith.truncf %157 : vector<2x128xf32> to vector<2x128xbf16>
    %159 = tpu.concatenate %158, %156 in 0 : vector<2x128xbf16>, vector<8x128xbf16> -> vector<10x128xbf16>
    %cst_85 = arith.constant dense<0.000000e+00> : vector<10x256xf32>
    %160 = tpu.matmul %159, %5, %cst_85 {dimension_numbers = #tpu.dot_dimension_numbers<[1], [0], [0], [1], [0, 0, 1, 1], [], []>} : vector<10x128xbf16>, vector<128x256xbf16>, vector<10x256xf32> -> vector<10x256xf32>
    %161 = vector.extract_strided_slice %160 {offsets = [0, 0], sizes = [2, 256], strides = [1, 1]} : vector<10x256xf32> to vector<2x256xf32>
    %162 = vector.extract_strided_slice %160 {offsets = [2, 0], sizes = [8, 256], strides = [1, 1]} : vector<10x256xf32> to vector<8x256xf32>
    %163 = vector.extract_strided_slice %161 {offsets = [0, 0], sizes = [1, 256], strides = [1, 1]} : vector<2x256xf32> to vector<1x256xf32>
    %164 = vector.shape_cast %163 : vector<1x256xf32> to vector<1x256xf32>
    %165 = vector.broadcast %164 : vector<1x256xf32> to vector<8x256xf32>
    %166 = vector.extract_strided_slice %161 {offsets = [1, 0], sizes = [1, 256], strides = [1, 1]} : vector<2x256xf32> to vector<1x256xf32>
    %167 = vector.shape_cast %166 : vector<1x256xf32> to vector<1x256xf32>
    %168 = vector.broadcast %167 : vector<1x256xf32> to vector<8x256xf32>
    %169 = tpu.concatenate %165, %168, %162 in 0 : vector<8x256xf32>, vector<8x256xf32>, vector<8x256xf32> -> vector<24x256xf32>
    %cst_86 = arith.constant dense<0.000000e+00> : vector<8x128xf32>
    %170 = tpu.matmul %156, %4, %cst_86 {dimension_numbers = #tpu.dot_dimension_numbers<[1], [0], [0], [1], [0, 0, 1, 1], [], []>} : vector<8x128xbf16>, vector<128x128xbf16>, vector<8x128xf32> -> vector<8x128xf32>
    %c0_87 = arith.constant 0 : index
    %c0_88 = arith.constant 0 : index
    %c0_89 = arith.constant 0 : index
    %171 = vector.load %arg4[%c0_87, %c0_88, %c0_89] : memref<1x1x24xf32, #tpu.memory_space<vmem>>, vector<1x1x24xf32>
    %172 = vector.shape_cast %171 : vector<1x1x24xf32> to vector<1x24xf32>
    %cst_90 = arith.constant 1.000000e+00 : f32
    %173 = vector.broadcast %cst_90 : f32 to vector<1x24xf32>
    %174 = arith.subf %173, %172 : vector<1x24xf32>
    %cst_91 = arith.constant -1.000000e+09 : f32
    %175 = vector.broadcast %cst_91 : f32 to vector<1x24xf32>
    %176 = arith.mulf %174, %175 : vector<1x24xf32>
    %177 = tpu.iota {dimensions = array<i32: 0>} : vector<8x24xi32>
    %178 = tpu.iota {dimensions = array<i32: 1>} : vector<8x24xi32>
    %c16_i32 = arith.constant 16 : i32
    %179 = vector.broadcast %c16_i32 : i32 to vector<8x24xi32>
    %180 = arith.addi %177, %179 : vector<8x24xi32>
    %181 = arith.cmpi sle, %178, %180 : vector<8x24xi32>
    %cst_92 = arith.constant 0.000000e+00 : f32
    %cst_93 = arith.constant -1.000000e+09 : f32
    %182 = vector.broadcast %cst_92 : f32 to vector<8x24xf32>
    %183 = vector.broadcast %cst_93 : f32 to vector<8x24xf32>
    %184 = arith.select %181, %182, %183 : vector<8x24xi1>, vector<8x24xf32>
    %185 = vector.extract_strided_slice %169 {offsets = [0, 0], sizes = [24, 128], strides = [1, 1]} : vector<24x256xf32> to vector<24x128xf32>
    %186 = vector.extract_strided_slice %169 {offsets = [0, 128], sizes = [24, 128], strides = [1, 1]} : vector<24x256xf32> to vector<24x128xf32>
    %187 = vector.broadcast %176 : vector<1x24xf32> to vector<8x24xf32>
    %188 = arith.addf %187, %184 : vector<8x24xf32>
    %189 = arith.truncf %170 : vector<8x128xf32> to vector<8x128xbf16>
    %190 = arith.truncf %185 : vector<24x128xf32> to vector<24x128xbf16>
    %cst_94 = arith.constant dense<0.000000e+00> : vector<8x24xf32>
    %191 = tpu.matmul %189, %190, %cst_94 {dimension_numbers = #tpu.dot_dimension_numbers<[1], [1], [0], [0], [0, 0, 1, 0], [], []>} : vector<8x128xbf16>, vector<24x128xbf16>, vector<8x24xf32> -> vector<8x24xf32>
    %cst_95 = arith.constant 0.0883883461 : f32
    %192 = vector.broadcast %cst_95 : f32 to vector<8x24xf32>
    %193 = arith.mulf %191, %192 : vector<8x24xf32>
    %194 = arith.addf %193, %188 : vector<8x24xf32>
    %cst_96 = arith.constant dense<0xFF800000> : vector<8xf32>
    %195 = vector.multi_reduction <maximumf>, %194, %cst_96 [1] : vector<8x24xf32> to vector<8xf32>
    %196 = vector.shape_cast %195 : vector<8xf32> to vector<8x1xf32>
    %197 = vector.broadcast %196 : vector<8x1xf32> to vector<8x24xf32>
    %198 = arith.subf %194, %197 : vector<8x24xf32>
    %199 = math.exp %198 : vector<8x24xf32>
    %cst_97 = arith.constant dense<0.000000e+00> : vector<8xf32>
    %200 = vector.multi_reduction <add>, %199, %cst_97 [1] : vector<8x24xf32> to vector<8xf32>
    %201 = vector.shape_cast %200 : vector<8xf32> to vector<8x1xf32>
    %202 = tpu.reciprocal %201 {approx = true} : vector<8x1xf32> -> vector<8x1xf32>
    %203 = vector.broadcast %202 : vector<8x1xf32> to vector<8x24xf32>
    %204 = arith.mulf %199, %203 : vector<8x24xf32>
    %205 = arith.truncf %204 : vector<8x24xf32> to vector<8x24xbf16>
    %206 = arith.truncf %186 : vector<24x128xf32> to vector<24x128xbf16>
    %cst_98 = arith.constant dense<0.000000e+00> : vector<8x128xf32>
    %207 = tpu.matmul %205, %206, %cst_98 {dimension_numbers = #tpu.dot_dimension_numbers<[1], [0], [0], [1], [0, 0, 1, 1], [], []>} : vector<8x24xbf16>, vector<24x128xbf16>, vector<8x128xf32> -> vector<8x128xf32>
    %208 = arith.extf %156 : vector<8x128xbf16> to vector<8x128xf32>
    %209 = arith.truncf %207 : vector<8x128xf32> to vector<8x128xbf16>
    %cst_99 = arith.constant dense<0.000000e+00> : vector<8x128xf32>
    %210 = tpu.matmul %209, %6, %cst_99 {dimension_numbers = #tpu.dot_dimension_numbers<[1], [0], [0], [1], [0, 0, 1, 1], [], []>} : vector<8x128xbf16>, vector<128x128xbf16>, vector<8x128xf32> -> vector<8x128xf32>
    %211 = arith.addf %208, %210 : vector<8x128xf32>
    %c0_100 = arith.constant 0 : index
    %c0_101 = arith.constant 0 : index
    %212 = vector.load %arg11[%c0_100, %c0_101] : memref<48x128xbf16, #tpu.memory_space<vmem>>, vector<48x128xbf16>
    %213 = arith.truncf %211 : vector<8x128xf32> to vector<8x128xbf16>
    %cst_102 = arith.constant dense<0.000000e+00> : vector<8x128xf32>
    %214 = tpu.matmul %213, %8, %cst_102 {dimension_numbers = #tpu.dot_dimension_numbers<[1], [0], [0], [1], [0, 0, 1, 1], [], []>} : vector<8x128xbf16>, vector<128x128xbf16>, vector<8x128xf32> -> vector<8x128xf32>
    %cst_103 = arith.constant dense<0.000000e+00> : vector<48x256xf32>
    %215 = tpu.matmul %212, %9, %cst_103 {dimension_numbers = #tpu.dot_dimension_numbers<[1], [0], [0], [1], [0, 0, 1, 1], [], []>} : vector<48x128xbf16>, vector<128x256xbf16>, vector<48x256xf32> -> vector<48x256xf32>
    %216 = vector.extract_strided_slice %215 {offsets = [0, 0], sizes = [48, 128], strides = [1, 1]} : vector<48x256xf32> to vector<48x128xf32>
    %217 = vector.extract_strided_slice %215 {offsets = [0, 128], sizes = [48, 128], strides = [1, 1]} : vector<48x256xf32> to vector<48x128xf32>
    %218 = arith.truncf %214 : vector<8x128xf32> to vector<8x128xbf16>
    %219 = arith.truncf %216 : vector<48x128xf32> to vector<48x128xbf16>
    %cst_104 = arith.constant dense<0.000000e+00> : vector<8x48xf32>
    %220 = tpu.matmul %218, %219, %cst_104 {dimension_numbers = #tpu.dot_dimension_numbers<[1], [1], [0], [0], [0, 0, 1, 0], [], []>} : vector<8x128xbf16>, vector<48x128xbf16>, vector<8x48xf32> -> vector<8x48xf32>
    %cst_105 = arith.constant 0.0883883461 : f32
    %221 = vector.broadcast %cst_105 : f32 to vector<8x48xf32>
    %222 = arith.mulf %220, %221 : vector<8x48xf32>
    %223 = vector.broadcast %21 : vector<1x48xf32> to vector<8x48xf32>
    %224 = arith.addf %222, %223 : vector<8x48xf32>
    %cst_106 = arith.constant dense<0xFF800000> : vector<8xf32>
    %225 = vector.multi_reduction <maximumf>, %224, %cst_106 [1] : vector<8x48xf32> to vector<8xf32>
    %226 = vector.shape_cast %225 : vector<8xf32> to vector<8x1xf32>
    %227 = vector.broadcast %226 : vector<8x1xf32> to vector<8x48xf32>
    %228 = arith.subf %224, %227 : vector<8x48xf32>
    %229 = math.exp %228 : vector<8x48xf32>
    %cst_107 = arith.constant dense<0.000000e+00> : vector<8xf32>
    %230 = vector.multi_reduction <add>, %229, %cst_107 [1] : vector<8x48xf32> to vector<8xf32>
    %231 = vector.shape_cast %230 : vector<8xf32> to vector<8x1xf32>
    %232 = tpu.reciprocal %231 {approx = true} : vector<8x1xf32> -> vector<8x1xf32>
    %233 = vector.broadcast %232 : vector<8x1xf32> to vector<8x48xf32>
    %234 = arith.mulf %229, %233 : vector<8x48xf32>
    %235 = arith.truncf %234 : vector<8x48xf32> to vector<8x48xbf16>
    %236 = arith.truncf %217 : vector<48x128xf32> to vector<48x128xbf16>
    %cst_108 = arith.constant dense<0.000000e+00> : vector<8x128xf32>
    %237 = tpu.matmul %235, %236, %cst_108 {dimension_numbers = #tpu.dot_dimension_numbers<[1], [0], [0], [1], [0, 0, 1, 1], [], []>} : vector<8x48xbf16>, vector<48x128xbf16>, vector<8x128xf32> -> vector<8x128xf32>
    %238 = arith.truncf %237 : vector<8x128xf32> to vector<8x128xbf16>
    %cst_109 = arith.constant dense<0.000000e+00> : vector<8x128xf32>
    %239 = tpu.matmul %238, %10, %cst_109 {dimension_numbers = #tpu.dot_dimension_numbers<[1], [0], [0], [1], [0, 0, 1, 1], [], []>} : vector<8x128xbf16>, vector<128x128xbf16>, vector<8x128xf32> -> vector<8x128xf32>
    %240 = arith.addf %211, %239 : vector<8x128xf32>
    %241 = arith.truncf %240 : vector<8x128xf32> to vector<8x128xbf16>
    %cst_110 = arith.constant dense<0.000000e+00> : vector<8x256xf32>
    %242 = tpu.matmul %241, %7, %cst_110 {dimension_numbers = #tpu.dot_dimension_numbers<[1], [0], [0], [1], [0, 0, 1, 1], [], []>} : vector<8x128xbf16>, vector<128x256xbf16>, vector<8x256xf32> -> vector<8x256xf32>
    %cst_111 = arith.constant 0.000000e+00 : f32
    %243 = vector.broadcast %cst_111 : f32 to vector<8x256xf32>
    %244 = arith.maximumf %242, %243 : vector<8x256xf32>
    %245 = arith.truncf %244 : vector<8x256xf32> to vector<8x256xbf16>
    %cst_112 = arith.constant dense<0.000000e+00> : vector<8x128xf32>
    %246 = tpu.matmul %245, %12, %cst_112 {dimension_numbers = #tpu.dot_dimension_numbers<[1], [0], [0], [1], [0, 0, 1, 1], [], []>} : vector<8x256xbf16>, vector<256x128xbf16>, vector<8x128xf32> -> vector<8x128xf32>
    %247 = arith.addf %240, %246 : vector<8x128xf32>
    %248 = arith.truncf %247 : vector<8x128xf32> to vector<8x128xbf16>
    %cst_113 = arith.constant dense<0.000000e+00> : vector<8x256xf32>
    %249 = tpu.matmul %248, %13, %cst_113 {dimension_numbers = #tpu.dot_dimension_numbers<[1], [1], [0], [0], [0, 0, 1, 0], [], []>} : vector<8x128xbf16>, vector<256x128xbf16>, vector<8x256xf32> -> vector<8x256xf32>
    %c0_114 = arith.constant 0 : index
    %c0_115 = arith.constant 0 : index
    %c0_116 = arith.constant 0 : index
    %250 = vector.load %arg5[%c0_114, %c0_115, %c0_116] : memref<1x8x1xi32, #tpu.memory_space<vmem>>, vector<1x8x1xi32>
    %251 = vector.shape_cast %250 : vector<1x8x1xi32> to vector<8x1xi32>
    %252 = tpu.iota {dimensions = array<i32: 1>} : vector<8x256xi32>
    %253 = vector.broadcast %251 : vector<8x1xi32> to vector<8x256xi32>
    %254 = arith.cmpi eq, %252, %253 : vector<8x256xi32>
    %cst_117 = arith.constant 0.000000e+00 : f32
    %255 = vector.broadcast %cst_117 : f32 to vector<8x256xf32>
    %256 = arith.select %254, %249, %255 : vector<8x256xi1>, vector<8x256xf32>
    %cst_118 = arith.constant dense<0.000000e+00> : vector<8xf32>
    %257 = vector.multi_reduction <add>, %256, %cst_118 [1] : vector<8x256xf32> to vector<8xf32>
    %258 = vector.shape_cast %257 : vector<8xf32> to vector<8x1xf32>
    %cst_119 = arith.constant dense<0xFF800000> : vector<8xf32>
    %259 = vector.multi_reduction <maximumf>, %249, %cst_119 [1] : vector<8x256xf32> to vector<8xf32>
    %260 = vector.shape_cast %259 : vector<8xf32> to vector<8x1xf32>
    %261 = vector.broadcast %260 : vector<8x1xf32> to vector<8x256xf32>
    %262 = arith.subf %249, %261 : vector<8x256xf32>
    %263 = math.exp %262 : vector<8x256xf32>
    %cst_120 = arith.constant dense<0.000000e+00> : vector<8xf32>
    %264 = vector.multi_reduction <add>, %263, %cst_120 [1] : vector<8x256xf32> to vector<8xf32>
    %265 = vector.shape_cast %264 : vector<8xf32> to vector<8x1xf32>
    %266 = math.log %265 : vector<8x1xf32>
    %267 = arith.addf %266, %260 : vector<8x1xf32>
    %c0_121 = arith.constant 0 : index
    %c0_122 = arith.constant 0 : index
    %c0_123 = arith.constant 0 : index
    %268 = vector.load %arg6[%c0_121, %c0_122, %c0_123] : memref<1x8x1xf32, #tpu.memory_space<vmem>>, vector<1x8x1xf32>
    %269 = vector.shape_cast %268 : vector<1x8x1xf32> to vector<8x1xf32>
    %270 = arith.subf %267, %258 : vector<8x1xf32>
    %271 = arith.mulf %270, %269 : vector<8x1xf32>
    %272 = vector.shape_cast %271 : vector<8x1xf32> to vector<1x8x1xf32>
    %cst_124 = arith.constant dense<0.000000e+00> : vector<1xf32>
    %273 = vector.multi_reduction <add>, %272, %cst_124 [1, 2] : vector<1x8x1xf32> to vector<1xf32>
    %274 = vector.shape_cast %273 : vector<1xf32> to vector<1x1x1xf32>
    %275 = vector.extract %274[0, 0, 0] : f32 from vector<1x1x1xf32>
    %276 = vector.broadcast %275 : f32 to vector<1x1xf32>
    %277 = vector.shape_cast %269 : vector<8x1xf32> to vector<1x8x1xf32>
    %cst_125 = arith.constant dense<0.000000e+00> : vector<1xf32>
    %278 = vector.multi_reduction <add>, %277, %cst_125 [1, 2] : vector<1x8x1xf32> to vector<1xf32>
    %279 = vector.shape_cast %278 : vector<1xf32> to vector<1x1x1xf32>
    %280 = vector.extract %279[0, 0, 0] : f32 from vector<1x1x1xf32>
    %281 = vector.broadcast %280 : f32 to vector<1x1xf32>
    %282 = tpu.concatenate %276, %281 in 1 : vector<1x1xf32>, vector<1x1xf32> -> vector<1x2xf32>
    %283 = vector.shape_cast %282 : vector<1x2xf32> to vector<1x1x2xf32>
    %c0_126 = arith.constant 0 : index
    %c0_127 = arith.constant 0 : index
    %c0_128 = arith.constant 0 : index
    %284 = vector.load %arg9[%c0_126, %c0_127, %c0_128] : memref<1x1x2xf32, #tpu.memory_space<vmem>>, vector<1x1x2xf32>
    tpu.vector_store %arg9[%c0_126, %c0_127, %c0_128], %283 {strides = array<i32>} : memref<1x1x2xf32, #tpu.memory_space<vmem>>, vector<1x1x2xf32>,
    return
  }
  func.func @transform_0(%arg0: i32) -> (i32, i32, i32) {
    %c0_i32 = arith.constant 0 : i32
    %c0_i32_0 = arith.constant 0 : i32
    %c0_i32_1 = arith.constant 0 : i32
    return %arg0, %c0_i32, %c0_i32_0 : i32, i32, i32
  }
  func.func @transform_1(%arg0: i32) -> (i32, i32, i32) {
    %c0_i32 = arith.constant 0 : i32
    %c0_i32_0 = arith.constant 0 : i32
    %c0_i32_1 = arith.constant 0 : i32
    return %arg0, %c0_i32, %c0_i32_0 : i32, i32, i32
  }
  func.func @transform_2(%arg0: i32) -> (i32, i32, i32) {
    %c0_i32 = arith.constant 0 : i32
    %c0_i32_0 = arith.constant 0 : i32
    %c0_i32_1 = arith.constant 0 : i32
    return %arg0, %c0_i32, %c0_i32_0 : i32, i32, i32
  }
  func.func @transform_3(%arg0: i32) -> (i32, i32, i32) {
    %c0_i32 = arith.constant 0 : i32
    %c0_i32_0 = arith.constant 0 : i32
    %c0_i32_1 = arith.constant 0 : i32
    return %arg0, %c0_i32, %c0_i32_0 : i32, i32, i32
  }
  func.func @transform_4(%arg0: i32) -> (i32, i32, i32) {
    %c0_i32 = arith.constant 0 : i32
    %c0_i32_0 = arith.constant 0 : i32
    %c0_i32_1 = arith.constant 0 : i32
    return %arg0, %c0_i32, %c0_i32_0 : i32, i32, i32
  }
  func.func @transform_5(%arg0: i32) -> (i32, i32, i32) {
    %c0_i32 = arith.constant 0 : i32
    %c0_i32_0 = arith.constant 0 : i32
    %c0_i32_1 = arith.constant 0 : i32
    return %arg0, %c0_i32, %c0_i32_0 : i32, i32, i32
  }
  func.func @transform_6(%arg0: i32) -> (i32, i32) {
    %c0_i32 = arith.constant 0 : i32
    %c0_i32_0 = arith.constant 0 : i32
    %c0_i32_1 = arith.constant 0 : i32
    return %c0_i32, %c0_i32_0 : i32, i32
  }
  func.func @transform_7(%arg0: i32) -> (i32, i32) {
    %c0_i32 = arith.constant 0 : i32
    %c0_i32_0 = arith.constant 0 : i32
    %c0_i32_1 = arith.constant 0 : i32
    return %c0_i32, %c0_i32_0 : i32, i32
  }
  func.func @transform_8(%arg0: i32) -> (i32, i32, i32) {
    %c0_i32 = arith.constant 0 : i32
    %c0_i32_0 = arith.constant 0 : i32
    %c0_i32_1 = arith.constant 0 : i32
    return %arg0, %c0_i32, %c0_i32_0 : i32, i32, i32
  }
}

</mosaic_0001>

<llo_original>
// kernel: double_model_forward.1
$region0: #{double_model_forward.1}
  #allocation0 [shape = 'u32[]', space=smem, size = 0x4, offset = 0x4, fixed_abs, tag = 'smem constant byte address 0x4 - core index']
  #allocation1 [shape = 'u32[144,128]{1,0:T(1,128)}', space=vmem, size = 0x12000, scoped, tag = 'internal scratch']
  #allocation2 [shape = 'bf16[48,256]{1,0:T(8,128)(2,1)}', space=vmem, size = 0x6000, scoped, tag = 'scratch operand']
  #allocation3 [shape = 'bf16[48,128]{1,0:T(8,128)(2,1)}', space=vmem, size = 0x3000, scoped, tag = 'scratch operand']
  %s0 = inlined_call_operand.vmem [shape: bf16[2,48,128], index: 0, kind: input, shape index: {}]
  %s1 = inlined_call_operand.vmem [shape: f32[2,1,48], index: 1, kind: input, shape index: {}]
  %s2 = inlined_call_operand.vmem [shape: bf16[2,8,128], index: 2, kind: input, shape index: {}]
  %s3 = inlined_call_operand.vmem [shape: f32[2,1,24], index: 3, kind: input, shape index: {}]
  %s4 = inlined_call_operand.vmem [shape: s32[2,8,1], index: 4, kind: input, shape index: {}]
  %s5 = inlined_call_operand.vmem [shape: f32[2,8,1], index: 5, kind: input, shape index: {}]
  %s6 = inlined_call_operand.hbm [shape: bf16[128,2048], index: 6, kind: input, shape index: {}]
  %s7 = inlined_call_operand.vmem [shape: bf16[768,128], index: 7, kind: input, shape index: {}]
  %s8 = inlined_call_operand.vmem [shape: f32[2,1,2], index: 8, kind: output, shape index: {}]
  %s9 = sld [smem:[#allocation0]]
  $region69: #{double_model_forward.1} parent=0
    _
  %s11 = ssub.s32 1, %s9
  %s12 = scalar_select 0, %s11, %s9
  $region1: #{double_model_forward.1} parent=0
    #allocation4 [shape = 'u8[524288]{0}', space=vmem, size = 0x80000, scoped, tag = 'input window, operand 6, single buffered']
    #allocation5 [shape = 's32[2]{0}', space=sflag, size = 0x8, scoped, tag = 'scoped memory for double_model_forward.1']
    %13 = vsyncpa [#allocation5], 0
    loop: start=0, step=1, limit=4
    $region2: #{double_model_forward.1} parent=1 // loop_pre_header
      _
    $region3: #{double_model_forward.1} parent=1 // loop_header
      %s15 = sphi 0, %s19
      %p16 = scmp.ge.s32.totalorder %s15, 4
      %s25 = sphi 0, %s27
      %s28 = sphi 0, %s25
      %s29 = sphi 0, %s28
      %s45 = sphi 0, %s29
      %s51 = sphi 0, %s53
      %s54 = sphi 0, %s51
      %s55 = sphi 0, %s54
      %s71 = sphi 0, %s55
      %s77 = sphi 0, %s79
      %s80 = sphi 0, %s77
      %s81 = sphi 0, %s80
      %s97 = sphi 0, %s81
      %s103 = sphi 0, %s105
      %s106 = sphi 0, %s103
      %s107 = sphi 0, %s106
      %s123 = sphi 0, %s107
      %s129 = sphi 0, %s131
      %s132 = sphi 0, %s129
      %s133 = sphi 0, %s132
      %s149 = sphi 0, %s133
      %s155 = sphi 0, %s157
      %s158 = sphi 0, %s155
      %s159 = sphi 0, %s158
      %s175 = sphi 0, %s159
      %s179 = sphi 0, %s179
      %s181 = sphi 0, %s179
      %s182 = sphi 0, %s181
      %s196 = sphi 0, %s182
      %s200 = sphi 0, %s200
      %s202 = sphi 0, %s200
      %s203 = sphi 0, %s202
      %s217 = sphi 0, %s203
      %s223 = sphi 0, %s225
      %s226 = sphi 0, %s223
      %s227 = sphi 0, %s226
      %s243 = sphi 0, %s227
    $region4: #{double_model_forward.1} parent=1 // loop_header_branch
      %18 = sbr.rel (%p16) target = $region8
    $region5: #{double_model_forward.1} parent=1 // loop_body
      %s20 = ssub.s32 %s15, 1
      %s21 = ssub.s32 %s15, 2
      %s22 = sadd.s32 %s15, 1
      %s23 = ssub.s32 %s15, %s22
      %p24 = scmp.eq.s32.totalorder %s23, 0
      %s26 = sadd.s32 %s25, 1
      %s27 = scalar_select %p24, %s25, %s26
      %p30 = pneg %p24
      %p31 = scmp.eq.s32.totalorder %s15, 1
      %p32 = por %p30, %p31
      %p33 = scmp.ne.s32.totalorder %s25, %s28
      %p34 = scmp.eq.s32.totalorder %s15, 0
      %p35 = por %p33, %p34
      %p36 = scmp.ne.s32.totalorder %s25, %s28
      %p37 = scmp.eq.s32.totalorder %s20, 1
      %p38 = por %p36, %p37
      %p39 = scmp.ne.s32.totalorder %s28, %s29
      %p40 = scmp.eq.s32.totalorder %s20, 0
      %p41 = por %p39, %p40
      %p42 = scmp.ne.s32.totalorder %s28, %s29
      %p43 = scmp.eq.s32.totalorder %s21, 1
      %p44 = por %p42, %p43
      %p46 = scmp.ne.s32.totalorder %s29, %s45
      %p47 = scmp.eq.s32.totalorder %s21, 0
      %p48 = por %p46, %p47
      %s49 = ssub.s32 %s15, %s22
      %p50 = scmp.eq.s32.totalorder %s49, 0
      %s52 = sadd.s32 %s51, 1
      %s53 = scalar_select %p50, %s51, %s52
      %p56 = pneg %p50
      %p57 = scmp.eq.s32.totalorder %s15, 1
      %p58 = por %p56, %p57
      %p59 = scmp.ne.s32.totalorder %s51, %s54
      %p60 = scmp.eq.s32.totalorder %s15, 0
      %p61 = por %p59, %p60
      %p62 = scmp.ne.s32.totalorder %s51, %s54
      %p63 = scmp.eq.s32.totalorder %s20, 1
      %p64 = por %p62, %p63
      %p65 = scmp.ne.s32.totalorder %s54, %s55
      %p66 = scmp.eq.s32.totalorder %s20, 0
      %p67 = por %p65, %p66
      %p68 = scmp.ne.s32.totalorder %s54, %s55
      %p69 = scmp.eq.s32.totalorder %s21, 1
      %p70 = por %p68, %p69
      %p72 = scmp.ne.s32.totalorder %s55, %s71
      %p73 = scmp.eq.s32.totalorder %s21, 0
      %p74 = por %p72, %p73
      %s75 = ssub.s32 %s15, %s22
      %p76 = scmp.eq.s32.totalorder %s75, 0
      %s78 = sadd.s32 %s77, 1
      %s79 = scalar_select %p76, %s77, %s78
      %p82 = pneg %p76
      %p83 = scmp.eq.s32.totalorder %s15, 1
      %p84 = por %p82, %p83
      %p85 = scmp.ne.s32.totalorder %s77, %s80
      %p86 = scmp.eq.s32.totalorder %s15, 0
      %p87 = por %p85, %p86
      %p88 = scmp.ne.s32.totalorder %s77, %s80
      %p89 = scmp.eq.s32.totalorder %s20, 1
      %p90 = por %p88, %p89
      %p91 = scmp.ne.s32.totalorder %s80, %s81
      %p92 = scmp.eq.s32.totalorder %s20, 0
      %p93 = por %p91, %p92
      %p94 = scmp.ne.s32.totalorder %s80, %s81
      %p95 = scmp.eq.s32.totalorder %s21, 1
      %p96 = por %p94, %p95
      %p98 = scmp.ne.s32.totalorder %s81, %s97
      %p99 = scmp.eq.s32.totalorder %s21, 0
      %p100 = por %p98, %p99
      %s101 = ssub.s32 %s15, %s22
      %p102 = scmp.eq.s32.totalorder %s101, 0
      %s104 = sadd.s32 %s103, 1
      %s105 = scalar_select %p102, %s103, %s104
      %p108 = pneg %p102
      %p109 = scmp.eq.s32.totalorder %s15, 1
      %p110 = por %p108, %p109
      %p111 = scmp.ne.s32.totalorder %s103, %s106
      %p112 = scmp.eq.s32.totalorder %s15, 0
      %p113 = por %p111, %p112
      %p114 = scmp.ne.s32.totalorder %s103, %s106
      %p115 = scmp.eq.s32.totalorder %s20, 1
      %p116 = por %p114, %p115
      %p117 = scmp.ne.s32.totalorder %s106, %s107
      %p118 = scmp.eq.s32.totalorder %s20, 0
      %p119 = por %p117, %p118
      %p120 = scmp.ne.s32.totalorder %s106, %s107
      %p121 = scmp.eq.s32.totalorder %s21, 1
      %p122 = por %p120, %p121
      %p124 = scmp.ne.s32.totalorder %s107, %s123
      %p125 = scmp.eq.s32.totalorder %s21, 0
      %p126 = por %p124, %p125
      %s127 = ssub.s32 %s15, %s22
      %p128 = scmp.eq.s32.totalorder %s127, 0
      %s130 = sadd.s32 %s129, 1
      %s131 = scalar_select %p128, %s129, %s130
      %p134 = pneg %p128
      %p135 = scmp.eq.s32.totalorder %s15, 1
      %p136 = por %p134, %p135
      %p137 = scmp.ne.s32.totalorder %s129, %s132
      %p138 = scmp.eq.s32.totalorder %s15, 0
      %p139 = por %p137, %p138
      %p140 = scmp.ne.s32.totalorder %s129, %s132
      %p141 = scmp.eq.s32.totalorder %s20, 1
      %p142 = por %p140, %p141
      %p143 = scmp.ne.s32.totalorder %s132, %s133
      %p144 = scmp.eq.s32.totalorder %s20, 0
      %p145 = por %p143, %p144
      %p146 = scmp.ne.s32.totalorder %s132, %s133
      %p147 = scmp.eq.s32.totalorder %s21, 1
      %p148 = por %p146, %p147
      %p150 = scmp.ne.s32.totalorder %s133, %s149
      %p151 = scmp.eq.s32.totalorder %s21, 0
      %p152 = por %p150, %p151
      %s153 = ssub.s32 %s15, %s22
      %p154 = scmp.eq.s32.totalorder %s153, 0
      %s156 = sadd.s32 %s155, 1
      %s157 = scalar_select %p154, %s155, %s156
      %p160 = pneg %p154
      %p161 = scmp.eq.s32.totalorder %s15, 1
      %p162 = por %p160, %p161
      %p163 = scmp.ne.s32.totalorder %s155, %s158
      %p164 = scmp.eq.s32.totalorder %s15, 0
      %p165 = por %p163, %p164
      %p166 = scmp.ne.s32.totalorder %s155, %s158
      %p167 = scmp.eq.s32.totalorder %s20, 1
      %p168 = por %p166, %p167
      %p169 = scmp.ne.s32.totalorder %s158, %s159
      %p170 = scmp.eq.s32.totalorder %s20, 0
      %p171 = por %p169, %p170
      %p172 = scmp.ne.s32.totalorder %s158, %s159
      %p173 = scmp.eq.s32.totalorder %s21, 1
      %p174 = por %p172, %p173
      %p176 = scmp.ne.s32.totalorder %s159, %s175
      %p177 = scmp.eq.s32.totalorder %s21, 0
      %p178 = por %p176, %p177
      %s180 = sadd.s32 %s179, 1
      %p183 = scmp.eq.s32.totalorder %s15, 1
      %p184 = scmp.ne.s32.totalorder %s179, %s181
      %p185 = scmp.eq.s32.totalorder %s15, 0
      %p186 = por %p184, %p185
      %p187 = scmp.ne.s32.totalorder %s179, %s181
      %p188 = scmp.eq.s32.totalorder %s20, 1
      %p189 = por %p187, %p188
      %p190 = scmp.ne.s32.totalorder %s181, %s182
      %p191 = scmp.eq.s32.totalorder %s20, 0
      %p192 = por %p190, %p191
      %p193 = scmp.ne.s32.totalorder %s181, %s182
      %p194 = scmp.eq.s32.totalorder %s21, 1
      %p195 = por %p193, %p194
      %p197 = scmp.ne.s32.totalorder %s182, %s196
      %p198 = scmp.eq.s32.totalorder %s21, 0
      %p199 = por %p197, %p198
      %s201 = sadd.s32 %s200, 1
      %p204 = scmp.eq.s32.totalorder %s15, 1
      %p205 = scmp.ne.s32.totalorder %s200, %s202
      %p206 = scmp.eq.s32.totalorder %s15, 0
      %p207 = por %p205, %p206
      %p208 = scmp.ne.s32.totalorder %s200, %s202
      %p209 = scmp.eq.s32.totalorder %s20, 1
      %p210 = por %p208, %p209
      %p211 = scmp.ne.s32.totalorder %s202, %s203
      %p212 = scmp.eq.s32.totalorder %s20, 0
      %p213 = por %p211, %p212
      %p214 = scmp.ne.s32.totalorder %s202, %s203
      %p215 = scmp.eq.s32.totalorder %s21, 1
      %p216 = por %p214, %p215
      %p218 = scmp.ne.s32.totalorder %s203, %s217
      %p219 = scmp.eq.s32.totalorder %s21, 0
      %p220 = por %p218, %p219
      %s221 = ssub.s32 %s15, %s22
      %p222 = scmp.eq.s32.totalorder %s221, 0
      %s224 = sadd.s32 %s223, 1
      %s225 = scalar_select %p222, %s223, %s224
      %p228 = pneg %p222
      %p229 = scmp.eq.s32.totalorder %s15, 1
      %p230 = por %p228, %p229
      %p231 = scmp.ne.s32.totalorder %s223, %s226
      %p232 = scmp.eq.s32.totalorder %s15, 0
      %p233 = por %p231, %p232
      %p234 = scmp.ne.s32.totalorder %s223, %s226
      %p235 = scmp.eq.s32.totalorder %s20, 1
      %p236 = por %p234, %p235
      %p237 = scmp.ne.s32.totalorder %s226, %s227
      %p238 = scmp.eq.s32.totalorder %s20, 0
      %p239 = por %p237, %p238
      %p240 = scmp.ne.s32.totalorder %s226, %s227
      %p241 = scmp.eq.s32.totalorder %s21, 1
      %p242 = por %p240, %p241
      %p244 = scmp.ne.s32.totalorder %s227, %s243
      %p245 = scmp.eq.s32.totalorder %s21, 0
      %p246 = por %p244, %p245
      %p247 = scmp.le.s32.totalorder 1, %s15
      %p248 = scmp.lt.s32.totalorder %s15, 3
      %p249 = pnand %p247, %p248
      %p250 = pneg %p249
      // Predicated region
      $region9: #{double_model_forward.1} parent=5 // pred_check
        _
      $region10: #{double_model_forward.1} parent=5 // pred_check_branch
        %252 = sbr.rel (%p249) target = $region12
      $region11: #{double_model_forward.1} parent=5 // pred_region
        %s253 = ssub.s32 %s15, 1
        // Predicated region
        $region13: #{double_model_forward.1} parent=11 // pred_check
          %p254 = pneg %p192
        $region14: #{double_model_forward.1} parent=11 // pred_check_branch
          %256 = sbr.rel (%p254) target = $region16
        $region15: #{double_model_forward.1} parent=11 // pred_region
          %s258 = ssub.s32 16384, 16384
          %259 = vsyncadd [#allocation5], %s258
          %s260 = sshll.u32 [#allocation4], 4
          %s261 = int_to_ptr.vmem [resolvable:$true] %s260
          %266 = dma.hbm_to_vmem [thread:$0]  %s6, 16384, %s261, [#allocation5], 1024, 1024, 64
        $region16: #{double_model_forward.1} parent=11 // pred_fallthru
          _
        // Predicated region
        $region17: #{double_model_forward.1} parent=11 // pred_check
          %p267 = pneg %p213
        $region18: #{double_model_forward.1} parent=11 // pred_check_branch
          %269 = sbr.rel (%p267) target = $region20
        $region19: #{double_model_forward.1} parent=11 // pred_region
          _
        $region20: #{double_model_forward.1} parent=11 // pred_fallthru
          _
      $region12: #{double_model_forward.1} parent=5 // pred_fallthru
        _
      %p270 = scmp.lt.s32.totalorder %s15, 2
      // Predicated region
      $region21: #{double_model_forward.1} parent=5 // pred_check
        %p271 = pneg %p270
      $region22: #{double_model_forward.1} parent=5 // pred_check_branch
        %273 = sbr.rel (%p271) target = $region24
      $region23: #{double_model_forward.1} parent=5 // pred_region
        // Predicated region
        $region25: #{double_model_forward.1} parent=23 // pred_check
          %p274 = pneg %p35
        $region26: #{double_model_forward.1} parent=23 // pred_check_branch
          %276 = sbr.rel (%p274) target = $region28
        $region27: #{double_model_forward.1} parent=23 // pred_region
          %p277 = scmp.lt.s32.totalorder %s15, 1
          %s278 = scalar_select %p277, %s15, 1
          %s279 = smul.addr %s278, 6
          %s280 = smul.addr %s279, 4
          %s281 = scalar_lea.vmem %s0, %s280
        $region28: #{double_model_forward.1} parent=23 // pred_fallthru
          _
        // Predicated region
        $region29: #{double_model_forward.1} parent=23 // pred_check
          %p282 = pneg %p61
        $region30: #{double_model_forward.1} parent=23 // pred_check_branch
          %284 = sbr.rel (%p282) target = $region32
        $region31: #{double_model_forward.1} parent=23 // pred_region
          %p285 = scmp.lt.s32.totalorder %s15, 1
          %s286 = scalar_select %p285, %s15, 1
          %s287 = scalar_lea.vmem %s1, %s286
        $region32: #{double_model_forward.1} parent=23 // pred_fallthru
          _
        // Predicated region
        $region33: #{double_model_forward.1} parent=23 // pred_check
          %p288 = pneg %p87
        $region34: #{double_model_forward.1} parent=23 // pred_check_branch
          %290 = sbr.rel (%p288) target = $region36
        $region35: #{double_model_forward.1} parent=23 // pred_region
          %p291 = scmp.lt.s32.totalorder %s15, 1
          %s292 = scalar_select %p291, %s15, 1
          %s293 = smul.addr %s292, 4
          %s294 = scalar_lea.vmem %s2, %s293
        $region36: #{double_model_forward.1} parent=23 // pred_fallthru
          _
        // Predicated region
        $region37: #{double_model_forward.1} parent=23 // pred_check
          %p295 = pneg %p113
        $region38: #{double_model_forward.1} parent=23 // pred_check_branch
          %297 = sbr.rel (%p295) target = $region40
        $region39: #{double_model_forward.1} parent=23 // pred_region
          %p298 = scmp.lt.s32.totalorder %s15, 1
          %s299 = scalar_select %p298, %s15, 1
          %s300 = scalar_lea.vmem %s3, %s299
        $region40: #{double_model_forward.1} parent=23 // pred_fallthru
          _
        // Predicated region
        $region41: #{double_model_forward.1} parent=23 // pred_check
          %p301 = pneg %p139
        $region42: #{double_model_forward.1} parent=23 // pred_check_branch
          %303 = sbr.rel (%p301) target = $region44
        $region43: #{double_model_forward.1} parent=23 // pred_region
          %p304 = scmp.lt.s32.totalorder %s15, 1
          %s305 = scalar_select %p304, %s15, 1
          %s306 = smul.addr %s305, 8
          %s307 = scalar_lea.vmem %s4, %s306
        $region44: #{double_model_forward.1} parent=23 // pred_fallthru
          _
        // Predicated region
        $region45: #{double_model_forward.1} parent=23 // pred_check
          %p308 = pneg %p165
        $region46: #{double_model_forward.1} parent=23 // pred_check_branch
          %310 = sbr.rel (%p308) target = $region48
        $region47: #{double_model_forward.1} parent=23 // pred_region
          %p311 = scmp.lt.s32.totalorder %s15, 1
          %s312 = scalar_select %p311, %s15, 1
          %s313 = smul.addr %s312, 8
          %s314 = scalar_lea.vmem %s5, %s313
        $region48: #{double_model_forward.1} parent=23 // pred_fallthru
          _
      $region24: #{double_model_forward.1} parent=5 // pred_fallthru
        _
      %p315 = scmp.le.s32.totalorder 1, %s15
      %p316 = scmp.lt.s32.totalorder %s15, 3
      %p317 = pnand %p315, %p316
      %p318 = pneg %p317
      // Predicated region
      $region49: #{double_model_forward.1} parent=5 // pred_check
        _
      $region50: #{double_model_forward.1} parent=5 // pred_check_branch
        %320 = sbr.rel (%p317) target = $region52
      $region51: #{double_model_forward.1} parent=5 // pred_region
        %s321 = ssub.s32 %s15, 1
        // Predicated region
        $region53: #{double_model_forward.1} parent=51 // pred_check
          %p322 = pneg %p192
        $region54: #{double_model_forward.1} parent=51 // pred_check_branch
          %324 = sbr.rel (%p322) target = $region56
        $region55: #{double_model_forward.1} parent=51 // pred_region
          %325 = dma.done [#allocation5], 16384
        $region56: #{double_model_forward.1} parent=51 // pred_fallthru
          _
        %p326 = scmp.lt.s32.totalorder %s20, 1
        %s327 = scalar_select %p326, %s20, 1
        %s328 = smul.addr %s327, 6
        %s329 = smul.addr %s328, 4
        %s330 = scalar_lea.vmem %s0, %s329
        %p331 = pneg %p41
        %p332 = pneg %p38
        %p333 = scmp.lt.s32.totalorder %s20, 1
        %s334 = scalar_select %p333, %s20, 1
        %s335 = scalar_lea.vmem %s1, %s334
        %p336 = pneg %p67
        %p337 = pneg %p64
        %p338 = scmp.lt.s32.totalorder %s20, 1
        %s339 = scalar_select %p338, %s20, 1
        %s340 = smul.addr %s339, 4
        %s341 = scalar_lea.vmem %s2, %s340
        %p342 = pneg %p93
        %p343 = pneg %p90
        %p344 = scmp.lt.s32.totalorder %s20, 1
        %s345 = scalar_select %p344, %s20, 1
        %s346 = scalar_lea.vmem %s3, %s345
        %p347 = pneg %p119
        %p348 = pneg %p116
        %p349 = scmp.lt.s32.totalorder %s20, 1
        %s350 = scalar_select %p349, %s20, 1
        %s351 = smul.addr %s350, 8
        %s352 = scalar_lea.vmem %s4, %s351
        %p353 = pneg %p145
        %p354 = pneg %p142
        %p355 = scmp.lt.s32.totalorder %s20, 1
        %s356 = scalar_select %p355, %s20, 1
        %s357 = smul.addr %s356, 8
        %s358 = scalar_lea.vmem %s5, %s357
        %p359 = pneg %p171
        %p360 = pneg %p168
        %p361 = pneg %p192
        %p362 = pneg %p189
        %p363 = pneg %p213
        %p364 = pneg %p210
        %p365 = pneg %p239
        %p366 = pneg %p236
        %p367 = scmp.lt.s32.totalorder %s20, 1
        %s368 = scalar_select %p367, %s20, 1
        %s369 = scalar_lea.vmem %s8, %s368
        %p370 = scmp.lt.s32.totalorder %s20, 1
        %s371 = scalar_select %p370, %s20, 1
        %s372 = smul.addr %s371, 6
        %s373 = smul.addr %s372, 4
        %s374 = scalar_lea.vmem %s0, %s373
        %p375 = scmp.lt.s32.totalorder %s20, 1
        %s376 = scalar_select %p375, %s20, 1
        %s377 = scalar_lea.vmem %s1, %s376
        %p378 = scmp.lt.s32.totalorder %s20, 1
        %s379 = scalar_select %p378, %s20, 1
        %s380 = smul.addr %s379, 4
        %s381 = scalar_lea.vmem %s2, %s380
        %p382 = scmp.lt.s32.totalorder %s20, 1
        %s383 = scalar_select %p382, %s20, 1
        %s384 = scalar_lea.vmem %s3, %s383
        %p385 = scmp.lt.s32.totalorder %s20, 1
        %s386 = scalar_select %p385, %s20, 1
        %s387 = smul.addr %s386, 8
        %s388 = scalar_lea.vmem %s4, %s387
        %p389 = scmp.lt.s32.totalorder %s20, 1
        %s390 = scalar_select %p389, %s20, 1
        %s391 = smul.addr %s390, 8
        %s392 = scalar_lea.vmem %s5, %s391
        %p393 = scmp.lt.s32.totalorder %s20, 1
        %s394 = scalar_select %p393, %s20, 1
        %s395 = scalar_lea.vmem %s8, %s394
        %v397 = vld [vmem:[#allocation4] sm:$0xf]
        %v398 = vld [vmem:[#allocation4 + $0x40] sm:$0xf]
        %v399 = vld [vmem:[#allocation4 + $0x80] sm:$0xf]
        %v400 = vld [vmem:[#allocation4 + $0xc0] sm:$0xf]
        %v401 = vld [vmem:[#allocation4 + $0x100] sm:$0xf]
        %v402 = vld [vmem:[#allocation4 + $0x140] sm:$0xf]
        %v403 = vld [vmem:[#allocation4 + $0x180] sm:$0xf]
        %v404 = vld [vmem:[#allocation4 + $0x1c0] sm:$0xf]
        %v405 = vld [vmem:[#allocation4 + $0x200] sm:$0xf]
        %v406 = vld [vmem:[#allocation4 + $0x240] sm:$0xf]
        %v407 = vld [vmem:[#allocation4 + $0x280] sm:$0xf]
        %v408 = vld [vmem:[#allocation4 + $0x2c0] sm:$0xf]
        %v409 = vld [vmem:[#allocation4 + $0x300] sm:$0xf]
        %v410 = vld [vmem:[#allocation4 + $0x340] sm:$0xf]
        %v411 = vld [vmem:[#allocation4 + $0x380] sm:$0xf]
        %v412 = vld [vmem:[#allocation4 + $0x3c0] sm:$0xf]
        %v413 = vld [vmem:[#allocation4 + $0x4] sm:$0xff]
        %v414 = vld [vmem:[#allocation4 + $0x44] sm:$0xff]
        %v415 = vld [vmem:[#allocation4 + $0x84] sm:$0xff]
        %v416 = vld [vmem:[#allocation4 + $0xc4] sm:$0xff]
        %v417 = vld [vmem:[#allocation4 + $0x104] sm:$0xff]
        %v418 = vld [vmem:[#allocation4 + $0x144] sm:$0xff]
        %v419 = vld [vmem:[#allocation4 + $0x184] sm:$0xff]
        %v420 = vld [vmem:[#allocation4 + $0x1c4] sm:$0xff]
        %v421 = vld [vmem:[#allocation4 + $0x204] sm:$0xff]
        %v422 = vld [vmem:[#allocation4 + $0x244] sm:$0xff]
        %v423 = vld [vmem:[#allocation4 + $0x284] sm:$0xff]
        %v424 = vld [vmem:[#allocation4 + $0x2c4] sm:$0xff]
        %v425 = vld [vmem:[#allocation4 + $0x304] sm:$0xff]
        %v426 = vld [vmem:[#allocation4 + $0x344] sm:$0xff]
        %v427 = vld [vmem:[#allocation4 + $0x384] sm:$0xff]
        %v428 = vld [vmem:[#allocation4 + $0x3c4] sm:$0xff]
        %v429 = vld [vmem:[#allocation4 + $0xc] sm:$0xf]
        %v430 = vld [vmem:[#allocation4 + $0x4c] sm:$0xf]
        %v431 = vld [vmem:[#allocation4 + $0x8c] sm:$0xf]
        %v432 = vld [vmem:[#allocation4 + $0xcc] sm:$0xf]
        %v433 = vld [vmem:[#allocation4 + $0x10c] sm:$0xf]
        %v434 = vld [vmem:[#allocation4 + $0x14c] sm:$0xf]
        %v435 = vld [vmem:[#allocation4 + $0x18c] sm:$0xf]
        %v436 = vld [vmem:[#allocation4 + $0x1cc] sm:$0xf]
        %v437 = vld [vmem:[#allocation4 + $0x20c] sm:$0xf]
        %v438 = vld [vmem:[#allocation4 + $0x24c] sm:$0xf]
        %v439 = vld [vmem:[#allocation4 + $0x28c] sm:$0xf]
        %v440 = vld [vmem:[#allocation4 + $0x2cc] sm:$0xf]
        %v441 = vld [vmem:[#allocation4 + $0x30c] sm:$0xf]
        %v442 = vld [vmem:[#allocation4 + $0x34c] sm:$0xf]
        %v443 = vld [vmem:[#allocation4 + $0x38c] sm:$0xf]
        %v444 = vld [vmem:[#allocation4 + $0x3cc] sm:$0xf]
        %v445 = vld [vmem:[#allocation4 + $0x10] sm:$0xff]
        %v446 = vld [vmem:[#allocation4 + $0x50] sm:$0xff]
        %v447 = vld [vmem:[#allocation4 + $0x90] sm:$0xff]
        %v448 = vld [vmem:[#allocation4 + $0xd0] sm:$0xff]
        %v449 = vld [vmem:[#allocation4 + $0x110] sm:$0xff]
        %v450 = vld [vmem:[#allocation4 + $0x150] sm:$0xff]
        %v451 = vld [vmem:[#allocation4 + $0x190] sm:$0xff]
        %v452 = vld [vmem:[#allocation4 + $0x1d0] sm:$0xff]
        %v453 = vld [vmem:[#allocation4 + $0x210] sm:$0xff]
        %v454 = vld [vmem:[#allocation4 + $0x250] sm:$0xff]
        %v455 = vld [vmem:[#allocation4 + $0x290] sm:$0xff]
        %v456 = vld [vmem:[#allocation4 + $0x2d0] sm:$0xff]
        %v457 = vld [vmem:[#allocation4 + $0x310] sm:$0xff]
        %v458 = vld [vmem:[#allocation4 + $0x350] sm:$0xff]
        %v459 = vld [vmem:[#allocation4 + $0x390] sm:$0xff]
        %v460 = vld [vmem:[#allocation4 + $0x3d0] sm:$0xff]
        %v461 = vld [vmem:[#allocation4 + $0x18] sm:$0xf]
        %v462 = vld [vmem:[#allocation4 + $0x58] sm:$0xf]
        %v463 = vld [vmem:[#allocation4 + $0x98] sm:$0xf]
        %v464 = vld [vmem:[#allocation4 + $0xd8] sm:$0xf]
        %v465 = vld [vmem:[#allocation4 + $0x118] sm:$0xf]
        %v466 = vld [vmem:[#allocation4 + $0x158] sm:$0xf]
        %v467 = vld [vmem:[#allocation4 + $0x198] sm:$0xf]
        %v468 = vld [vmem:[#allocation4 + $0x1d8] sm:$0xf]
        %v469 = vld [vmem:[#allocation4 + $0x218] sm:$0xf]
        %v470 = vld [vmem:[#allocation4 + $0x258] sm:$0xf]
        %v471 = vld [vmem:[#allocation4 + $0x298] sm:$0xf]
        %v472 = vld [vmem:[#allocation4 + $0x2d8] sm:$0xf]
        %v473 = vld [vmem:[#allocation4 + $0x318] sm:$0xf]
        %v474 = vld [vmem:[#allocation4 + $0x358] sm:$0xf]
        %v475 = vld [vmem:[#allocation4 + $0x398] sm:$0xf]
        %v476 = vld [vmem:[#allocation4 + $0x3d8] sm:$0xf]
        %v477 = vld [vmem:[#allocation4 + $0x1c] sm:$0xff]
        %v478 = vld [vmem:[#allocation4 + $0x5c] sm:$0xff]
        %v479 = vld [vmem:[#allocation4 + $0x9c] sm:$0xff]
        %v480 = vld [vmem:[#allocation4 + $0xdc] sm:$0xff]
        %v481 = vld [vmem:[#allocation4 + $0x11c] sm:$0xff]
        %v482 = vld [vmem:[#allocation4 + $0x15c] sm:$0xff]
        %v483 = vld [vmem:[#allocation4 + $0x19c] sm:$0xff]
        %v484 = vld [vmem:[#allocation4 + $0x1dc] sm:$0xff]
        %v485 = vld [vmem:[#allocation4 + $0x21c] sm:$0xff]
        %v486 = vld [vmem:[#allocation4 + $0x25c] sm:$0xff]
        %v487 = vld [vmem:[#allocation4 + $0x29c] sm:$0xff]
        %v488 = vld [vmem:[#allocation4 + $0x2dc] sm:$0xff]
        %v489 = vld [vmem:[#allocation4 + $0x31c] sm:$0xff]
        %v490 = vld [vmem:[#allocation4 + $0x35c] sm:$0xff]
        %v491 = vld [vmem:[#allocation4 + $0x39c] sm:$0xff]
        %v492 = vld [vmem:[#allocation4 + $0x3dc] sm:$0xff]
        %v493 = vld [vmem:[#allocation4 + $0x24] sm:$0xf]
        %v494 = vld [vmem:[#allocation4 + $0x64] sm:$0xf]
        %v495 = vld [vmem:[#allocation4 + $0xa4] sm:$0xf]
        %v496 = vld [vmem:[#allocation4 + $0xe4] sm:$0xf]
        %v497 = vld [vmem:[#allocation4 + $0x124] sm:$0xf]
        %v498 = vld [vmem:[#allocation4 + $0x164] sm:$0xf]
        %v499 = vld [vmem:[#allocation4 + $0x1a4] sm:$0xf]
        %v500 = vld [vmem:[#allocation4 + $0x1e4] sm:$0xf]
        %v501 = vld [vmem:[#allocation4 + $0x224] sm:$0xf]
        %v502 = vld [vmem:[#allocation4 + $0x264] sm:$0xf]
        %v503 = vld [vmem:[#allocation4 + $0x2a4] sm:$0xf]
        %v504 = vld [vmem:[#allocation4 + $0x2e4] sm:$0xf]
        %v505 = vld [vmem:[#allocation4 + $0x324] sm:$0xf]
        %v506 = vld [vmem:[#allocation4 + $0x364] sm:$0xf]
        %v507 = vld [vmem:[#allocation4 + $0x3a4] sm:$0xf]
        %v508 = vld [vmem:[#allocation4 + $0x3e4] sm:$0xf]
        %v509 = vld [vmem:[#allocation4 + $0x28] sm:$0xff]
        %v510 = vld [vmem:[#allocation4 + $0x68] sm:$0xff]
        %v511 = vld [vmem:[#allocation4 + $0xa8] sm:$0xff]
        %v512 = vld [vmem:[#allocation4 + $0xe8] sm:$0xff]
        %v513 = vld [vmem:[#allocation4 + $0x128] sm:$0xff]
        %v514 = vld [vmem:[#allocation4 + $0x168] sm:$0xff]
        %v515 = vld [vmem:[#allocation4 + $0x1a8] sm:$0xff]
        %v516 = vld [vmem:[#allocation4 + $0x1e8] sm:$0xff]
        %v517 = vld [vmem:[#allocation4 + $0x228] sm:$0xff]
        %v518 = vld [vmem:[#allocation4 + $0x268] sm:$0xff]
        %v519 = vld [vmem:[#allocation4 + $0x2a8] sm:$0xff]
        %v520 = vld [vmem:[#allocation4 + $0x2e8] sm:$0xff]
        %v521 = vld [vmem:[#allocation4 + $0x328] sm:$0xff]
        %v522 = vld [vmem:[#allocation4 + $0x368] sm:$0xff]
        %v523 = vld [vmem:[#allocation4 + $0x3a8] sm:$0xff]
        %v524 = vld [vmem:[#allocation4 + $0x3e8] sm:$0xff]
        %v525 = vld [vmem:[#allocation4 + $0x30] sm:$0xf]
        %v526 = vld [vmem:[#allocation4 + $0x70] sm:$0xf]
        %v527 = vld [vmem:[#allocation4 + $0xb0] sm:$0xf]
        %v528 = vld [vmem:[#allocation4 + $0xf0] sm:$0xf]
        %v529 = vld [vmem:[#allocation4 + $0x130] sm:$0xf]
        %v530 = vld [vmem:[#allocation4 + $0x170] sm:$0xf]
        %v531 = vld [vmem:[#allocation4 + $0x1b0] sm:$0xf]
        %v532 = vld [vmem:[#allocation4 + $0x1f0] sm:$0xf]
        %v533 = vld [vmem:[#allocation4 + $0x230] sm:$0xf]
        %v534 = vld [vmem:[#allocation4 + $0x270] sm:$0xf]
        %v535 = vld [vmem:[#allocation4 + $0x2b0] sm:$0xf]
        %v536 = vld [vmem:[#allocation4 + $0x2f0] sm:$0xf]
        %v537 = vld [vmem:[#allocation4 + $0x330] sm:$0xf]
        %v538 = vld [vmem:[#allocation4 + $0x370] sm:$0xf]
        %v539 = vld [vmem:[#allocation4 + $0x3b0] sm:$0xf]
        %v540 = vld [vmem:[#allocation4 + $0x3f0] sm:$0xf]
        %v541 = vld [vmem:[#allocation4 + $0x34] sm:$0xff]
        %v542 = vld [vmem:[#allocation4 + $0x74] sm:$0xff]
        %v543 = vld [vmem:[#allocation4 + $0xb4] sm:$0xff]
        %v544 = vld [vmem:[#allocation4 + $0xf4] sm:$0xff]
        %v545 = vld [vmem:[#allocation4 + $0x134] sm:$0xff]
        %v546 = vld [vmem:[#allocation4 + $0x174] sm:$0xff]
        %v547 = vld [vmem:[#allocation4 + $0x1b4] sm:$0xff]
        %v548 = vld [vmem:[#allocation4 + $0x1f4] sm:$0xff]
        %v549 = vld [vmem:[#allocation4 + $0x234] sm:$0xff]
        %v550 = vld [vmem:[#allocation4 + $0x274] sm:$0xff]
        %v551 = vld [vmem:[#allocation4 + $0x2b4] sm:$0xff]
        %v552 = vld [vmem:[#allocation4 + $0x2f4] sm:$0xff]
        %v553 = vld [vmem:[#allocation4 + $0x334] sm:$0xff]
        %v554 = vld [vmem:[#allocation4 + $0x374] sm:$0xff]
        %v555 = vld [vmem:[#allocation4 + $0x3b4] sm:$0xff]
        %v556 = vld [vmem:[#allocation4 + $0x3f4] sm:$0xff]
        %v557 = vld [vmem:[#allocation4 + $0x3c] sm:$0xf]
        %v558 = vld [vmem:[#allocation4 + $0x7c] sm:$0xf]
        %v559 = vld [vmem:[#allocation4 + $0xbc] sm:$0xf]
        %v560 = vld [vmem:[#allocation4 + $0xfc] sm:$0xf]
        %v561 = vld [vmem:[#allocation4 + $0x13c] sm:$0xf]
        %v562 = vld [vmem:[#allocation4 + $0x17c] sm:$0xf]
        %v563 = vld [vmem:[#allocation4 + $0x1bc] sm:$0xf]
        %v564 = vld [vmem:[#allocation4 + $0x1fc] sm:$0xf]
        %v565 = vld [vmem:[#allocation4 + $0x23c] sm:$0xf]
        %v566 = vld [vmem:[#allocation4 + $0x27c] sm:$0xf]
        %v567 = vld [vmem:[#allocation4 + $0x2bc] sm:$0xf]
        %v568 = vld [vmem:[#allocation4 + $0x2fc] sm:$0xf]
        %v569 = vld [vmem:[#allocation4 + $0x33c] sm:$0xf]
        %v570 = vld [vmem:[#allocation4 + $0x37c] sm:$0xf]
        %v571 = vld [vmem:[#allocation4 + $0x3bc] sm:$0xf]
        %v572 = vld [vmem:[#allocation4 + $0x3fc] sm:$0xf]
        %v573 = vld [vmem:[%s7] sm:$0xf]
        %v574 = vld [vmem:[%s7 + $0x4] sm:$0xf]
        %v575 = vld [vmem:[%s7 + $0x8] sm:$0xf]
        %v576 = vld [vmem:[%s7 + $0xc] sm:$0xf]
        %v577 = vld [vmem:[%s7 + $0x10] sm:$0xf]
        %v578 = vld [vmem:[%s7 + $0x14] sm:$0xf]
        %v579 = vld [vmem:[%s7 + $0x18] sm:$0xf]
        %v580 = vld [vmem:[%s7 + $0x1c] sm:$0xf]
        %v581 = vld [vmem:[%s7 + $0x20] sm:$0xf]
        %v582 = vld [vmem:[%s7 + $0x24] sm:$0xf]
        %v583 = vld [vmem:[%s7 + $0x28] sm:$0xf]
        %v584 = vld [vmem:[%s7 + $0x2c] sm:$0xf]
        %v585 = vld [vmem:[%s7 + $0x30] sm:$0xf]
        %v586 = vld [vmem:[%s7 + $0x34] sm:$0xf]
        %v587 = vld [vmem:[%s7 + $0x38] sm:$0xf]
        %v588 = vld [vmem:[%s7 + $0x3c] sm:$0xf]
        %v589 = vld [vmem:[%s7 + $0x40] sm:$0xf]
        %v590 = vld [vmem:[%s7 + $0x44] sm:$0xf]
        %v591 = vld [vmem:[%s7 + $0x48] sm:$0xf]
        %v592 = vld [vmem:[%s7 + $0x4c] sm:$0xf]
        %v593 = vld [vmem:[%s7 + $0x50] sm:$0xf]
        %v594 = vld [vmem:[%s7 + $0x54] sm:$0xf]
        %v595 = vld [vmem:[%s7 + $0x58] sm:$0xf]
        %v596 = vld [vmem:[%s7 + $0x5c] sm:$0xf]
        %v597 = vld [vmem:[%s7 + $0x60] sm:$0xf]
        %v598 = vld [vmem:[%s7 + $0x64] sm:$0xf]
        %v599 = vld [vmem:[%s7 + $0x68] sm:$0xf]
        %v600 = vld [vmem:[%s7 + $0x6c] sm:$0xf]
        %v601 = vld [vmem:[%s7 + $0x70] sm:$0xf]
        %v602 = vld [vmem:[%s7 + $0x74] sm:$0xf]
        %v603 = vld [vmem:[%s7 + $0x78] sm:$0xf]
        %v604 = vld [vmem:[%s7 + $0x7c] sm:$0xf]
        %v605 = vld [vmem:[%s7 + $0x80] sm:$0xf]
        %v606 = vld [vmem:[%s7 + $0x84] sm:$0xf]
        %v607 = vld [vmem:[%s7 + $0x88] sm:$0xf]
        %v608 = vld [vmem:[%s7 + $0x8c] sm:$0xf]
        %v609 = vld [vmem:[%s7 + $0x90] sm:$0xf]
        %v610 = vld [vmem:[%s7 + $0x94] sm:$0xf]
        %v611 = vld [vmem:[%s7 + $0x98] sm:$0xf]
        %v612 = vld [vmem:[%s7 + $0x9c] sm:$0xf]
        %v613 = vld [vmem:[%s7 + $0xa0] sm:$0xf]
        %v614 = vld [vmem:[%s7 + $0xa4] sm:$0xf]
        %v615 = vld [vmem:[%s7 + $0xa8] sm:$0xf]
        %v616 = vld [vmem:[%s7 + $0xac] sm:$0xf]
        %v617 = vld [vmem:[%s7 + $0xb0] sm:$0xf]
        %v618 = vld [vmem:[%s7 + $0xb4] sm:$0xf]
        %v619 = vld [vmem:[%s7 + $0xb8] sm:$0xf]
        %v620 = vld [vmem:[%s7 + $0xbc] sm:$0xf]
        %v621 = vld [vmem:[%s7 + $0xc0] sm:$0xf]
        %v622 = vld [vmem:[%s7 + $0xc4] sm:$0xf]
        %v623 = vld [vmem:[%s7 + $0xc8] sm:$0xf]
        %v624 = vld [vmem:[%s7 + $0xcc] sm:$0xf]
        %v625 = vld [vmem:[%s7 + $0xd0] sm:$0xf]
        %v626 = vld [vmem:[%s7 + $0xd4] sm:$0xf]
        %v627 = vld [vmem:[%s7 + $0xd8] sm:$0xf]
        %v628 = vld [vmem:[%s7 + $0xdc] sm:$0xf]
        %v629 = vld [vmem:[%s7 + $0xe0] sm:$0xf]
        %v630 = vld [vmem:[%s7 + $0xe4] sm:$0xf]
        %v631 = vld [vmem:[%s7 + $0xe8] sm:$0xf]
        %v632 = vld [vmem:[%s7 + $0xec] sm:$0xf]
        %v633 = vld [vmem:[%s7 + $0xf0] sm:$0xf]
        %v634 = vld [vmem:[%s7 + $0xf4] sm:$0xf]
        %v635 = vld [vmem:[%s7 + $0xf8] sm:$0xf]
        %v636 = vld [vmem:[%s7 + $0xfc] sm:$0xf]
        %v637 = vld [vmem:[%s7 + $0x100] sm:$0xf]
        %v638 = vld [vmem:[%s7 + $0x104] sm:$0xf]
        %v639 = vld [vmem:[%s7 + $0x108] sm:$0xf]
        %v640 = vld [vmem:[%s7 + $0x10c] sm:$0xf]
        %v641 = vld [vmem:[%s7 + $0x110] sm:$0xf]
        %v642 = vld [vmem:[%s7 + $0x114] sm:$0xf]
        %v643 = vld [vmem:[%s7 + $0x118] sm:$0xf]
        %v644 = vld [vmem:[%s7 + $0x11c] sm:$0xf]
        %v645 = vld [vmem:[%s7 + $0x120] sm:$0xf]
        %v646 = vld [vmem:[%s7 + $0x124] sm:$0xf]
        %v647 = vld [vmem:[%s7 + $0x128] sm:$0xf]
        %v648 = vld [vmem:[%s7 + $0x12c] sm:$0xf]
        %v649 = vld [vmem:[%s7 + $0x130] sm:$0xf]
        %v650 = vld [vmem:[%s7 + $0x134] sm:$0xf]
        %v651 = vld [vmem:[%s7 + $0x138] sm:$0xf]
        %v652 = vld [vmem:[%s7 + $0x13c] sm:$0xf]
        %v653 = vld [vmem:[%s7 + $0x140] sm:$0xf]
        %v654 = vld [vmem:[%s7 + $0x144] sm:$0xf]
        %v655 = vld [vmem:[%s7 + $0x148] sm:$0xf]
        %v656 = vld [vmem:[%s7 + $0x14c] sm:$0xf]
        %v657 = vld [vmem:[%s7 + $0x150] sm:$0xf]
        %v658 = vld [vmem:[%s7 + $0x154] sm:$0xf]
        %v659 = vld [vmem:[%s7 + $0x158] sm:$0xf]
        %v660 = vld [vmem:[%s7 + $0x15c] sm:$0xf]
        %v661 = vld [vmem:[%s7 + $0x160] sm:$0xf]
        %v662 = vld [vmem:[%s7 + $0x164] sm:$0xf]
        %v663 = vld [vmem:[%s7 + $0x168] sm:$0xf]
        %v664 = vld [vmem:[%s7 + $0x16c] sm:$0xf]
        %v665 = vld [vmem:[%s7 + $0x170] sm:$0xf]
        %v666 = vld [vmem:[%s7 + $0x174] sm:$0xf]
        %v667 = vld [vmem:[%s7 + $0x178] sm:$0xf]
        %v668 = vld [vmem:[%s7 + $0x17c] sm:$0xf]
        %v669 = vld [vmem:[%s374] sm:$0xf]
        %v670 = vld [vmem:[%s374 + $0x4] sm:$0xf]
        %v671 = vld [vmem:[%s374 + $0x8] sm:$0xf]
        %v672 = vld [vmem:[%s374 + $0xc] sm:$0xf]
        %v673 = vld [vmem:[%s374 + $0x10] sm:$0xf]
        %v674 = vld [vmem:[%s374 + $0x14] sm:$0xf]
        %v675 = vld [vmem:[%s377] sm:$0x1]
        %v676 = vsub.f32 1.0, %v675
        %v677 = vmul.f32 %v676, -1e+09
        %v680 = vunpack.c.l.b16 %v669
        %v681 = vunpack.c.l.b16 %v670
        %v682 = vpack.c.b16 %v681, %v680
        %v700 = vunpack.c.l.b16 %v413
        %v701 = vunpack.c.h.b16 %v413
        %v702 = vunpack.c.l.b16 %v414
        %v703 = vunpack.c.h.b16 %v414
        %v704 = vunpack.c.l.b16 %v415
        %v705 = vunpack.c.h.b16 %v415
        %v706 = vunpack.c.l.b16 %v416
        %v707 = vunpack.c.h.b16 %v416
        %v708 = vunpack.c.l.b16 %v417
        %v709 = vunpack.c.h.b16 %v417
        %v710 = vunpack.c.l.b16 %v418
        %v711 = vunpack.c.h.b16 %v418
        %v712 = vunpack.c.l.b16 %v419
        %v713 = vunpack.c.h.b16 %v419
        %v714 = vunpack.c.l.b16 %v420
        %v715 = vunpack.c.h.b16 %v420
        %v716 = vunpack.c.l.b16 %v421
        %v717 = vunpack.c.h.b16 %v421
        %v718 = vunpack.c.l.b16 %v422
        %v719 = vunpack.c.h.b16 %v422
        %v720 = vunpack.c.l.b16 %v423
        %v721 = vunpack.c.h.b16 %v423
        %v722 = vunpack.c.l.b16 %v424
        %v723 = vunpack.c.h.b16 %v424
        %v724 = vunpack.c.l.b16 %v425
        %v725 = vunpack.c.h.b16 %v425
        %v726 = vunpack.c.l.b16 %v426
        %v727 = vunpack.c.h.b16 %v426
        %v728 = vunpack.c.l.b16 %v427
        %v729 = vunpack.c.h.b16 %v427
        %v730 = vunpack.c.l.b16 %v428
        %v731 = vunpack.c.h.b16 %v428
        %v732 = vpack.c.b16 %v702, %v700
        %v733 = vpack.c.b16 %v703, %v701
        %v734 = vpack.c.b16 %v706, %v704
        %v735 = vpack.c.b16 %v707, %v705
        %v736 = vpack.c.b16 %v710, %v708
        %v737 = vpack.c.b16 %v711, %v709
        %v738 = vpack.c.b16 %v714, %v712
        %v739 = vpack.c.b16 %v715, %v713
        %v740 = vpack.c.b16 %v718, %v716
        %v741 = vpack.c.b16 %v719, %v717
        %v742 = vpack.c.b16 %v722, %v720
        %v743 = vpack.c.b16 %v723, %v721
        %v744 = vpack.c.b16 %v726, %v724
        %v745 = vpack.c.b16 %v727, %v725
        %v746 = vpack.c.b16 %v730, %v728
        %v747 = vpack.c.b16 %v731, %v729
        %764 = vmatprep.subr.bf16.mxu0 %v747
        %765 = vmatpush1.bf16.msra.mxu0 %v746
        %766 = vmatprep.subr.bf16.mxu0 %v745
        %767 = vmatpush1.bf16.msra.mxu0 %v744
        %768 = vmatprep.subr.bf16.mxu0 %v743
        %769 = vmatpush1.bf16.msra.mxu0 %v742
        %770 = vmatprep.subr.bf16.mxu0 %v741
        %771 = vmatpush1.bf16.msra.mxu0 %v740
        %772 = vmatprep.subr.bf16.mxu0 %v739
        %773 = vmatpush1.bf16.msra.mxu0 %v738
        %774 = vmatprep.subr.bf16.mxu0 %v737
        %775 = vmatpush1.bf16.msra.mxu0 %v736
        %776 = vmatprep.subr.bf16.mxu0 %v735
        %777 = vmatpush1.bf16.msra.mxu0 %v734
        %778 = vmatprep.subr.bf16.mxu0 %v733
        %779 = vmatpush1.bf16.msra.mxu0 %v732
        %780 = vmatprep.subr.bf16.mxu0 0
        %781 = vmatpush2.bf16.msra.mxu0 0
        %782 = vmatprep.subr.bf16.mxu0 0
        %783 = vmatpush2.bf16.msra.mxu0 0
        %784 = vmatprep.subr.bf16.mxu0 0
        %785 = vmatpush2.bf16.msra.mxu0 0
        %786 = vmatprep.subr.bf16.mxu0 0
        %787 = vmatpush2.bf16.msra.mxu0 0
        %788 = vmatprep.subr.bf16.mxu0 0
        %789 = vmatpush2.bf16.msra.mxu0 0
        %790 = vmatprep.subr.bf16.mxu0 0
        %791 = vmatpush2.bf16.msra.mxu0 0
        %792 = vmatprep.subr.bf16.mxu0 0
        %793 = vmatpush2.bf16.msra.mxu0 0
        %794 = vmatprep.subr.bf16.mxu0 0
        %795 = vmatpush2.bf16.msra.mxu0 0
        %796 = vmatprep.mubr.bf16.mxu0 0
        %797 = vmatmul.mubr.bf16.gmra.mxu0 %v682
        %v798 = vpop.f32.mrf.mxu0
        %v799 = vadd.f32 0.0, %v798
        %v800 = vpop.f32.mrf.mxu0
        %v801 = vadd.f32 0.0, %v800
        %v802 = vpop.f32.mrf.mxu0
        %v803 = vadd.f32 0.0, %v802
        %v804 = vpop.f32.mrf.mxu0
        %v805 = vadd.f32 0.0, %v804
        %806 = vdwg.mxu0
        %v807 = vpack.c.bf16 %v803, %v799
        %v808 = vpack.c.bf16 %v805, %v801
        %v811 = vunpack.c.l.b16 %v807
        %v812 = vunpack.c.l.b16 %v808
        %v813 = vunpack.c.h.b16 %v807
        %v814 = vunpack.c.h.b16 %v808
        %v815 = vpack.c.b16 %v812, %v811
        %v816 = vpack.c.b16 %v814, %v813
        %819 = vst [vmem:[#allocation2] sm:$0xff] %v815
        %820 = vst [vmem:[#allocation2 + $0x8] sm:$0xff] %v816
        %v837 = vunpack.c.l.b16 %v397
        %v838 = vunpack.c.l.b16 %v398
        %v839 = vunpack.c.l.b16 %v399
        %v840 = vunpack.c.l.b16 %v400
        %v841 = vunpack.c.l.b16 %v401
        %v842 = vunpack.c.l.b16 %v402
        %v843 = vunpack.c.l.b16 %v403
        %v844 = vunpack.c.l.b16 %v404
        %v845 = vunpack.c.l.b16 %v405
        %v846 = vunpack.c.l.b16 %v406
        %v847 = vunpack.c.l.b16 %v407
        %v848 = vunpack.c.l.b16 %v408
        %v849 = vunpack.c.l.b16 %v409
        %v850 = vunpack.c.l.b16 %v410
        %v851 = vunpack.c.l.b16 %v411
        %v852 = vunpack.c.l.b16 %v412
        %v853 = vpack.c.b16 %v838, %v837
        %v854 = vpack.c.b16 %v840, %v839
        %v855 = vpack.c.b16 %v842, %v841
        %v856 = vpack.c.b16 %v844, %v843
        %v857 = vpack.c.b16 %v846, %v845
        %v858 = vpack.c.b16 %v848, %v847
        %v859 = vpack.c.b16 %v850, %v849
        %v860 = vpack.c.b16 %v852, %v851
        %869 = vmatprep.subr.bf16.mxu0 0
        %870 = vmatpush1.bf16.msra.mxu0 %v860
        %871 = vmatprep.subr.bf16.mxu0 0
        %872 = vmatpush1.bf16.msra.mxu0 %v859
        %873 = vmatprep.subr.bf16.mxu0 0
        %874 = vmatpush1.bf16.msra.mxu0 %v858
        %875 = vmatprep.subr.bf16.mxu0 0
        %876 = vmatpush1.bf16.msra.mxu0 %v857
        %877 = vmatprep.subr.bf16.mxu0 0
        %878 = vmatpush1.bf16.msra.mxu0 %v856
        %879 = vmatprep.subr.bf16.mxu0 0
        %880 = vmatpush1.bf16.msra.mxu0 %v855
        %881 = vmatprep.subr.bf16.mxu0 0
        %882 = vmatpush1.bf16.msra.mxu0 %v854
        %883 = vmatprep.subr.bf16.mxu0 0
        %884 = vmatpush1.bf16.msra.mxu0 %v853
        %885 = vmatprep.subr.bf16.mxu0 0
        %886 = vmatpush2.bf16.msra.mxu0 0
        %887 = vmatprep.subr.bf16.mxu0 0
        %888 = vmatpush2.bf16.msra.mxu0 0
        %889 = vmatprep.subr.bf16.mxu0 0
        %890 = vmatpush2.bf16.msra.mxu0 0
        %891 = vmatprep.subr.bf16.mxu0 0
        %892 = vmatpush2.bf16.msra.mxu0 0
        %893 = vmatprep.subr.bf16.mxu0 0
        %894 = vmatpush2.bf16.msra.mxu0 0
        %895 = vmatprep.subr.bf16.mxu0 0
        %896 = vmatpush2.bf16.msra.mxu0 0
        %897 = vmatprep.subr.bf16.mxu0 0
        %898 = vmatpush2.bf16.msra.mxu0 0
        %899 = vmatprep.subr.bf16.mxu0 0
        %900 = vmatpush2.bf16.msra.mxu0 0
        %901 = vmatprep.mubr.bf16.mxu0 0
        %902 = vmatmul.mubr.bf16.gmra.mxu0 %v682
        %v903 = vpop.f32.mrf.mxu0
        %v904 = vadd.f32 0.0, %v903
        %v905 = vpop.f32.mrf.mxu0
        %v906 = vpop.f32.mrf.mxu0
        %v907 = vadd.f32 0.0, %v906
        %v908 = vpop.f32.mrf.mxu0
        %909 = vdwg.mxu0
        %v910 = vld [vmem:[#allocation2] sm:$0xff]
        %v911 = vld [vmem:[#allocation2 + $0x8] sm:$0xff]
        %v912 = vpack.c.bf16 %v907, %v904
        %v915 = vunpack.c.l.b16 %v910
        %v916 = vunpack.c.l.b16 %v911
        %v917 = vpack.c.b16 %v916, %v915
        %919 = vmatprep.subr.bf16.mxu0 0
        %920 = vmatpush1.bf16.xpose.msra.mxu0 0
        %921 = vmatprep.subr.bf16.mxu0 0
        %922 = vmatpush1.bf16.xpose.msra.mxu0 0
        %923 = vmatprep.subr.bf16.mxu0 0
        %924 = vmatpush1.bf16.xpose.msra.mxu0 0
        %925 = vmatprep.subr.bf16.mxu0 0
        %926 = vmatpush1.bf16.xpose.msra.mxu0 0
        %927 = vmatprep.subr.bf16.mxu0 0
        %928 = vmatpush1.bf16.xpose.msra.mxu0 0
        %929 = vmatprep.subr.bf16.mxu0 0
        %930 = vmatpush1.bf16.xpose.msra.mxu0 0
        %931 = vmatprep.subr.bf16.mxu0 0
        %932 = vmatpush1.bf16.xpose.msra.mxu0 0
        %933 = vmatprep.subr.bf16.mxu0 0
        %934 = vmatpush1.bf16.xpose.msra.mxu0 %v917
        %935 = vmatprep.subr.bf16.mxu0 0
        %936 = vmatpush2.bf16.xpose.msra.mxu0 0
        %937 = vmatprep.subr.bf16.mxu0 0
        %938 = vmatpush2.bf16.xpose.msra.mxu0 0
        %939 = vmatprep.subr.bf16.mxu0 0
        %940 = vmatpush2.bf16.xpose.msra.mxu0 0
        %941 = vmatprep.subr.bf16.mxu0 0
        %942 = vmatpush2.bf16.xpose.msra.mxu0 0
        %943 = vmatprep.subr.bf16.mxu0 0
        %944 = vmatpush2.bf16.xpose.msra.mxu0 0
        %945 = vmatprep.subr.bf16.mxu0 0
        %946 = vmatpush2.bf16.xpose.msra.mxu0 0
        %947 = vmatprep.subr.bf16.mxu0 0
        %948 = vmatpush2.bf16.xpose.msra.mxu0 0
        %949 = vmatprep.subr.bf16.mxu0 0
        %950 = vmatpush2.bf16.xpose.msra.mxu0 0
        %951 = vmatprep.mubr.bf16.mxu0 0
        %952 = vmatmul.mubr.bf16.gmra.mxu0 %v912
        %v953 = vpop.f32.mrf.mxu0
        %v954 = vadd.f32 0.0, %v953
        %v955 = vpop.f32.mrf.mxu0
        %v956 = vpop.f32.mrf.mxu0
        %v957 = vadd.f32 0.0, %v956
        %v958 = vpop.f32.mrf.mxu0
        %959 = vdwg.mxu0
        %v960 = vmul.f32 %v954, 0.088388346
        %v961 = vmul.f32 %v957, 0.088388346
        %v963 = vlaneseq
        %v964 = vshrl.u32 %v963, 7
        %v965 = vsub.s32 0, %v964
        %v966 = vrot.slane %v677, %v965
        %v968 = vadd.f32 %v960, %v966
        %v969 = vadd.f32 %v961, %v966
        %vm970 = vcmask 130048
        %v971 = vsel %vm970, %v968, -inf
        %972 = vmax.xlane.f32.xlu0 %v971
        %v973 = vpop.xlane.xlu0 %972
        %v974 = vsel %vm970, %v969, -inf
        %975 = vmax.xlane.f32.xlu0 %v974
        %v976 = vpop.xlane.xlu0 %975
        %v977 = vsub.f32 %v968, %v973
        %v978 = vsub.f32 %v969, %v976
        %v979 = vmul.f32 %v977, 1.442695
        %v980 = vpow.pop %v979
        %v981 = vmul.f32 %v978, 1.442695
        %v982 = vpow.pop %v981
        %v983 = vsel %vm970, %v980, 0.0
        %984 = vadd.xlane.f32.xlu0 %v983
        %v985 = vpop.xlane.xlu0 %984
        %v986 = vsel %vm970, %v982, 0.0
        %987 = vadd.xlane.f32.xlu0 %v986
        %v988 = vpop.xlane.xlu0 %987
        %v989 = vrcp.pop %v985
        %v990 = vrcp.pop %v988
        %v991 = vmul.f32 %v980, %v989
        %v992 = vmul.f32 %v982, %v990
        %v993 = vpack.c.bf16 %v992, %v991
        %v994 = vunpack.c.h.b16 %v910
        %v995 = vunpack.c.h.b16 %v911
        %v996 = vpack.c.b16 %v995, %v994
        %v999 = vsel %vm970, %v993, 0
        %1001 = vmatprep.subr.bf16.mxu0 0
        %1002 = vmatpush1.bf16.msra.mxu0 0
        %1003 = vmatprep.subr.bf16.mxu0 0
        %1004 = vmatpush1.bf16.msra.mxu0 0
        %1005 = vmatprep.subr.bf16.mxu0 0
        %1006 = vmatpush1.bf16.msra.mxu0 0
        %1007 = vmatprep.subr.bf16.mxu0 0
        %1008 = vmatpush1.bf16.msra.mxu0 0
        %1009 = vmatprep.subr.bf16.mxu0 0
        %1010 = vmatpush1.bf16.msra.mxu0 0
        %1011 = vmatprep.subr.bf16.mxu0 0
        %1012 = vmatpush1.bf16.msra.mxu0 0
        %1013 = vmatprep.subr.bf16.mxu0 0
        %1014 = vmatpush1.bf16.msra.mxu0 0
        %1015 = vmatprep.subr.bf16.mxu0 0
        %1016 = vmatpush1.bf16.msra.mxu0 %v996
        %1017 = vmatprep.subr.bf16.mxu0 0
        %1018 = vmatpush2.bf16.msra.mxu0 0
        %1019 = vmatprep.subr.bf16.mxu0 0
        %1020 = vmatpush2.bf16.msra.mxu0 0
        %1021 = vmatprep.subr.bf16.mxu0 0
        %1022 = vmatpush2.bf16.msra.mxu0 0
        %1023 = vmatprep.subr.bf16.mxu0 0
        %1024 = vmatpush2.bf16.msra.mxu0 0
        %1025 = vmatprep.subr.bf16.mxu0 0
        %1026 = vmatpush2.bf16.msra.mxu0 0
        %1027 = vmatprep.subr.bf16.mxu0 0
        %1028 = vmatpush2.bf16.msra.mxu0 0
        %1029 = vmatprep.subr.bf16.mxu0 0
        %1030 = vmatpush2.bf16.msra.mxu0 0
        %1031 = vmatprep.subr.bf16.mxu0 0
        %1032 = vmatpush2.bf16.msra.mxu0 0
        %1033 = vmatprep.mubr.bf16.mxu0 0
        %1034 = vmatmul.mubr.bf16.gmra.mxu0 %v999
        %v1035 = vpop.f32.mrf.mxu0
        %v1036 = vadd.f32 0.0, %v1035
        %v1037 = vpop.f32.mrf.mxu0
        %v1038 = vpop.f32.mrf.mxu0
        %v1039 = vadd.f32 0.0, %v1038
        %v1040 = vpop.f32.mrf.mxu0
        %1041 = vdwg.mxu0
        %v1042 = vunpack.c.l.bf16 %v669
        %v1043 = vunpack.c.l.bf16 %v670
        %v1044 = vpack.c.bf16 %v1039, %v1036
        %v1061 = vunpack.c.l.b16 %v429
        %v1062 = vunpack.c.l.b16 %v430
        %v1063 = vunpack.c.l.b16 %v431
        %v1064 = vunpack.c.l.b16 %v432
        %v1065 = vunpack.c.l.b16 %v433
        %v1066 = vunpack.c.l.b16 %v434
        %v1067 = vunpack.c.l.b16 %v435
        %v1068 = vunpack.c.l.b16 %v436
        %v1069 = vunpack.c.l.b16 %v437
        %v1070 = vunpack.c.l.b16 %v438
        %v1071 = vunpack.c.l.b16 %v439
        %v1072 = vunpack.c.l.b16 %v440
        %v1073 = vunpack.c.l.b16 %v441
        %v1074 = vunpack.c.l.b16 %v442
        %v1075 = vunpack.c.l.b16 %v443
        %v1076 = vunpack.c.l.b16 %v444
        %v1077 = vpack.c.b16 %v1062, %v1061
        %v1078 = vpack.c.b16 %v1064, %v1063
        %v1079 = vpack.c.b16 %v1066, %v1065
        %v1080 = vpack.c.b16 %v1068, %v1067
        %v1081 = vpack.c.b16 %v1070, %v1069
        %v1082 = vpack.c.b16 %v1072, %v1071
        %v1083 = vpack.c.b16 %v1074, %v1073
        %v1084 = vpack.c.b16 %v1076, %v1075
        %1093 = vmatprep.subr.bf16.mxu0 0
        %1094 = vmatpush1.bf16.msra.mxu0 %v1084
        %1095 = vmatprep.subr.bf16.mxu0 0
        %1096 = vmatpush1.bf16.msra.mxu0 %v1083
        %1097 = vmatprep.subr.bf16.mxu0 0
        %1098 = vmatpush1.bf16.msra.mxu0 %v1082
        %1099 = vmatprep.subr.bf16.mxu0 0
        %1100 = vmatpush1.bf16.msra.mxu0 %v1081
        %1101 = vmatprep.subr.bf16.mxu0 0
        %1102 = vmatpush1.bf16.msra.mxu0 %v1080
        %1103 = vmatprep.subr.bf16.mxu0 0
        %1104 = vmatpush1.bf16.msra.mxu0 %v1079
        %1105 = vmatprep.subr.bf16.mxu0 0
        %1106 = vmatpush1.bf16.msra.mxu0 %v1078
        %1107 = vmatprep.subr.bf16.mxu0 0
        %1108 = vmatpush1.bf16.msra.mxu0 %v1077
        %1109 = vmatprep.subr.bf16.mxu0 0
        %1110 = vmatpush2.bf16.msra.mxu0 0
        %1111 = vmatprep.subr.bf16.mxu0 0
        %1112 = vmatpush2.bf16.msra.mxu0 0
        %1113 = vmatprep.subr.bf16.mxu0 0
        %1114 = vmatpush2.bf16.msra.mxu0 0
        %1115 = vmatprep.subr.bf16.mxu0 0
        %1116 = vmatpush2.bf16.msra.mxu0 0
        %1117 = vmatprep.subr.bf16.mxu0 0
        %1118 = vmatpush2.bf16.msra.mxu0 0
        %1119 = vmatprep.subr.bf16.mxu0 0
        %1120 = vmatpush2.bf16.msra.mxu0 0
        %1121 = vmatprep.subr.bf16.mxu0 0
        %1122 = vmatpush2.bf16.msra.mxu0 0
        %1123 = vmatprep.subr.bf16.mxu0 0
        %1124 = vmatpush2.bf16.msra.mxu0 0
        %1125 = vmatprep.mubr.bf16.mxu0 0
        %1126 = vmatmul.mubr.bf16.gmra.mxu0 %v1044
        %v1127 = vpop.f32.mrf.mxu0
        %v1128 = vadd.f32 0.0, %v1127
        %v1129 = vpop.f32.mrf.mxu0
        %v1130 = vpop.f32.mrf.mxu0
        %v1131 = vadd.f32 0.0, %v1130
        %v1132 = vpop.f32.mrf.mxu0
        %1133 = vdwg.mxu0
        %v1134 = vadd.f32 %v1042, %v1128
        %v1135 = vadd.f32 %v1043, %v1131
        %v1136 = vpack.c.bf16 %v1135, %v1134
        %v1153 = vunpack.c.l.b16 %v445
        %v1154 = vunpack.c.h.b16 %v445
        %v1155 = vunpack.c.l.b16 %v446
        %v1156 = vunpack.c.h.b16 %v446
        %v1157 = vunpack.c.l.b16 %v447
        %v1158 = vunpack.c.h.b16 %v447
        %v1159 = vunpack.c.l.b16 %v448
        %v1160 = vunpack.c.h.b16 %v448
        %v1161 = vunpack.c.l.b16 %v449
        %v1162 = vunpack.c.h.b16 %v449
        %v1163 = vunpack.c.l.b16 %v450
        %v1164 = vunpack.c.h.b16 %v450
        %v1165 = vunpack.c.l.b16 %v451
        %v1166 = vunpack.c.h.b16 %v451
        %v1167 = vunpack.c.l.b16 %v452
        %v1168 = vunpack.c.h.b16 %v452
        %v1169 = vunpack.c.l.b16 %v453
        %v1170 = vunpack.c.h.b16 %v453
        %v1171 = vunpack.c.l.b16 %v454
        %v1172 = vunpack.c.h.b16 %v454
        %v1173 = vunpack.c.l.b16 %v455
        %v1174 = vunpack.c.h.b16 %v455
        %v1175 = vunpack.c.l.b16 %v456
        %v1176 = vunpack.c.h.b16 %v456
        %v1177 = vunpack.c.l.b16 %v457
        %v1178 = vunpack.c.h.b16 %v457
        %v1179 = vunpack.c.l.b16 %v458
        %v1180 = vunpack.c.h.b16 %v458
        %v1181 = vunpack.c.l.b16 %v459
        %v1182 = vunpack.c.h.b16 %v459
        %v1183 = vunpack.c.l.b16 %v460
        %v1184 = vunpack.c.h.b16 %v460
        %v1185 = vpack.c.b16 %v1155, %v1153
        %v1186 = vpack.c.b16 %v1156, %v1154
        %v1187 = vpack.c.b16 %v1159, %v1157
        %v1188 = vpack.c.b16 %v1160, %v1158
        %v1189 = vpack.c.b16 %v1163, %v1161
        %v1190 = vpack.c.b16 %v1164, %v1162
        %v1191 = vpack.c.b16 %v1167, %v1165
        %v1192 = vpack.c.b16 %v1168, %v1166
        %v1193 = vpack.c.b16 %v1171, %v1169
        %v1194 = vpack.c.b16 %v1172, %v1170
        %v1195 = vpack.c.b16 %v1175, %v1173
        %v1196 = vpack.c.b16 %v1176, %v1174
        %v1197 = vpack.c.b16 %v1179, %v1177
        %v1198 = vpack.c.b16 %v1180, %v1178
        %v1199 = vpack.c.b16 %v1183, %v1181
        %v1200 = vpack.c.b16 %v1184, %v1182
        %1217 = vmatprep.subr.bf16.mxu0 %v1200
        %1218 = vmatpush1.bf16.msra.mxu0 %v1199
        %1219 = vmatprep.subr.bf16.mxu0 %v1198
        %1220 = vmatpush1.bf16.msra.mxu0 %v1197
        %1221 = vmatprep.subr.bf16.mxu0 %v1196
        %1222 = vmatpush1.bf16.msra.mxu0 %v1195
        %1223 = vmatprep.subr.bf16.mxu0 %v1194
        %1224 = vmatpush1.bf16.msra.mxu0 %v1193
        %1225 = vmatprep.subr.bf16.mxu0 %v1192
        %1226 = vmatpush1.bf16.msra.mxu0 %v1191
        %1227 = vmatprep.subr.bf16.mxu0 %v1190
        %1228 = vmatpush1.bf16.msra.mxu0 %v1189
        %1229 = vmatprep.subr.bf16.mxu0 %v1188
        %1230 = vmatpush1.bf16.msra.mxu0 %v1187
        %1231 = vmatprep.subr.bf16.mxu0 %v1186
        %1232 = vmatpush1.bf16.msra.mxu0 %v1185
        %1233 = vmatprep.subr.bf16.mxu0 0
        %1234 = vmatpush2.bf16.msra.mxu0 0
        %1235 = vmatprep.subr.bf16.mxu0 0
        %1236 = vmatpush2.bf16.msra.mxu0 0
        %1237 = vmatprep.subr.bf16.mxu0 0
        %1238 = vmatpush2.bf16.msra.mxu0 0
        %1239 = vmatprep.subr.bf16.mxu0 0
        %1240 = vmatpush2.bf16.msra.mxu0 0
        %1241 = vmatprep.subr.bf16.mxu0 0
        %1242 = vmatpush2.bf16.msra.mxu0 0
        %1243 = vmatprep.subr.bf16.mxu0 0
        %1244 = vmatpush2.bf16.msra.mxu0 0
        %1245 = vmatprep.subr.bf16.mxu0 0
        %1246 = vmatpush2.bf16.msra.mxu0 0
        %1247 = vmatprep.subr.bf16.mxu0 0
        %1248 = vmatpush2.bf16.msra.mxu0 0
        %1249 = vmatprep.mubr.bf16.mxu0 0
        %1250 = vmatmul.mubr.bf16.gmra.mxu0 %v1136
        %v1251 = vpop.f32.mrf.mxu0
        %v1252 = vadd.f32 0.0, %v1251
        %v1253 = vpop.f32.mrf.mxu0
        %v1254 = vadd.f32 0.0, %v1253
        %v1255 = vpop.f32.mrf.mxu0
        %v1256 = vadd.f32 0.0, %v1255
        %v1257 = vpop.f32.mrf.mxu0
        %v1258 = vadd.f32 0.0, %v1257
        %1259 = vdwg.mxu0
        %v1260 = vmax.f32 %v1252, 0.0
        %v1261 = vmax.f32 %v1254, 0.0
        %v1262 = vmax.f32 %v1256, 0.0
        %v1263 = vmax.f32 %v1258, 0.0
        %v1264 = vpack.c.bf16 %v1262, %v1260
        %v1265 = vpack.c.bf16 %v1263, %v1261
        %v1298 = vunpack.c.l.b16 %v573
        %v1299 = vunpack.c.l.b16 %v574
        %v1300 = vunpack.c.l.b16 %v575
        %v1301 = vunpack.c.l.b16 %v576
        %v1302 = vunpack.c.l.b16 %v577
        %v1303 = vunpack.c.l.b16 %v578
        %v1304 = vunpack.c.l.b16 %v579
        %v1305 = vunpack.c.l.b16 %v580
        %v1306 = vunpack.c.l.b16 %v581
        %v1307 = vunpack.c.l.b16 %v582
        %v1308 = vunpack.c.l.b16 %v583
        %v1309 = vunpack.c.l.b16 %v584
        %v1310 = vunpack.c.l.b16 %v585
        %v1311 = vunpack.c.l.b16 %v586
        %v1312 = vunpack.c.l.b16 %v587
        %v1313 = vunpack.c.l.b16 %v588
        %v1314 = vunpack.c.l.b16 %v589
        %v1315 = vunpack.c.l.b16 %v590
        %v1316 = vunpack.c.l.b16 %v591
        %v1317 = vunpack.c.l.b16 %v592
        %v1318 = vunpack.c.l.b16 %v593
        %v1319 = vunpack.c.l.b16 %v594
        %v1320 = vunpack.c.l.b16 %v595
        %v1321 = vunpack.c.l.b16 %v596
        %v1322 = vunpack.c.l.b16 %v597
        %v1323 = vunpack.c.l.b16 %v598
        %v1324 = vunpack.c.l.b16 %v599
        %v1325 = vunpack.c.l.b16 %v600
        %v1326 = vunpack.c.l.b16 %v601
        %v1327 = vunpack.c.l.b16 %v602
        %v1328 = vunpack.c.l.b16 %v603
        %v1329 = vunpack.c.l.b16 %v604
        %v1330 = vpack.c.b16 %v1299, %v1298
        %v1331 = vpack.c.b16 %v1301, %v1300
        %v1332 = vpack.c.b16 %v1303, %v1302
        %v1333 = vpack.c.b16 %v1305, %v1304
        %v1334 = vpack.c.b16 %v1307, %v1306
        %v1335 = vpack.c.b16 %v1309, %v1308
        %v1336 = vpack.c.b16 %v1311, %v1310
        %v1337 = vpack.c.b16 %v1313, %v1312
        %v1338 = vpack.c.b16 %v1315, %v1314
        %v1339 = vpack.c.b16 %v1317, %v1316
        %v1340 = vpack.c.b16 %v1319, %v1318
        %v1341 = vpack.c.b16 %v1321, %v1320
        %v1342 = vpack.c.b16 %v1323, %v1322
        %v1343 = vpack.c.b16 %v1325, %v1324
        %v1344 = vpack.c.b16 %v1327, %v1326
        %v1345 = vpack.c.b16 %v1329, %v1328
        %1362 = vmatprep.subr.bf16.mxu0 0
        %1363 = vmatpush1.bf16.msra.mxu0 %v1337
        %1364 = vmatprep.subr.bf16.mxu0 0
        %1365 = vmatpush1.bf16.msra.mxu0 %v1336
        %1366 = vmatprep.subr.bf16.mxu0 0
        %1367 = vmatpush1.bf16.msra.mxu0 %v1335
        %1368 = vmatprep.subr.bf16.mxu0 0
        %1369 = vmatpush1.bf16.msra.mxu0 %v1334
        %1370 = vmatprep.subr.bf16.mxu0 0
        %1371 = vmatpush1.bf16.msra.mxu0 %v1333
        %1372 = vmatprep.subr.bf16.mxu0 0
        %1373 = vmatpush1.bf16.msra.mxu0 %v1332
        %1374 = vmatprep.subr.bf16.mxu0 0
        %1375 = vmatpush1.bf16.msra.mxu0 %v1331
        %1376 = vmatprep.subr.bf16.mxu0 0
        %1377 = vmatpush1.bf16.msra.mxu0 %v1330
        %1378 = vmatprep.subr.bf16.mxu0 0
        %1379 = vmatpush2.bf16.msra.mxu0 %v1345
        %1380 = vmatprep.subr.bf16.mxu0 0
        %1381 = vmatpush2.bf16.msra.mxu0 %v1344
        %1382 = vmatprep.subr.bf16.mxu0 0
        %1383 = vmatpush2.bf16.msra.mxu0 %v1343
        %1384 = vmatprep.subr.bf16.mxu0 0
        %1385 = vmatpush2.bf16.msra.mxu0 %v1342
        %1386 = vmatprep.subr.bf16.mxu0 0
        %1387 = vmatpush2.bf16.msra.mxu0 %v1341
        %1388 = vmatprep.subr.bf16.mxu0 0
        %1389 = vmatpush2.bf16.msra.mxu0 %v1340
        %1390 = vmatprep.subr.bf16.mxu0 0
        %1391 = vmatpush2.bf16.msra.mxu0 %v1339
        %1392 = vmatprep.subr.bf16.mxu0 0
        %1393 = vmatpush2.bf16.msra.mxu0 %v1338
        %1394 = vmatprep.mubr.bf16.mxu0 %v1265
        %1395 = vmatmul.mubr.bf16.gmra.mxu0 %v1264
        %v1396 = vpop.f32.mrf.mxu0
        %v1397 = vadd.f32 0.0, %v1396
        %v1398 = vpop.f32.mrf.mxu0
        %v1399 = vpop.f32.mrf.mxu0
        %v1400 = vadd.f32 0.0, %v1399
        %v1401 = vpop.f32.mrf.mxu0
        %1402 = vdwg.mxu0
        %v1403 = vadd.f32 %v1134, %v1397
        %v1404 = vadd.f32 %v1135, %v1400
        %v1405 = vpack.c.bf16 %v1404, %v1403
        %v1407 = vunpack.c.l.b16 %v1405
        %v1408 = vunpack.c.h.b16 %v1405
        %v1409 = vpack.c.b16 %v1407, %v1407
        %v1410 = vpack.c.b16 %v1408, %v1408
        %1413 = vst [vmem:[#allocation3] sm:$0xf] %v1409
        %1414 = vst [vmem:[#allocation3 + $0x4] sm:$0xf] %v1410
        %1415 = vmatprep.subr.bf16.mxu0 %v747
        %1416 = vmatpush1.bf16.msra.mxu0 %v746
        %1417 = vmatprep.subr.bf16.mxu0 %v745
        %1418 = vmatpush1.bf16.msra.mxu0 %v744
        %1419 = vmatprep.subr.bf16.mxu0 %v743
        %1420 = vmatpush1.bf16.msra.mxu0 %v742
        %1421 = vmatprep.subr.bf16.mxu0 %v741
        %1422 = vmatpush1.bf16.msra.mxu0 %v740
        %1423 = vmatprep.subr.bf16.mxu0 %v739
        %1424 = vmatpush1.bf16.msra.mxu0 %v738
        %1425 = vmatprep.subr.bf16.mxu0 %v737
        %1426 = vmatpush1.bf16.msra.mxu0 %v736
        %1427 = vmatprep.subr.bf16.mxu0 %v735
        %1428 = vmatpush1.bf16.msra.mxu0 %v734
        %1429 = vmatprep.subr.bf16.mxu0 %v733
        %1430 = vmatpush1.bf16.msra.mxu0 %v732
        %1431 = vmatprep.subr.bf16.mxu0 0
        %1432 = vmatpush2.bf16.msra.mxu0 0
        %1433 = vmatprep.subr.bf16.mxu0 0
        %1434 = vmatpush2.bf16.msra.mxu0 0
        %1435 = vmatprep.subr.bf16.mxu0 0
        %1436 = vmatpush2.bf16.msra.mxu0 0
        %1437 = vmatprep.subr.bf16.mxu0 0
        %1438 = vmatpush2.bf16.msra.mxu0 0
        %1439 = vmatprep.subr.bf16.mxu0 0
        %1440 = vmatpush2.bf16.msra.mxu0 0
        %1441 = vmatprep.subr.bf16.mxu0 0
        %1442 = vmatpush2.bf16.msra.mxu0 0
        %1443 = vmatprep.subr.bf16.mxu0 0
        %1444 = vmatpush2.bf16.msra.mxu0 0
        %1445 = vmatprep.subr.bf16.mxu0 0
        %1446 = vmatpush2.bf16.msra.mxu0 0
        %1447 = vmatprep.mubr.bf16.mxu0 0
        %1448 = vmatmul.mubr.bf16.gmra.mxu0 %v1405
        %v1449 = vpop.f32.mrf.mxu0
        %v1450 = vadd.f32 0.0, %v1449
        %v1451 = vpop.f32.mrf.mxu0
        %v1452 = vadd.f32 0.0, %v1451
        %v1453 = vpop.f32.mrf.mxu0
        %v1454 = vadd.f32 0.0, %v1453
        %v1455 = vpop.f32.mrf.mxu0
        %v1456 = vadd.f32 0.0, %v1455
        %1457 = vdwg.mxu0
        %v1458 = vpack.c.bf16 %v1454, %v1450
        %v1459 = vpack.c.bf16 %v1456, %v1452
        %v1462 = vunpack.c.l.b16 %v1458
        %v1463 = vunpack.c.l.b16 %v1459
        %v1464 = vunpack.c.h.b16 %v1458
        %v1465 = vunpack.c.h.b16 %v1459
        %v1466 = vpack.c.b16 %v1463, %v1462
        %v1467 = vpack.c.b16 %v1465, %v1464
        %1470 = vst [vmem:[#allocation2] sm:$0xff] %v1466
        %1471 = vst [vmem:[#allocation2 + $0x8] sm:$0xff] %v1467
        %v1472 = vadd.f32 %v1403, %v1404
        %v1473 = vrot.slane %v1472, 4
        %v1474 = vadd.f32 %v1472, %v1473
        %v1475 = vrot.slane %v1474, 2
        %v1476 = vadd.f32 %v1474, %v1475
        %v1477 = vrot.slane %v1476, 1
        %v1478 = vadd.f32 %v1476, %v1477
        %v1479 = vrcp.pop 16.0
        %v1480 = vmul.f32 %v1478, %v1479
        %v1483 = vunpack.c.l.b16 %v671
        %v1484 = vunpack.c.l.b16 %v672
        %v1485 = vpack.c.b16 %v1484, %v1483
        %1487 = vmatprep.subr.bf16.mxu0 %v747
        %1488 = vmatpush1.bf16.msra.mxu0 %v746
        %1489 = vmatprep.subr.bf16.mxu0 %v745
        %1490 = vmatpush1.bf16.msra.mxu0 %v744
        %1491 = vmatprep.subr.bf16.mxu0 %v743
        %1492 = vmatpush1.bf16.msra.mxu0 %v742
        %1493 = vmatprep.subr.bf16.mxu0 %v741
        %1494 = vmatpush1.bf16.msra.mxu0 %v740
        %1495 = vmatprep.subr.bf16.mxu0 %v739
        %1496 = vmatpush1.bf16.msra.mxu0 %v738
        %1497 = vmatprep.subr.bf16.mxu0 %v737
        %1498 = vmatpush1.bf16.msra.mxu0 %v736
        %1499 = vmatprep.subr.bf16.mxu0 %v735
        %1500 = vmatpush1.bf16.msra.mxu0 %v734
        %1501 = vmatprep.subr.bf16.mxu0 %v733
        %1502 = vmatpush1.bf16.msra.mxu0 %v732
        %1503 = vmatprep.subr.bf16.mxu0 0
        %1504 = vmatpush2.bf16.msra.mxu0 0
        %1505 = vmatprep.subr.bf16.mxu0 0
        %1506 = vmatpush2.bf16.msra.mxu0 0
        %1507 = vmatprep.subr.bf16.mxu0 0
        %1508 = vmatpush2.bf16.msra.mxu0 0
        %1509 = vmatprep.subr.bf16.mxu0 0
        %1510 = vmatpush2.bf16.msra.mxu0 0
        %1511 = vmatprep.subr.bf16.mxu0 0
        %1512 = vmatpush2.bf16.msra.mxu0 0
        %1513 = vmatprep.subr.bf16.mxu0 0
        %1514 = vmatpush2.bf16.msra.mxu0 0
        %1515 = vmatprep.subr.bf16.mxu0 0
        %1516 = vmatpush2.bf16.msra.mxu0 0
        %1517 = vmatprep.subr.bf16.mxu0 0
        %1518 = vmatpush2.bf16.msra.mxu0 0
        %1519 = vmatprep.mubr.bf16.mxu0 0
        %1520 = vmatmul.mubr.bf16.gmra.mxu0 %v1485
        %v1521 = vpop.f32.mrf.mxu0
        %v1522 = vadd.f32 0.0, %v1521
        %v1523 = vpop.f32.mrf.mxu0
        %v1524 = vadd.f32 0.0, %v1523
        %v1525 = vpop.f32.mrf.mxu0
        %v1526 = vadd.f32 0.0, %v1525
        %v1527 = vpop.f32.mrf.mxu0
        %v1528 = vadd.f32 0.0, %v1527
        %1529 = vdwg.mxu0
        %v1530 = vpack.c.bf16 %v1526, %v1522
        %v1531 = vpack.c.bf16 %v1528, %v1524
        %v1534 = vunpack.c.l.b16 %v1530
        %v1535 = vunpack.c.l.b16 %v1531
        %v1536 = vunpack.c.h.b16 %v1530
        %v1537 = vunpack.c.h.b16 %v1531
        %v1538 = vpack.c.b16 %v1535, %v1534
        %v1539 = vpack.c.b16 %v1537, %v1536
        %1542 = vst [vmem:[#allocation2 + $0x10] sm:$0xff] %v1538
        %1543 = vst [vmem:[#allocation2 + $0x18] sm:$0xff] %v1539
        %1544 = vmatprep.subr.bf16.mxu0 0
        %1545 = vmatpush1.bf16.msra.mxu0 %v860
        %1546 = vmatprep.subr.bf16.mxu0 0
        %1547 = vmatpush1.bf16.msra.mxu0 %v859
        %1548 = vmatprep.subr.bf16.mxu0 0
        %1549 = vmatpush1.bf16.msra.mxu0 %v858
        %1550 = vmatprep.subr.bf16.mxu0 0
        %1551 = vmatpush1.bf16.msra.mxu0 %v857
        %1552 = vmatprep.subr.bf16.mxu0 0
        %1553 = vmatpush1.bf16.msra.mxu0 %v856
        %1554 = vmatprep.subr.bf16.mxu0 0
        %1555 = vmatpush1.bf16.msra.mxu0 %v855
        %1556 = vmatprep.subr.bf16.mxu0 0
        %1557 = vmatpush1.bf16.msra.mxu0 %v854
        %1558 = vmatprep.subr.bf16.mxu0 0
        %1559 = vmatpush1.bf16.msra.mxu0 %v853
        %1560 = vmatprep.subr.bf16.mxu0 0
        %1561 = vmatpush2.bf16.msra.mxu0 0
        %1562 = vmatprep.subr.bf16.mxu0 0
        %1563 = vmatpush2.bf16.msra.mxu0 0
        %1564 = vmatprep.subr.bf16.mxu0 0
        %1565 = vmatpush2.bf16.msra.mxu0 0
        %1566 = vmatprep.subr.bf16.mxu0 0
        %1567 = vmatpush2.bf16.msra.mxu0 0
        %1568 = vmatprep.subr.bf16.mxu0 0
        %1569 = vmatpush2.bf16.msra.mxu0 0
        %1570 = vmatprep.subr.bf16.mxu0 0
        %1571 = vmatpush2.bf16.msra.mxu0 0
        %1572 = vmatprep.subr.bf16.mxu0 0
        %1573 = vmatpush2.bf16.msra.mxu0 0
        %1574 = vmatprep.subr.bf16.mxu0 0
        %1575 = vmatpush2.bf16.msra.mxu0 0
        %1576 = vmatprep.mubr.bf16.mxu0 0
        %1577 = vmatmul.mubr.bf16.gmra.mxu0 %v1485
        %v1578 = vpop.f32.mrf.mxu0
        %v1579 = vadd.f32 0.0, %v1578
        %v1580 = vpop.f32.mrf.mxu0
        %v1581 = vpop.f32.mrf.mxu0
        %v1582 = vadd.f32 0.0, %v1581
        %v1583 = vpop.f32.mrf.mxu0
        %1584 = vdwg.mxu0
        %v1585 = vld [vmem:[#allocation2] sm:$0xff]
        %v1586 = vld [vmem:[#allocation2 + $0x8] sm:$0xff]
        %v1587 = vld [vmem:[#allocation2 + $0x10] sm:$0xff]
        %v1588 = vld [vmem:[#allocation2 + $0x18] sm:$0xff]
        %v1589 = vpack.c.bf16 %v1582, %v1579
        %v1594 = vunpack.c.l.b16 %v1585
        %v1595 = vunpack.c.l.b16 %v1586
        %v1596 = vunpack.c.l.b16 %v1587
        %v1597 = vunpack.c.l.b16 %v1588
        %v1598 = vpack.c.b16 %v1595, %v1594
        %v1599 = vpack.c.b16 %v1597, %v1596
        %1602 = vmatprep.subr.bf16.mxu0 0
        %1603 = vmatpush1.bf16.xpose.msra.mxu0 0
        %1604 = vmatprep.subr.bf16.mxu0 0
        %1605 = vmatpush1.bf16.xpose.msra.mxu0 0
        %1606 = vmatprep.subr.bf16.mxu0 0
        %1607 = vmatpush1.bf16.xpose.msra.mxu0 0
        %1608 = vmatprep.subr.bf16.mxu0 0
        %1609 = vmatpush1.bf16.xpose.msra.mxu0 0
        %1610 = vmatprep.subr.bf16.mxu0 0
        %1611 = vmatpush1.bf16.xpose.msra.mxu0 0
        %1612 = vmatprep.subr.bf16.mxu0 0
        %1613 = vmatpush1.bf16.xpose.msra.mxu0 0
        %1614 = vmatprep.subr.bf16.mxu0 0
        %1615 = vmatpush1.bf16.xpose.msra.mxu0 %v1599
        %1616 = vmatprep.subr.bf16.mxu0 0
        %1617 = vmatpush1.bf16.xpose.msra.mxu0 %v1598
        %1618 = vmatprep.subr.bf16.mxu0 0
        %1619 = vmatpush2.bf16.xpose.msra.mxu0 0
        %1620 = vmatprep.subr.bf16.mxu0 0
        %1621 = vmatpush2.bf16.xpose.msra.mxu0 0
        %1622 = vmatprep.subr.bf16.mxu0 0
        %1623 = vmatpush2.bf16.xpose.msra.mxu0 0
        %1624 = vmatprep.subr.bf16.mxu0 0
        %1625 = vmatpush2.bf16.xpose.msra.mxu0 0
        %1626 = vmatprep.subr.bf16.mxu0 0
        %1627 = vmatpush2.bf16.xpose.msra.mxu0 0
        %1628 = vmatprep.subr.bf16.mxu0 0
        %1629 = vmatpush2.bf16.xpose.msra.mxu0 0
        %1630 = vmatprep.subr.bf16.mxu0 0
        %1631 = vmatpush2.bf16.xpose.msra.mxu0 0
        %1632 = vmatprep.subr.bf16.mxu0 0
        %1633 = vmatpush2.bf16.xpose.msra.mxu0 0
        %1634 = vmatprep.mubr.bf16.mxu0 0
        %1635 = vmatmul.mubr.bf16.gmra.mxu0 %v1589
        %v1636 = vpop.f32.mrf.mxu0
        %v1637 = vadd.f32 0.0, %v1636
        %v1638 = vpop.f32.mrf.mxu0
        %v1639 = vpop.f32.mrf.mxu0
        %v1640 = vadd.f32 0.0, %v1639
        %v1641 = vpop.f32.mrf.mxu0
        %1642 = vdwg.mxu0
        %v1643 = vmul.f32 %v1637, 0.088388346
        %v1644 = vmul.f32 %v1640, 0.088388346
        %v1645 = vadd.f32 %v1643, %v966
        %v1646 = vadd.f32 %v1644, %v966
        %vm1647 = vcmask 261120
        %v1648 = vsel %vm1647, %v1645, -inf
        %1649 = vmax.xlane.f32.xlu0 %v1648
        %v1650 = vpop.xlane.xlu0 %1649
        %v1651 = vsel %vm1647, %v1646, -inf
        %1652 = vmax.xlane.f32.xlu0 %v1651
        %v1653 = vpop.xlane.xlu0 %1652
        %v1654 = vsub.f32 %v1645, %v1650
        %v1655 = vsub.f32 %v1646, %v1653
        %v1656 = vmul.f32 %v1654, 1.442695
        %v1657 = vpow.pop %v1656
        %v1658 = vmul.f32 %v1655, 1.442695
        %v1659 = vpow.pop %v1658
        %v1660 = vsel %vm1647, %v1657, 0.0
        %1661 = vadd.xlane.f32.xlu0 %v1660
        %v1662 = vpop.xlane.xlu0 %1661
        %v1663 = vsel %vm1647, %v1659, 0.0
        %1664 = vadd.xlane.f32.xlu0 %v1663
        %v1665 = vpop.xlane.xlu0 %1664
        %v1666 = vrcp.pop %v1662
        %v1667 = vrcp.pop %v1665
        %v1668 = vmul.f32 %v1657, %v1666
        %v1669 = vmul.f32 %v1659, %v1667
        %v1670 = vpack.c.bf16 %v1669, %v1668
        %v1671 = vunpack.c.h.b16 %v1585
        %v1672 = vunpack.c.h.b16 %v1586
        %v1673 = vunpack.c.h.b16 %v1587
        %v1674 = vunpack.c.h.b16 %v1588
        %v1675 = vpack.c.b16 %v1672, %v1671
        %v1676 = vpack.c.b16 %v1674, %v1673
        %v1680 = vsel %vm1647, %v1670, 0
        %1682 = vmatprep.subr.bf16.mxu0 0
        %1683 = vmatpush1.bf16.msra.mxu0 0
        %1684 = vmatprep.subr.bf16.mxu0 0
        %1685 = vmatpush1.bf16.msra.mxu0 0
        %1686 = vmatprep.subr.bf16.mxu0 0
        %1687 = vmatpush1.bf16.msra.mxu0 0
        %1688 = vmatprep.subr.bf16.mxu0 0
        %1689 = vmatpush1.bf16.msra.mxu0 0
        %1690 = vmatprep.subr.bf16.mxu0 0
        %1691 = vmatpush1.bf16.msra.mxu0 0
        %1692 = vmatprep.subr.bf16.mxu0 0
        %1693 = vmatpush1.bf16.msra.mxu0 0
        %1694 = vmatprep.subr.bf16.mxu0 0
        %1695 = vmatpush1.bf16.msra.mxu0 %v1676
        %1696 = vmatprep.subr.bf16.mxu0 0
        %1697 = vmatpush1.bf16.msra.mxu0 %v1675
        %1698 = vmatprep.subr.bf16.mxu0 0
        %1699 = vmatpush2.bf16.msra.mxu0 0
        %1700 = vmatprep.subr.bf16.mxu0 0
        %1701 = vmatpush2.bf16.msra.mxu0 0
        %1702 = vmatprep.subr.bf16.mxu0 0
        %1703 = vmatpush2.bf16.msra.mxu0 0
        %1704 = vmatprep.subr.bf16.mxu0 0
        %1705 = vmatpush2.bf16.msra.mxu0 0
        %1706 = vmatprep.subr.bf16.mxu0 0
        %1707 = vmatpush2.bf16.msra.mxu0 0
        %1708 = vmatprep.subr.bf16.mxu0 0
        %1709 = vmatpush2.bf16.msra.mxu0 0
        %1710 = vmatprep.subr.bf16.mxu0 0
        %1711 = vmatpush2.bf16.msra.mxu0 0
        %1712 = vmatprep.subr.bf16.mxu0 0
        %1713 = vmatpush2.bf16.msra.mxu0 0
        %1714 = vmatprep.mubr.bf16.mxu0 0
        %1715 = vmatmul.mubr.bf16.gmra.mxu0 %v1680
        %v1716 = vpop.f32.mrf.mxu0
        %v1717 = vadd.f32 0.0, %v1716
        %v1718 = vpop.f32.mrf.mxu0
        %v1719 = vpop.f32.mrf.mxu0
        %v1720 = vadd.f32 0.0, %v1719
        %v1721 = vpop.f32.mrf.mxu0
        %1722 = vdwg.mxu0
        %v1723 = vunpack.c.l.bf16 %v671
        %v1724 = vunpack.c.l.bf16 %v672
        %v1725 = vpack.c.bf16 %v1720, %v1717
        %1726 = vmatprep.subr.bf16.mxu0 0
        %1727 = vmatpush1.bf16.msra.mxu0 %v1084
        %1728 = vmatprep.subr.bf16.mxu0 0
        %1729 = vmatpush1.bf16.msra.mxu0 %v1083
        %1730 = vmatprep.subr.bf16.mxu0 0
        %1731 = vmatpush1.bf16.msra.mxu0 %v1082
        %1732 = vmatprep.subr.bf16.mxu0 0
        %1733 = vmatpush1.bf16.msra.mxu0 %v1081
        %1734 = vmatprep.subr.bf16.mxu0 0
        %1735 = vmatpush1.bf16.msra.mxu0 %v1080
        %1736 = vmatprep.subr.bf16.mxu0 0
        %1737 = vmatpush1.bf16.msra.mxu0 %v1079
        %1738 = vmatprep.subr.bf16.mxu0 0
        %1739 = vmatpush1.bf16.msra.mxu0 %v1078
        %1740 = vmatprep.subr.bf16.mxu0 0
        %1741 = vmatpush1.bf16.msra.mxu0 %v1077
        %1742 = vmatprep.subr.bf16.mxu0 0
        %1743 = vmatpush2.bf16.msra.mxu0 0
        %1744 = vmatprep.subr.bf16.mxu0 0
        %1745 = vmatpush2.bf16.msra.mxu0 0
        %1746 = vmatprep.subr.bf16.mxu0 0
        %1747 = vmatpush2.bf16.msra.mxu0 0
        %1748 = vmatprep.subr.bf16.mxu0 0
        %1749 = vmatpush2.bf16.msra.mxu0 0
        %1750 = vmatprep.subr.bf16.mxu0 0
        %1751 = vmatpush2.bf16.msra.mxu0 0
        %1752 = vmatprep.subr.bf16.mxu0 0
        %1753 = vmatpush2.bf16.msra.mxu0 0
        %1754 = vmatprep.subr.bf16.mxu0 0
        %1755 = vmatpush2.bf16.msra.mxu0 0
        %1756 = vmatprep.subr.bf16.mxu0 0
        %1757 = vmatpush2.bf16.msra.mxu0 0
        %1758 = vmatprep.mubr.bf16.mxu0 0
        %1759 = vmatmul.mubr.bf16.gmra.mxu0 %v1725
        %v1760 = vpop.f32.mrf.mxu0
        %v1761 = vadd.f32 0.0, %v1760
        %v1762 = vpop.f32.mrf.mxu0
        %v1763 = vpop.f32.mrf.mxu0
        %v1764 = vadd.f32 0.0, %v1763
        %v1765 = vpop.f32.mrf.mxu0
        %1766 = vdwg.mxu0
        %v1767 = vadd.f32 %v1723, %v1761
        %v1768 = vadd.f32 %v1724, %v1764
        %v1769 = vpack.c.bf16 %v1768, %v1767
        %1770 = vmatprep.subr.bf16.mxu0 %v1200
        %1771 = vmatpush1.bf16.msra.mxu0 %v1199
        %1772 = vmatprep.subr.bf16.mxu0 %v1198
        %1773 = vmatpush1.bf16.msra.mxu0 %v1197
        %1774 = vmatprep.subr.bf16.mxu0 %v1196
        %1775 = vmatpush1.bf16.msra.mxu0 %v1195
        %1776 = vmatprep.subr.bf16.mxu0 %v1194
        %1777 = vmatpush1.bf16.msra.mxu0 %v1193
        %1778 = vmatprep.subr.bf16.mxu0 %v1192
        %1779 = vmatpush1.bf16.msra.mxu0 %v1191
        %1780 = vmatprep.subr.bf16.mxu0 %v1190
        %1781 = vmatpush1.bf16.msra.mxu0 %v1189
        %1782 = vmatprep.subr.bf16.mxu0 %v1188
        %1783 = vmatpush1.bf16.msra.mxu0 %v1187
        %1784 = vmatprep.subr.bf16.mxu0 %v1186
        %1785 = vmatpush1.bf16.msra.mxu0 %v1185
        %1786 = vmatprep.subr.bf16.mxu0 0
        %1787 = vmatpush2.bf16.msra.mxu0 0
        %1788 = vmatprep.subr.bf16.mxu0 0
        %1789 = vmatpush2.bf16.msra.mxu0 0
        %1790 = vmatprep.subr.bf16.mxu0 0
        %1791 = vmatpush2.bf16.msra.mxu0 0
        %1792 = vmatprep.subr.bf16.mxu0 0
        %1793 = vmatpush2.bf16.msra.mxu0 0
        %1794 = vmatprep.subr.bf16.mxu0 0
        %1795 = vmatpush2.bf16.msra.mxu0 0
        %1796 = vmatprep.subr.bf16.mxu0 0
        %1797 = vmatpush2.bf16.msra.mxu0 0
        %1798 = vmatprep.subr.bf16.mxu0 0
        %1799 = vmatpush2.bf16.msra.mxu0 0
        %1800 = vmatprep.subr.bf16.mxu0 0
        %1801 = vmatpush2.bf16.msra.mxu0 0
        %1802 = vmatprep.mubr.bf16.mxu0 0
        %1803 = vmatmul.mubr.bf16.gmra.mxu0 %v1769
        %v1804 = vpop.f32.mrf.mxu0
        %v1805 = vadd.f32 0.0, %v1804
        %v1806 = vpop.f32.mrf.mxu0
        %v1807 = vadd.f32 0.0, %v1806
        %v1808 = vpop.f32.mrf.mxu0
        %v1809 = vadd.f32 0.0, %v1808
        %v1810 = vpop.f32.mrf.mxu0
        %v1811 = vadd.f32 0.0, %v1810
        %1812 = vdwg.mxu0
        %v1813 = vmax.f32 %v1805, 0.0
        %v1814 = vmax.f32 %v1807, 0.0
        %v1815 = vmax.f32 %v1809, 0.0
        %v1816 = vmax.f32 %v1811, 0.0
        %v1817 = vpack.c.bf16 %v1815, %v1813
        %v1818 = vpack.c.bf16 %v1816, %v1814
        %1819 = vmatprep.subr.bf16.mxu0 0
        %1820 = vmatpush1.bf16.msra.mxu0 %v1337
        %1821 = vmatprep.subr.bf16.mxu0 0
        %1822 = vmatpush1.bf16.msra.mxu0 %v1336
        %1823 = vmatprep.subr.bf16.mxu0 0
        %1824 = vmatpush1.bf16.msra.mxu0 %v1335
        %1825 = vmatprep.subr.bf16.mxu0 0
        %1826 = vmatpush1.bf16.msra.mxu0 %v1334
        %1827 = vmatprep.subr.bf16.mxu0 0
        %1828 = vmatpush1.bf16.msra.mxu0 %v1333
        %1829 = vmatprep.subr.bf16.mxu0 0
        %1830 = vmatpush1.bf16.msra.mxu0 %v1332
        %1831 = vmatprep.subr.bf16.mxu0 0
        %1832 = vmatpush1.bf16.msra.mxu0 %v1331
        %1833 = vmatprep.subr.bf16.mxu0 0
        %1834 = vmatpush1.bf16.msra.mxu0 %v1330
        %1835 = vmatprep.subr.bf16.mxu0 0
        %1836 = vmatpush2.bf16.msra.mxu0 %v1345
        %1837 = vmatprep.subr.bf16.mxu0 0
        %1838 = vmatpush2.bf16.msra.mxu0 %v1344
        %1839 = vmatprep.subr.bf16.mxu0 0
        %1840 = vmatpush2.bf16.msra.mxu0 %v1343
        %1841 = vmatprep.subr.bf16.mxu0 0
        %1842 = vmatpush2.bf16.msra.mxu0 %v1342
        %1843 = vmatprep.subr.bf16.mxu0 0
        %1844 = vmatpush2.bf16.msra.mxu0 %v1341
        %1845 = vmatprep.subr.bf16.mxu0 0
        %1846 = vmatpush2.bf16.msra.mxu0 %v1340
        %1847 = vmatprep.subr.bf16.mxu0 0
        %1848 = vmatpush2.bf16.msra.mxu0 %v1339
        %1849 = vmatprep.subr.bf16.mxu0 0
        %1850 = vmatpush2.bf16.msra.mxu0 %v1338
        %1851 = vmatprep.mubr.bf16.mxu0 %v1818
        %1852 = vmatmul.mubr.bf16.gmra.mxu0 %v1817
        %v1853 = vpop.f32.mrf.mxu0
        %v1854 = vadd.f32 0.0, %v1853
        %v1855 = vpop.f32.mrf.mxu0
        %v1856 = vpop.f32.mrf.mxu0
        %v1857 = vadd.f32 0.0, %v1856
        %v1858 = vpop.f32.mrf.mxu0
        %1859 = vdwg.mxu0
        %v1860 = vadd.f32 %v1767, %v1854
        %v1861 = vadd.f32 %v1768, %v1857
        %v1862 = vpack.c.bf16 %v1861, %v1860
        %v1864 = vunpack.c.l.b16 %v1862
        %v1865 = vunpack.c.h.b16 %v1862
        %v1866 = vpack.c.b16 %v1864, %v1864
        %v1867 = vpack.c.b16 %v1865, %v1865
        %1870 = vst [vmem:[#allocation3 + $0x8] sm:$0xf] %v1866
        %1871 = vst [vmem:[#allocation3 + $0xc] sm:$0xf] %v1867
        %1872 = vmatprep.subr.bf16.mxu0 %v747
        %1873 = vmatpush1.bf16.msra.mxu0 %v746
        %1874 = vmatprep.subr.bf16.mxu0 %v745
        %1875 = vmatpush1.bf16.msra.mxu0 %v744
        %1876 = vmatprep.subr.bf16.mxu0 %v743
        %1877 = vmatpush1.bf16.msra.mxu0 %v742
        %1878 = vmatprep.subr.bf16.mxu0 %v741
        %1879 = vmatpush1.bf16.msra.mxu0 %v740
        %1880 = vmatprep.subr.bf16.mxu0 %v739
        %1881 = vmatpush1.bf16.msra.mxu0 %v738
        %1882 = vmatprep.subr.bf16.mxu0 %v737
        %1883 = vmatpush1.bf16.msra.mxu0 %v736
        %1884 = vmatprep.subr.bf16.mxu0 %v735
        %1885 = vmatpush1.bf16.msra.mxu0 %v734
        %1886 = vmatprep.subr.bf16.mxu0 %v733
        %1887 = vmatpush1.bf16.msra.mxu0 %v732
        %1888 = vmatprep.subr.bf16.mxu0 0
        %1889 = vmatpush2.bf16.msra.mxu0 0
        %1890 = vmatprep.subr.bf16.mxu0 0
        %1891 = vmatpush2.bf16.msra.mxu0 0
        %1892 = vmatprep.subr.bf16.mxu0 0
        %1893 = vmatpush2.bf16.msra.mxu0 0
        %1894 = vmatprep.subr.bf16.mxu0 0
        %1895 = vmatpush2.bf16.msra.mxu0 0
        %1896 = vmatprep.subr.bf16.mxu0 0
        %1897 = vmatpush2.bf16.msra.mxu0 0
        %1898 = vmatprep.subr.bf16.mxu0 0
        %1899 = vmatpush2.bf16.msra.mxu0 0
        %1900 = vmatprep.subr.bf16.mxu0 0
        %1901 = vmatpush2.bf16.msra.mxu0 0
        %1902 = vmatprep.subr.bf16.mxu0 0
        %1903 = vmatpush2.bf16.msra.mxu0 0
        %1904 = vmatprep.mubr.bf16.mxu0 0
        %1905 = vmatmul.mubr.bf16.gmra.mxu0 %v1862
        %v1906 = vpop.f32.mrf.mxu0
        %v1907 = vadd.f32 0.0, %v1906
        %v1908 = vpop.f32.mrf.mxu0
        %v1909 = vadd.f32 0.0, %v1908
        %v1910 = vpop.f32.mrf.mxu0
        %v1911 = vadd.f32 0.0, %v1910
        %v1912 = vpop.f32.mrf.mxu0
        %v1913 = vadd.f32 0.0, %v1912
        %1914 = vdwg.mxu0
        %v1915 = vpack.c.bf16 %v1911, %v1907
        %v1916 = vpack.c.bf16 %v1913, %v1909
        %v1919 = vunpack.c.l.b16 %v1915
        %v1920 = vunpack.c.l.b16 %v1916
        %v1921 = vunpack.c.h.b16 %v1915
        %v1922 = vunpack.c.h.b16 %v1916
        %v1923 = vpack.c.b16 %v1920, %v1919
        %v1924 = vpack.c.b16 %v1922, %v1921
        %1927 = vst [vmem:[#allocation2 + $0x10] sm:$0xff] %v1923
        %1928 = vst [vmem:[#allocation2 + $0x18] sm:$0xff] %v1924
        %v1929 = vadd.f32 %v1860, %v1861
        %v1930 = vrot.slane %v1929, 4
        %v1931 = vadd.f32 %v1929, %v1930
        %v1932 = vrot.slane %v1931, 2
        %v1933 = vadd.f32 %v1931, %v1932
        %v1934 = vrot.slane %v1933, 1
        %v1935 = vadd.f32 %v1933, %v1934
        %v1936 = vmul.f32 %v1935, %v1479
        %v1939 = vunpack.c.l.b16 %v673
        %v1940 = vunpack.c.l.b16 %v674
        %v1941 = vpack.c.b16 %v1940, %v1939
        %1943 = vmatprep.subr.bf16.mxu0 %v747
        %1944 = vmatpush1.bf16.msra.mxu0 %v746
        %1945 = vmatprep.subr.bf16.mxu0 %v745
        %1946 = vmatpush1.bf16.msra.mxu0 %v744
        %1947 = vmatprep.subr.bf16.mxu0 %v743
        %1948 = vmatpush1.bf16.msra.mxu0 %v742
        %1949 = vmatprep.subr.bf16.mxu0 %v741
        %1950 = vmatpush1.bf16.msra.mxu0 %v740
        %1951 = vmatprep.subr.bf16.mxu0 %v739
        %1952 = vmatpush1.bf16.msra.mxu0 %v738
        %1953 = vmatprep.subr.bf16.mxu0 %v737
        %1954 = vmatpush1.bf16.msra.mxu0 %v736
        %1955 = vmatprep.subr.bf16.mxu0 %v735
        %1956 = vmatpush1.bf16.msra.mxu0 %v734
        %1957 = vmatprep.subr.bf16.mxu0 %v733
        %1958 = vmatpush1.bf16.msra.mxu0 %v732
        %1959 = vmatprep.subr.bf16.mxu0 0
        %1960 = vmatpush2.bf16.msra.mxu0 0
        %1961 = vmatprep.subr.bf16.mxu0 0
        %1962 = vmatpush2.bf16.msra.mxu0 0
        %1963 = vmatprep.subr.bf16.mxu0 0
        %1964 = vmatpush2.bf16.msra.mxu0 0
        %1965 = vmatprep.subr.bf16.mxu0 0
        %1966 = vmatpush2.bf16.msra.mxu0 0
        %1967 = vmatprep.subr.bf16.mxu0 0
        %1968 = vmatpush2.bf16.msra.mxu0 0
        %1969 = vmatprep.subr.bf16.mxu0 0
        %1970 = vmatpush2.bf16.msra.mxu0 0
        %1971 = vmatprep.subr.bf16.mxu0 0
        %1972 = vmatpush2.bf16.msra.mxu0 0
        %1973 = vmatprep.subr.bf16.mxu0 0
        %1974 = vmatpush2.bf16.msra.mxu0 0
        %1975 = vmatprep.mubr.bf16.mxu0 0
        %1976 = vmatmul.mubr.bf16.gmra.mxu0 %v1941
        %v1977 = vpop.f32.mrf.mxu0
        %v1978 = vadd.f32 0.0, %v1977
        %v1979 = vpop.f32.mrf.mxu0
        %v1980 = vadd.f32 0.0, %v1979
        %v1981 = vpop.f32.mrf.mxu0
        %v1982 = vadd.f32 0.0, %v1981
        %v1983 = vpop.f32.mrf.mxu0
        %v1984 = vadd.f32 0.0, %v1983
        %1985 = vdwg.mxu0
        %v1986 = vpack.c.bf16 %v1982, %v1978
        %v1987 = vpack.c.bf16 %v1984, %v1980
        %v1990 = vunpack.c.l.b16 %v1986
        %v1991 = vunpack.c.l.b16 %v1987
        %v1992 = vunpack.c.h.b16 %v1986
        %v1993 = vunpack.c.h.b16 %v1987
        %v1994 = vpack.c.b16 %v1991, %v1990
        %v1995 = vpack.c.b16 %v1993, %v1992
        %1998 = vst [vmem:[#allocation2 + $0x20] sm:$0xff] %v1994
        %1999 = vst [vmem:[#allocation2 + $0x28] sm:$0xff] %v1995
        %2000 = vmatprep.subr.bf16.mxu0 0
        %2001 = vmatpush1.bf16.msra.mxu0 %v860
        %2002 = vmatprep.subr.bf16.mxu0 0
        %2003 = vmatpush1.bf16.msra.mxu0 %v859
        %2004 = vmatprep.subr.bf16.mxu0 0
        %2005 = vmatpush1.bf16.msra.mxu0 %v858
        %2006 = vmatprep.subr.bf16.mxu0 0
        %2007 = vmatpush1.bf16.msra.mxu0 %v857
        %2008 = vmatprep.subr.bf16.mxu0 0
        %2009 = vmatpush1.bf16.msra.mxu0 %v856
        %2010 = vmatprep.subr.bf16.mxu0 0
        %2011 = vmatpush1.bf16.msra.mxu0 %v855
        %2012 = vmatprep.subr.bf16.mxu0 0
        %2013 = vmatpush1.bf16.msra.mxu0 %v854
        %2014 = vmatprep.subr.bf16.mxu0 0
        %2015 = vmatpush1.bf16.msra.mxu0 %v853
        %2016 = vmatprep.subr.bf16.mxu0 0
        %2017 = vmatpush2.bf16.msra.mxu0 0
        %2018 = vmatprep.subr.bf16.mxu0 0
        %2019 = vmatpush2.bf16.msra.mxu0 0
        %2020 = vmatprep.subr.bf16.mxu0 0
        %2021 = vmatpush2.bf16.msra.mxu0 0
        %2022 = vmatprep.subr.bf16.mxu0 0
        %2023 = vmatpush2.bf16.msra.mxu0 0
        %2024 = vmatprep.subr.bf16.mxu0 0
        %2025 = vmatpush2.bf16.msra.mxu0 0
        %2026 = vmatprep.subr.bf16.mxu0 0
        %2027 = vmatpush2.bf16.msra.mxu0 0
        %2028 = vmatprep.subr.bf16.mxu0 0
        %2029 = vmatpush2.bf16.msra.mxu0 0
        %2030 = vmatprep.subr.bf16.mxu0 0
        %2031 = vmatpush2.bf16.msra.mxu0 0
        %2032 = vmatprep.mubr.bf16.mxu0 0
        %2033 = vmatmul.mubr.bf16.gmra.mxu0 %v1941
        %v2034 = vpop.f32.mrf.mxu0
        %v2035 = vadd.f32 0.0, %v2034
        %v2036 = vpop.f32.mrf.mxu0
        %v2037 = vpop.f32.mrf.mxu0
        %v2038 = vadd.f32 0.0, %v2037
        %v2039 = vpop.f32.mrf.mxu0
        %2040 = vdwg.mxu0
        %v2041 = vld [vmem:[#allocation2] sm:$0xff]
        %v2042 = vld [vmem:[#allocation2 + $0x8] sm:$0xff]
        %v2043 = vld [vmem:[#allocation2 + $0x10] sm:$0xff]
        %v2044 = vld [vmem:[#allocation2 + $0x18] sm:$0xff]
        %v2045 = vld [vmem:[#allocation2 + $0x20] sm:$0xff]
        %v2046 = vld [vmem:[#allocation2 + $0x28] sm:$0xff]
        %v2047 = vpack.c.bf16 %v2038, %v2035
        %v2054 = vunpack.c.l.b16 %v2041
        %v2055 = vunpack.c.l.b16 %v2042
        %v2056 = vunpack.c.l.b16 %v2043
        %v2057 = vunpack.c.l.b16 %v2044
        %v2058 = vunpack.c.l.b16 %v2045
        %v2059 = vunpack.c.l.b16 %v2046
        %v2060 = vpack.c.b16 %v2055, %v2054
        %v2061 = vpack.c.b16 %v2057, %v2056
        %v2062 = vpack.c.b16 %v2059, %v2058
        %2066 = vmatprep.subr.bf16.mxu0 0
        %2067 = vmatpush1.bf16.xpose.msra.mxu0 0
        %2068 = vmatprep.subr.bf16.mxu0 0
        %2069 = vmatpush1.bf16.xpose.msra.mxu0 0
        %2070 = vmatprep.subr.bf16.mxu0 0
        %2071 = vmatpush1.bf16.xpose.msra.mxu0 0
        %2072 = vmatprep.subr.bf16.mxu0 0
        %2073 = vmatpush1.bf16.xpose.msra.mxu0 0
        %2074 = vmatprep.subr.bf16.mxu0 0
        %2075 = vmatpush1.bf16.xpose.msra.mxu0 0
        %2076 = vmatprep.subr.bf16.mxu0 0
        %2077 = vmatpush1.bf16.xpose.msra.mxu0 %v2062
        %2078 = vmatprep.subr.bf16.mxu0 0
        %2079 = vmatpush1.bf16.xpose.msra.mxu0 %v2061
        %2080 = vmatprep.subr.bf16.mxu0 0
        %2081 = vmatpush1.bf16.xpose.msra.mxu0 %v2060
        %2082 = vmatprep.subr.bf16.mxu0 0
        %2083 = vmatpush2.bf16.xpose.msra.mxu0 0
        %2084 = vmatprep.subr.bf16.mxu0 0
        %2085 = vmatpush2.bf16.xpose.msra.mxu0 0
        %2086 = vmatprep.subr.bf16.mxu0 0
        %2087 = vmatpush2.bf16.xpose.msra.mxu0 0
        %2088 = vmatprep.subr.bf16.mxu0 0
        %2089 = vmatpush2.bf16.xpose.msra.mxu0 0
        %2090 = vmatprep.subr.bf16.mxu0 0
        %2091 = vmatpush2.bf16.xpose.msra.mxu0 0
        %2092 = vmatprep.subr.bf16.mxu0 0
        %2093 = vmatpush2.bf16.xpose.msra.mxu0 0
        %2094 = vmatprep.subr.bf16.mxu0 0
        %2095 = vmatpush2.bf16.xpose.msra.mxu0 0
        %2096 = vmatprep.subr.bf16.mxu0 0
        %2097 = vmatpush2.bf16.xpose.msra.mxu0 0
        %2098 = vmatprep.mubr.bf16.mxu0 0
        %2099 = vmatmul.mubr.bf16.gmra.mxu0 %v2047
        %v2100 = vpop.f32.mrf.mxu0
        %v2101 = vadd.f32 0.0, %v2100
        %v2102 = vpop.f32.mrf.mxu0
        %v2103 = vpop.f32.mrf.mxu0
        %v2104 = vadd.f32 0.0, %v2103
        %v2105 = vpop.f32.mrf.mxu0
        %2106 = vdwg.mxu0
        %v2107 = vmul.f32 %v2101, 0.088388346
        %v2108 = vmul.f32 %v2104, 0.088388346
        %v2109 = vadd.f32 %v2107, %v966
        %v2110 = vadd.f32 %v2108, %v966
        %vm2111 = vcmask 392192
        %v2112 = vsel %vm2111, %v2109, -inf
        %2113 = vmax.xlane.f32.xlu0 %v2112
        %v2114 = vpop.xlane.xlu0 %2113
        %v2115 = vsel %vm2111, %v2110, -inf
        %2116 = vmax.xlane.f32.xlu0 %v2115
        %v2117 = vpop.xlane.xlu0 %2116
        %v2118 = vsub.f32 %v2109, %v2114
        %v2119 = vsub.f32 %v2110, %v2117
        %v2120 = vmul.f32 %v2118, 1.442695
        %v2121 = vpow.pop %v2120
        %v2122 = vmul.f32 %v2119, 1.442695
        %v2123 = vpow.pop %v2122
        %v2124 = vsel %vm2111, %v2121, 0.0
        %2125 = vadd.xlane.f32.xlu0 %v2124
        %v2126 = vpop.xlane.xlu0 %2125
        %v2127 = vsel %vm2111, %v2123, 0.0
        %2128 = vadd.xlane.f32.xlu0 %v2127
        %v2129 = vpop.xlane.xlu0 %2128
        %v2130 = vrcp.pop %v2126
        %v2131 = vrcp.pop %v2129
        %v2132 = vmul.f32 %v2121, %v2130
        %v2133 = vmul.f32 %v2123, %v2131
        %v2134 = vpack.c.bf16 %v2133, %v2132
        %v2135 = vunpack.c.h.b16 %v2041
        %v2136 = vunpack.c.h.b16 %v2042
        %v2137 = vunpack.c.h.b16 %v2043
        %v2138 = vunpack.c.h.b16 %v2044
        %v2139 = vunpack.c.h.b16 %v2045
        %v2140 = vunpack.c.h.b16 %v2046
        %v2141 = vpack.c.b16 %v2136, %v2135
        %v2142 = vpack.c.b16 %v2138, %v2137
        %v2143 = vpack.c.b16 %v2140, %v2139
        %v2148 = vsel %vm2111, %v2134, 0
        %2150 = vmatprep.subr.bf16.mxu0 0
        %2151 = vmatpush1.bf16.msra.mxu0 0
        %2152 = vmatprep.subr.bf16.mxu0 0
        %2153 = vmatpush1.bf16.msra.mxu0 0
        %2154 = vmatprep.subr.bf16.mxu0 0
        %2155 = vmatpush1.bf16.msra.mxu0 0
        %2156 = vmatprep.subr.bf16.mxu0 0
        %2157 = vmatpush1.bf16.msra.mxu0 0
        %2158 = vmatprep.subr.bf16.mxu0 0
        %2159 = vmatpush1.bf16.msra.mxu0 0
        %2160 = vmatprep.subr.bf16.mxu0 0
        %2161 = vmatpush1.bf16.msra.mxu0 %v2143
        %2162 = vmatprep.subr.bf16.mxu0 0
        %2163 = vmatpush1.bf16.msra.mxu0 %v2142
        %2164 = vmatprep.subr.bf16.mxu0 0
        %2165 = vmatpush1.bf16.msra.mxu0 %v2141
        %2166 = vmatprep.subr.bf16.mxu0 0
        %2167 = vmatpush2.bf16.msra.mxu0 0
        %2168 = vmatprep.subr.bf16.mxu0 0
        %2169 = vmatpush2.bf16.msra.mxu0 0
        %2170 = vmatprep.subr.bf16.mxu0 0
        %2171 = vmatpush2.bf16.msra.mxu0 0
        %2172 = vmatprep.subr.bf16.mxu0 0
        %2173 = vmatpush2.bf16.msra.mxu0 0
        %2174 = vmatprep.subr.bf16.mxu0 0
        %2175 = vmatpush2.bf16.msra.mxu0 0
        %2176 = vmatprep.subr.bf16.mxu0 0
        %2177 = vmatpush2.bf16.msra.mxu0 0
        %2178 = vmatprep.subr.bf16.mxu0 0
        %2179 = vmatpush2.bf16.msra.mxu0 0
        %2180 = vmatprep.subr.bf16.mxu0 0
        %2181 = vmatpush2.bf16.msra.mxu0 0
        %2182 = vmatprep.mubr.bf16.mxu0 0
        %2183 = vmatmul.mubr.bf16.gmra.mxu0 %v2148
        %v2184 = vpop.f32.mrf.mxu0
        %v2185 = vadd.f32 0.0, %v2184
        %v2186 = vpop.f32.mrf.mxu0
        %v2187 = vpop.f32.mrf.mxu0
        %v2188 = vadd.f32 0.0, %v2187
        %v2189 = vpop.f32.mrf.mxu0
        %2190 = vdwg.mxu0
        %v2191 = vunpack.c.l.bf16 %v673
        %v2192 = vunpack.c.l.bf16 %v674
        %v2193 = vpack.c.bf16 %v2188, %v2185
        %2194 = vmatprep.subr.bf16.mxu0 0
        %2195 = vmatpush1.bf16.msra.mxu0 %v1084
        %2196 = vmatprep.subr.bf16.mxu0 0
        %2197 = vmatpush1.bf16.msra.mxu0 %v1083
        %2198 = vmatprep.subr.bf16.mxu0 0
        %2199 = vmatpush1.bf16.msra.mxu0 %v1082
        %2200 = vmatprep.subr.bf16.mxu0 0
        %2201 = vmatpush1.bf16.msra.mxu0 %v1081
        %2202 = vmatprep.subr.bf16.mxu0 0
        %2203 = vmatpush1.bf16.msra.mxu0 %v1080
        %2204 = vmatprep.subr.bf16.mxu0 0
        %2205 = vmatpush1.bf16.msra.mxu0 %v1079
        %2206 = vmatprep.subr.bf16.mxu0 0
        %2207 = vmatpush1.bf16.msra.mxu0 %v1078
        %2208 = vmatprep.subr.bf16.mxu0 0
        %2209 = vmatpush1.bf16.msra.mxu0 %v1077
        %2210 = vmatprep.subr.bf16.mxu0 0
        %2211 = vmatpush2.bf16.msra.mxu0 0
        %2212 = vmatprep.subr.bf16.mxu0 0
        %2213 = vmatpush2.bf16.msra.mxu0 0
        %2214 = vmatprep.subr.bf16.mxu0 0
        %2215 = vmatpush2.bf16.msra.mxu0 0
        %2216 = vmatprep.subr.bf16.mxu0 0
        %2217 = vmatpush2.bf16.msra.mxu0 0
        %2218 = vmatprep.subr.bf16.mxu0 0
        %2219 = vmatpush2.bf16.msra.mxu0 0
        %2220 = vmatprep.subr.bf16.mxu0 0
        %2221 = vmatpush2.bf16.msra.mxu0 0
        %2222 = vmatprep.subr.bf16.mxu0 0
        %2223 = vmatpush2.bf16.msra.mxu0 0
        %2224 = vmatprep.subr.bf16.mxu0 0
        %2225 = vmatpush2.bf16.msra.mxu0 0
        %2226 = vmatprep.mubr.bf16.mxu0 0
        %2227 = vmatmul.mubr.bf16.gmra.mxu0 %v2193
        %v2228 = vpop.f32.mrf.mxu0
        %v2229 = vadd.f32 0.0, %v2228
        %v2230 = vpop.f32.mrf.mxu0
        %v2231 = vpop.f32.mrf.mxu0
        %v2232 = vadd.f32 0.0, %v2231
        %v2233 = vpop.f32.mrf.mxu0
        %2234 = vdwg.mxu0
        %v2235 = vadd.f32 %v2191, %v2229
        %v2236 = vadd.f32 %v2192, %v2232
        %v2237 = vpack.c.bf16 %v2236, %v2235
        %2238 = vmatprep.subr.bf16.mxu0 %v1200
        %2239 = vmatpush1.bf16.msra.mxu0 %v1199
        %2240 = vmatprep.subr.bf16.mxu0 %v1198
        %2241 = vmatpush1.bf16.msra.mxu0 %v1197
        %2242 = vmatprep.subr.bf16.mxu0 %v1196
        %2243 = vmatpush1.bf16.msra.mxu0 %v1195
        %2244 = vmatprep.subr.bf16.mxu0 %v1194
        %2245 = vmatpush1.bf16.msra.mxu0 %v1193
        %2246 = vmatprep.subr.bf16.mxu0 %v1192
        %2247 = vmatpush1.bf16.msra.mxu0 %v1191
        %2248 = vmatprep.subr.bf16.mxu0 %v1190
        %2249 = vmatpush1.bf16.msra.mxu0 %v1189
        %2250 = vmatprep.subr.bf16.mxu0 %v1188
        %2251 = vmatpush1.bf16.msra.mxu0 %v1187
        %2252 = vmatprep.subr.bf16.mxu0 %v1186
        %2253 = vmatpush1.bf16.msra.mxu0 %v1185
        %2254 = vmatprep.subr.bf16.mxu0 0
        %2255 = vmatpush2.bf16.msra.mxu0 0
        %2256 = vmatprep.subr.bf16.mxu0 0
        %2257 = vmatpush2.bf16.msra.mxu0 0
        %2258 = vmatprep.subr.bf16.mxu0 0
        %2259 = vmatpush2.bf16.msra.mxu0 0
        %2260 = vmatprep.subr.bf16.mxu0 0
        %2261 = vmatpush2.bf16.msra.mxu0 0
        %2262 = vmatprep.subr.bf16.mxu0 0
        %2263 = vmatpush2.bf16.msra.mxu0 0
        %2264 = vmatprep.subr.bf16.mxu0 0
        %2265 = vmatpush2.bf16.msra.mxu0 0
        %2266 = vmatprep.subr.bf16.mxu0 0
        %2267 = vmatpush2.bf16.msra.mxu0 0
        %2268 = vmatprep.subr.bf16.mxu0 0
        %2269 = vmatpush2.bf16.msra.mxu0 0
        %2270 = vmatprep.mubr.bf16.mxu0 0
        %2271 = vmatmul.mubr.bf16.gmra.mxu0 %v2237
        %v2272 = vpop.f32.mrf.mxu0
        %v2273 = vadd.f32 0.0, %v2272
        %v2274 = vpop.f32.mrf.mxu0
        %v2275 = vadd.f32 0.0, %v2274
        %v2276 = vpop.f32.mrf.mxu0
        %v2277 = vadd.f32 0.0, %v2276
        %v2278 = vpop.f32.mrf.mxu0
        %v2279 = vadd.f32 0.0, %v2278
        %2280 = vdwg.mxu0
        %v2281 = vmax.f32 %v2273, 0.0
        %v2282 = vmax.f32 %v2275, 0.0
        %v2283 = vmax.f32 %v2277, 0.0
        %v2284 = vmax.f32 %v2279, 0.0
        %v2285 = vpack.c.bf16 %v2283, %v2281
        %v2286 = vpack.c.bf16 %v2284, %v2282
        %2287 = vmatprep.subr.bf16.mxu0 0
        %2288 = vmatpush1.bf16.msra.mxu0 %v1337
        %2289 = vmatprep.subr.bf16.mxu0 0
        %2290 = vmatpush1.bf16.msra.mxu0 %v1336
        %2291 = vmatprep.subr.bf16.mxu0 0
        %2292 = vmatpush1.bf16.msra.mxu0 %v1335
        %2293 = vmatprep.subr.bf16.mxu0 0
        %2294 = vmatpush1.bf16.msra.mxu0 %v1334
        %2295 = vmatprep.subr.bf16.mxu0 0
        %2296 = vmatpush1.bf16.msra.mxu0 %v1333
        %2297 = vmatprep.subr.bf16.mxu0 0
        %2298 = vmatpush1.bf16.msra.mxu0 %v1332
        %2299 = vmatprep.subr.bf16.mxu0 0
        %2300 = vmatpush1.bf16.msra.mxu0 %v1331
        %2301 = vmatprep.subr.bf16.mxu0 0
        %2302 = vmatpush1.bf16.msra.mxu0 %v1330
        %2303 = vmatprep.subr.bf16.mxu0 0
        %2304 = vmatpush2.bf16.msra.mxu0 %v1345
        %2305 = vmatprep.subr.bf16.mxu0 0
        %2306 = vmatpush2.bf16.msra.mxu0 %v1344
        %2307 = vmatprep.subr.bf16.mxu0 0
        %2308 = vmatpush2.bf16.msra.mxu0 %v1343
        %2309 = vmatprep.subr.bf16.mxu0 0
        %2310 = vmatpush2.bf16.msra.mxu0 %v1342
        %2311 = vmatprep.subr.bf16.mxu0 0
        %2312 = vmatpush2.bf16.msra.mxu0 %v1341
        %2313 = vmatprep.subr.bf16.mxu0 0
        %2314 = vmatpush2.bf16.msra.mxu0 %v1340
        %2315 = vmatprep.subr.bf16.mxu0 0
        %2316 = vmatpush2.bf16.msra.mxu0 %v1339
        %2317 = vmatprep.subr.bf16.mxu0 0
        %2318 = vmatpush2.bf16.msra.mxu0 %v1338
        %2319 = vmatprep.mubr.bf16.mxu0 %v2286
        %2320 = vmatmul.mubr.bf16.gmra.mxu0 %v2285
        %v2321 = vpop.f32.mrf.mxu0
        %v2322 = vadd.f32 0.0, %v2321
        %v2323 = vpop.f32.mrf.mxu0
        %v2324 = vpop.f32.mrf.mxu0
        %v2325 = vadd.f32 0.0, %v2324
        %v2326 = vpop.f32.mrf.mxu0
        %2327 = vdwg.mxu0
        %v2328 = vadd.f32 %v2235, %v2322
        %v2329 = vadd.f32 %v2236, %v2325
        %v2330 = vpack.c.bf16 %v2329, %v2328
        %v2332 = vunpack.c.l.b16 %v2330
        %v2333 = vunpack.c.h.b16 %v2330
        %v2334 = vpack.c.b16 %v2332, %v2332
        %v2335 = vpack.c.b16 %v2333, %v2333
        %2338 = vst [vmem:[#allocation3 + $0x10] sm:$0xf] %v2334
        %2339 = vst [vmem:[#allocation3 + $0x14] sm:$0xf] %v2335
        %v2340 = vld [vmem:[%s381] sm:$0xf]
        %vm2341 = vcmask 1040384
        %v2342 = vsel %vm2341, %v1480, %v1936
        %v2343 = vpack.c.bf16 %v2342, %v2342
        %v2345 = vunpack.c.l.b16 %v2340
        %v2346 = vpack.c.b16 %v2345, %v2345
        %v2347 = vrot.slane %v2346, 7
        %v2350 = vsel %vm2341, %v2343, %v2347
        %v2368 = vunpack.c.l.b16 %v477
        %v2369 = vunpack.c.h.b16 %v477
        %v2370 = vunpack.c.l.b16 %v478
        %v2371 = vunpack.c.h.b16 %v478
        %v2372 = vunpack.c.l.b16 %v479
        %v2373 = vunpack.c.h.b16 %v479
        %v2374 = vunpack.c.l.b16 %v480
        %v2375 = vunpack.c.h.b16 %v480
        %v2376 = vunpack.c.l.b16 %v481
        %v2377 = vunpack.c.h.b16 %v481
        %v2378 = vunpack.c.l.b16 %v482
        %v2379 = vunpack.c.h.b16 %v482
        %v2380 = vunpack.c.l.b16 %v483
        %v2381 = vunpack.c.h.b16 %v483
        %v2382 = vunpack.c.l.b16 %v484
        %v2383 = vunpack.c.h.b16 %v484
        %v2384 = vunpack.c.l.b16 %v485
        %v2385 = vunpack.c.h.b16 %v485
        %v2386 = vunpack.c.l.b16 %v486
        %v2387 = vunpack.c.h.b16 %v486
        %v2388 = vunpack.c.l.b16 %v487
        %v2389 = vunpack.c.h.b16 %v487
        %v2390 = vunpack.c.l.b16 %v488
        %v2391 = vunpack.c.h.b16 %v488
        %v2392 = vunpack.c.l.b16 %v489
        %v2393 = vunpack.c.h.b16 %v489
        %v2394 = vunpack.c.l.b16 %v490
        %v2395 = vunpack.c.h.b16 %v490
        %v2396 = vunpack.c.l.b16 %v491
        %v2397 = vunpack.c.h.b16 %v491
        %v2398 = vunpack.c.l.b16 %v492
        %v2399 = vunpack.c.h.b16 %v492
        %v2400 = vpack.c.b16 %v2370, %v2368
        %v2401 = vpack.c.b16 %v2371, %v2369
        %v2402 = vpack.c.b16 %v2374, %v2372
        %v2403 = vpack.c.b16 %v2375, %v2373
        %v2404 = vpack.c.b16 %v2378, %v2376
        %v2405 = vpack.c.b16 %v2379, %v2377
        %v2406 = vpack.c.b16 %v2382, %v2380
        %v2407 = vpack.c.b16 %v2383, %v2381
        %v2408 = vpack.c.b16 %v2386, %v2384
        %v2409 = vpack.c.b16 %v2387, %v2385
        %v2410 = vpack.c.b16 %v2390, %v2388
        %v2411 = vpack.c.b16 %v2391, %v2389
        %v2412 = vpack.c.b16 %v2394, %v2392
        %v2413 = vpack.c.b16 %v2395, %v2393
        %v2414 = vpack.c.b16 %v2398, %v2396
        %v2415 = vpack.c.b16 %v2399, %v2397
        %2432 = vmatprep.subr.bf16.mxu0 %v2415
        %2433 = vmatpush1.bf16.msra.mxu0 %v2414
        %2434 = vmatprep.subr.bf16.mxu0 %v2413
        %2435 = vmatpush1.bf16.msra.mxu0 %v2412
        %2436 = vmatprep.subr.bf16.mxu0 %v2411
        %2437 = vmatpush1.bf16.msra.mxu0 %v2410
        %2438 = vmatprep.subr.bf16.mxu0 %v2409
        %2439 = vmatpush1.bf16.msra.mxu0 %v2408
        %2440 = vmatprep.subr.bf16.mxu0 %v2407
        %2441 = vmatpush1.bf16.msra.mxu0 %v2406
        %2442 = vmatprep.subr.bf16.mxu0 %v2405
        %2443 = vmatpush1.bf16.msra.mxu0 %v2404
        %2444 = vmatprep.subr.bf16.mxu0 %v2403
        %2445 = vmatpush1.bf16.msra.mxu0 %v2402
        %2446 = vmatprep.subr.bf16.mxu0 %v2401
        %2447 = vmatpush1.bf16.msra.mxu0 %v2400
        %2448 = vmatprep.subr.bf16.mxu0 0
        %2449 = vmatpush2.bf16.msra.mxu0 0
        %2450 = vmatprep.subr.bf16.mxu0 0
        %2451 = vmatpush2.bf16.msra.mxu0 0
        %2452 = vmatprep.subr.bf16.mxu0 0
        %2453 = vmatpush2.bf16.msra.mxu0 0
        %2454 = vmatprep.subr.bf16.mxu0 0
        %2455 = vmatpush2.bf16.msra.mxu0 0
        %2456 = vmatprep.subr.bf16.mxu0 0
        %2457 = vmatpush2.bf16.msra.mxu0 0
        %2458 = vmatprep.subr.bf16.mxu0 0
        %2459 = vmatpush2.bf16.msra.mxu0 0
        %2460 = vmatprep.subr.bf16.mxu0 0
        %2461 = vmatpush2.bf16.msra.mxu0 0
        %2462 = vmatprep.subr.bf16.mxu0 0
        %2463 = vmatpush2.bf16.msra.mxu0 0
        %2464 = vmatprep.mubr.bf16.mxu0 0
        %2465 = vmatmul.mubr.bf16.gmra.mxu0 %v2350
        %v2466 = vpop.f32.mrf.mxu0
        %v2467 = vadd.f32 0.0, %v2466
        %v2468 = vpop.f32.mrf.mxu0
        %v2469 = vadd.f32 0.0, %v2468
        %v2470 = vpop.f32.mrf.mxu0
        %v2471 = vadd.f32 0.0, %v2470
        %v2472 = vpop.f32.mrf.mxu0
        %v2473 = vadd.f32 0.0, %v2472
        %2474 = vdwg.mxu0
        %v2475 = vlaneseq
        %v2476 = vshrl.u32 %v2475, 7
        %v2477 = vsub.s32 0, %v2476
        %v2478 = vrot.slane %v2467, %v2477
        %v2479 = vlaneseq
        %v2480 = vshrl.u32 %v2479, 7
        %v2481 = vsub.s32 0, %v2480
        %v2482 = vrot.slane %v2469, %v2481
        %v2483 = vlaneseq
        %v2484 = vshrl.u32 %v2483, 7
        %v2485 = vsub.s32 1, %v2484
        %v2486 = vrot.slane %v2467, %v2485
        %v2487 = vlaneseq
        %v2488 = vshrl.u32 %v2487, 7
        %v2489 = vsub.s32 1, %v2488
        %v2490 = vrot.slane %v2469, %v2489
        %vm2495 = vcmask 1045504
        %v2496 = vrot.slane %v2467, 2
        %v2497 = vrot.slane %v2471, 2
        %v2498 = vsel %vm2495, %v2496, %v2497
        %v2499 = vrot.slane %v2469, 2
        %v2500 = vrot.slane %v2473, 2
        %v2501 = vsel %vm2495, %v2499, %v2500
        %v2520 = vunpack.c.l.b16 %v461
        %v2521 = vunpack.c.l.b16 %v462
        %v2522 = vunpack.c.l.b16 %v463
        %v2523 = vunpack.c.l.b16 %v464
        %v2524 = vunpack.c.l.b16 %v465
        %v2525 = vunpack.c.l.b16 %v466
        %v2526 = vunpack.c.l.b16 %v467
        %v2527 = vunpack.c.l.b16 %v468
        %v2528 = vunpack.c.l.b16 %v469
        %v2529 = vunpack.c.l.b16 %v470
        %v2530 = vunpack.c.l.b16 %v471
        %v2531 = vunpack.c.l.b16 %v472
        %v2532 = vunpack.c.l.b16 %v473
        %v2533 = vunpack.c.l.b16 %v474
        %v2534 = vunpack.c.l.b16 %v475
        %v2535 = vunpack.c.l.b16 %v476
        %v2536 = vpack.c.b16 %v2521, %v2520
        %v2537 = vpack.c.b16 %v2523, %v2522
        %v2538 = vpack.c.b16 %v2525, %v2524
        %v2539 = vpack.c.b16 %v2527, %v2526
        %v2540 = vpack.c.b16 %v2529, %v2528
        %v2541 = vpack.c.b16 %v2531, %v2530
        %v2542 = vpack.c.b16 %v2533, %v2532
        %v2543 = vpack.c.b16 %v2535, %v2534
        %2552 = vmatprep.subr.bf16.mxu0 0
        %2553 = vmatpush1.bf16.msra.mxu0 %v2543
        %2554 = vmatprep.subr.bf16.mxu0 0
        %2555 = vmatpush1.bf16.msra.mxu0 %v2542
        %2556 = vmatprep.subr.bf16.mxu0 0
        %2557 = vmatpush1.bf16.msra.mxu0 %v2541
        %2558 = vmatprep.subr.bf16.mxu0 0
        %2559 = vmatpush1.bf16.msra.mxu0 %v2540
        %2560 = vmatprep.subr.bf16.mxu0 0
        %2561 = vmatpush1.bf16.msra.mxu0 %v2539
        %2562 = vmatprep.subr.bf16.mxu0 0
        %2563 = vmatpush1.bf16.msra.mxu0 %v2538
        %2564 = vmatprep.subr.bf16.mxu0 0
        %2565 = vmatpush1.bf16.msra.mxu0 %v2537
        %2566 = vmatprep.subr.bf16.mxu0 0
        %2567 = vmatpush1.bf16.msra.mxu0 %v2536
        %2568 = vmatprep.subr.bf16.mxu0 0
        %2569 = vmatpush2.bf16.msra.mxu0 0
        %2570 = vmatprep.subr.bf16.mxu0 0
        %2571 = vmatpush2.bf16.msra.mxu0 0
        %2572 = vmatprep.subr.bf16.mxu0 0
        %2573 = vmatpush2.bf16.msra.mxu0 0
        %2574 = vmatprep.subr.bf16.mxu0 0
        %2575 = vmatpush2.bf16.msra.mxu0 0
        %2576 = vmatprep.subr.bf16.mxu0 0
        %2577 = vmatpush2.bf16.msra.mxu0 0
        %2578 = vmatprep.subr.bf16.mxu0 0
        %2579 = vmatpush2.bf16.msra.mxu0 0
        %2580 = vmatprep.subr.bf16.mxu0 0
        %2581 = vmatpush2.bf16.msra.mxu0 0
        %2582 = vmatprep.subr.bf16.mxu0 0
        %2583 = vmatpush2.bf16.msra.mxu0 0
        %2584 = vmatprep.mubr.bf16.mxu0 0
        %2585 = vmatmul.mubr.bf16.gmra.mxu0 %v2340
        %v2586 = vpop.f32.mrf.mxu0
        %v2587 = vadd.f32 0.0, %v2586
        %v2588 = vpop.f32.mrf.mxu0
        %v2589 = vpop.f32.mrf.mxu0
        %v2590 = vpop.f32.mrf.mxu0
        %2591 = vdwg.mxu0
        %v2592 = vld [vmem:[%s384] sm:$0x1]
        %v2593 = vsub.f32 1.0, %v2592
        %v2594 = vmul.f32 %v2593, -1e+09
        %v2595 = vlaneseq
        %v2596 = vshrl.u32 %v2595, 7
        %v2597 = vlaneseq
        %v2598 = vand.u32 %v2597, 127
        %v2599 = vadd.s32 %v2596, 16
        %vm2600 = vcmp.le.s32.totalorder %v2598, %v2599
        %v2601 = vsel %vm2600, 0.0, -1e+09
        %v2603 = vlaneseq
        %v2604 = vshrl.u32 %v2603, 7
        %v2605 = vsub.s32 0, %v2604
        %v2606 = vrot.slane %v2594, %v2605
        %v2608 = vadd.f32 %v2606, %v2601
        %v2609 = vpack.c.bf16 %v2587, %v2587
        %v2610 = vpack.c.bf16 %v2486, %v2478
        %v2611 = vpack.c.bf16 %v2498, %v2498
        %2612 = vmatprep.subr.bf16.mxu0 0
        %2613 = vmatpush1.bf16.xpose.msra.mxu0 0
        %2614 = vmatprep.subr.bf16.mxu0 0
        %2615 = vmatpush1.bf16.xpose.msra.mxu0 0
        %2616 = vmatprep.subr.bf16.mxu0 0
        %2617 = vmatpush1.bf16.xpose.msra.mxu0 0
        %2618 = vmatprep.subr.bf16.mxu0 0
        %2619 = vmatpush1.bf16.xpose.msra.mxu0 0
        %2620 = vmatprep.subr.bf16.mxu0 0
        %2621 = vmatpush1.bf16.xpose.msra.mxu0 0
        %2622 = vmatprep.subr.bf16.mxu0 0
        %2623 = vmatpush1.bf16.xpose.msra.mxu0 0
        %2624 = vmatprep.subr.bf16.mxu0 0
        %2625 = vmatpush1.bf16.xpose.msra.mxu0 %v2611
        %2626 = vmatprep.subr.bf16.mxu0 0
        %2627 = vmatpush1.bf16.xpose.msra.mxu0 %v2610
        %2628 = vmatprep.subr.bf16.mxu0 0
        %2629 = vmatpush2.bf16.xpose.msra.mxu0 0
        %2630 = vmatprep.subr.bf16.mxu0 0
        %2631 = vmatpush2.bf16.xpose.msra.mxu0 0
        %2632 = vmatprep.subr.bf16.mxu0 0
        %2633 = vmatpush2.bf16.xpose.msra.mxu0 0
        %2634 = vmatprep.subr.bf16.mxu0 0
        %2635 = vmatpush2.bf16.xpose.msra.mxu0 0
        %2636 = vmatprep.subr.bf16.mxu0 0
        %2637 = vmatpush2.bf16.xpose.msra.mxu0 0
        %2638 = vmatprep.subr.bf16.mxu0 0
        %2639 = vmatpush2.bf16.xpose.msra.mxu0 0
        %2640 = vmatprep.subr.bf16.mxu0 0
        %2641 = vmatpush2.bf16.xpose.msra.mxu0 0
        %2642 = vmatprep.subr.bf16.mxu0 0
        %2643 = vmatpush2.bf16.xpose.msra.mxu0 0
        %2644 = vmatprep.mubr.bf16.mxu0 0
        %2645 = vmatmul.mubr.bf16.gmra.mxu0 %v2609
        %v2646 = vpop.f32.mrf.mxu0
        %v2647 = vadd.f32 0.0, %v2646
        %v2648 = vpop.f32.mrf.mxu0
        %v2649 = vpop.f32.mrf.mxu0
        %v2650 = vpop.f32.mrf.mxu0
        %2651 = vdwg.mxu0
        %v2652 = vmul.f32 %v2647, 0.088388346
        %v2653 = vadd.f32 %v2652, %v2608
        %vm2654 = vcmask 195584
        %v2655 = vsel %vm2654, %v2653, -inf
        %2656 = vmax.xlane.f32.xlu0 %v2655
        %v2657 = vpop.xlane.xlu0 %2656
        %v2658 = vsub.f32 %v2653, %v2657
        %v2659 = vmul.f32 %v2658, 1.442695
        %v2660 = vpow.pop %v2659
        %v2661 = vsel %vm2654, %v2660, 0.0
        %2662 = vadd.xlane.f32.xlu0 %v2661
        %v2663 = vpop.xlane.xlu0 %2662
        %v2664 = vrcp.pop %v2663
        %v2665 = vmul.f32 %v2660, %v2664
        %v2666 = vpack.c.bf16 %v2665, %v2665
        %v2667 = vpack.c.bf16 %v2490, %v2482
        %v2668 = vpack.c.bf16 %v2501, %v2501
        %v2670 = vsel %vm2654, %v2666, 0
        %vm2672 = vcmask 1043456
        %v2674 = vsel %vm2672, %v2668, 0
        %2676 = vmatprep.subr.bf16.mxu0 0
        %2677 = vmatpush1.bf16.msra.mxu0 0
        %2678 = vmatprep.subr.bf16.mxu0 0
        %2679 = vmatpush1.bf16.msra.mxu0 0
        %2680 = vmatprep.subr.bf16.mxu0 0
        %2681 = vmatpush1.bf16.msra.mxu0 0
        %2682 = vmatprep.subr.bf16.mxu0 0
        %2683 = vmatpush1.bf16.msra.mxu0 0
        %2684 = vmatprep.subr.bf16.mxu0 0
        %2685 = vmatpush1.bf16.msra.mxu0 0
        %2686 = vmatprep.subr.bf16.mxu0 0
        %2687 = vmatpush1.bf16.msra.mxu0 0
        %2688 = vmatprep.subr.bf16.mxu0 0
        %2689 = vmatpush1.bf16.msra.mxu0 %v2674
        %2690 = vmatprep.subr.bf16.mxu0 0
        %2691 = vmatpush1.bf16.msra.mxu0 %v2667
        %2692 = vmatprep.subr.bf16.mxu0 0
        %2693 = vmatpush2.bf16.msra.mxu0 0
        %2694 = vmatprep.subr.bf16.mxu0 0
        %2695 = vmatpush2.bf16.msra.mxu0 0
        %2696 = vmatprep.subr.bf16.mxu0 0
        %2697 = vmatpush2.bf16.msra.mxu0 0
        %2698 = vmatprep.subr.bf16.mxu0 0
        %2699 = vmatpush2.bf16.msra.mxu0 0
        %2700 = vmatprep.subr.bf16.mxu0 0
        %2701 = vmatpush2.bf16.msra.mxu0 0
        %2702 = vmatprep.subr.bf16.mxu0 0
        %2703 = vmatpush2.bf16.msra.mxu0 0
        %2704 = vmatprep.subr.bf16.mxu0 0
        %2705 = vmatpush2.bf16.msra.mxu0 0
        %2706 = vmatprep.subr.bf16.mxu0 0
        %2707 = vmatpush2.bf16.msra.mxu0 0
        %2708 = vmatprep.mubr.bf16.mxu0 0
        %2709 = vmatmul.mubr.bf16.gmra.mxu0 %v2670
        %v2710 = vpop.f32.mrf.mxu0
        %v2711 = vadd.f32 0.0, %v2710
        %v2712 = vpop.f32.mrf.mxu0
        %v2713 = vpop.f32.mrf.mxu0
        %v2714 = vpop.f32.mrf.mxu0
        %2715 = vdwg.mxu0
        %v2716 = vunpack.c.l.bf16 %v2340
        %v2717 = vpack.c.bf16 %v2711, %v2711
        %v2734 = vunpack.c.l.b16 %v493
        %v2735 = vunpack.c.l.b16 %v494
        %v2736 = vunpack.c.l.b16 %v495
        %v2737 = vunpack.c.l.b16 %v496
        %v2738 = vunpack.c.l.b16 %v497
        %v2739 = vunpack.c.l.b16 %v498
        %v2740 = vunpack.c.l.b16 %v499
        %v2741 = vunpack.c.l.b16 %v500
        %v2742 = vunpack.c.l.b16 %v501
        %v2743 = vunpack.c.l.b16 %v502
        %v2744 = vunpack.c.l.b16 %v503
        %v2745 = vunpack.c.l.b16 %v504
        %v2746 = vunpack.c.l.b16 %v505
        %v2747 = vunpack.c.l.b16 %v506
        %v2748 = vunpack.c.l.b16 %v507
        %v2749 = vunpack.c.l.b16 %v508
        %v2750 = vpack.c.b16 %v2735, %v2734
        %v2751 = vpack.c.b16 %v2737, %v2736
        %v2752 = vpack.c.b16 %v2739, %v2738
        %v2753 = vpack.c.b16 %v2741, %v2740
        %v2754 = vpack.c.b16 %v2743, %v2742
        %v2755 = vpack.c.b16 %v2745, %v2744
        %v2756 = vpack.c.b16 %v2747, %v2746
        %v2757 = vpack.c.b16 %v2749, %v2748
        %2766 = vmatprep.subr.bf16.mxu0 0
        %2767 = vmatpush1.bf16.msra.mxu0 %v2757
        %2768 = vmatprep.subr.bf16.mxu0 0
        %2769 = vmatpush1.bf16.msra.mxu0 %v2756
        %2770 = vmatprep.subr.bf16.mxu0 0
        %2771 = vmatpush1.bf16.msra.mxu0 %v2755
        %2772 = vmatprep.subr.bf16.mxu0 0
        %2773 = vmatpush1.bf16.msra.mxu0 %v2754
        %2774 = vmatprep.subr.bf16.mxu0 0
        %2775 = vmatpush1.bf16.msra.mxu0 %v2753
        %2776 = vmatprep.subr.bf16.mxu0 0
        %2777 = vmatpush1.bf16.msra.mxu0 %v2752
        %2778 = vmatprep.subr.bf16.mxu0 0
        %2779 = vmatpush1.bf16.msra.mxu0 %v2751
        %2780 = vmatprep.subr.bf16.mxu0 0
        %2781 = vmatpush1.bf16.msra.mxu0 %v2750
        %2782 = vmatprep.subr.bf16.mxu0 0
        %2783 = vmatpush2.bf16.msra.mxu0 0
        %2784 = vmatprep.subr.bf16.mxu0 0
        %2785 = vmatpush2.bf16.msra.mxu0 0
        %2786 = vmatprep.subr.bf16.mxu0 0
        %2787 = vmatpush2.bf16.msra.mxu0 0
        %2788 = vmatprep.subr.bf16.mxu0 0
        %2789 = vmatpush2.bf16.msra.mxu0 0
        %2790 = vmatprep.subr.bf16.mxu0 0
        %2791 = vmatpush2.bf16.msra.mxu0 0
        %2792 = vmatprep.subr.bf16.mxu0 0
        %2793 = vmatpush2.bf16.msra.mxu0 0
        %2794 = vmatprep.subr.bf16.mxu0 0
        %2795 = vmatpush2.bf16.msra.mxu0 0
        %2796 = vmatprep.subr.bf16.mxu0 0
        %2797 = vmatpush2.bf16.msra.mxu0 0
        %2798 = vmatprep.mubr.bf16.mxu0 0
        %2799 = vmatmul.mubr.bf16.gmra.mxu0 %v2717
        %v2800 = vpop.f32.mrf.mxu0
        %v2801 = vadd.f32 0.0, %v2800
        %v2802 = vpop.f32.mrf.mxu0
        %v2803 = vpop.f32.mrf.mxu0
        %v2804 = vpop.f32.mrf.mxu0
        %2805 = vdwg.mxu0
        %v2806 = vadd.f32 %v2716, %v2801
        %v2807 = vld [vmem:[#allocation3] sm:$0xf]
        %v2808 = vld [vmem:[#allocation3 + $0x4] sm:$0xf]
        %v2809 = vld [vmem:[#allocation3 + $0x8] sm:$0xf]
        %v2810 = vld [vmem:[#allocation3 + $0xc] sm:$0xf]
        %v2811 = vld [vmem:[#allocation3 + $0x10] sm:$0xf]
        %v2812 = vld [vmem:[#allocation3 + $0x14] sm:$0xf]
        %v2813 = vpack.c.bf16 %v2806, %v2806
        %v2830 = vunpack.c.l.b16 %v525
        %v2831 = vunpack.c.l.b16 %v526
        %v2832 = vunpack.c.l.b16 %v527
        %v2833 = vunpack.c.l.b16 %v528
        %v2834 = vunpack.c.l.b16 %v529
        %v2835 = vunpack.c.l.b16 %v530
        %v2836 = vunpack.c.l.b16 %v531
        %v2837 = vunpack.c.l.b16 %v532
        %v2838 = vunpack.c.l.b16 %v533
        %v2839 = vunpack.c.l.b16 %v534
        %v2840 = vunpack.c.l.b16 %v535
        %v2841 = vunpack.c.l.b16 %v536
        %v2842 = vunpack.c.l.b16 %v537
        %v2843 = vunpack.c.l.b16 %v538
        %v2844 = vunpack.c.l.b16 %v539
        %v2845 = vunpack.c.l.b16 %v540
        %v2846 = vpack.c.b16 %v2831, %v2830
        %v2847 = vpack.c.b16 %v2833, %v2832
        %v2848 = vpack.c.b16 %v2835, %v2834
        %v2849 = vpack.c.b16 %v2837, %v2836
        %v2850 = vpack.c.b16 %v2839, %v2838
        %v2851 = vpack.c.b16 %v2841, %v2840
        %v2852 = vpack.c.b16 %v2843, %v2842
        %v2853 = vpack.c.b16 %v2845, %v2844
        %2862 = vmatprep.subr.bf16.mxu0 0
        %2863 = vmatpush1.bf16.msra.mxu0 %v2853
        %2864 = vmatprep.subr.bf16.mxu0 0
        %2865 = vmatpush1.bf16.msra.mxu0 %v2852
        %2866 = vmatprep.subr.bf16.mxu0 0
        %2867 = vmatpush1.bf16.msra.mxu0 %v2851
        %2868 = vmatprep.subr.bf16.mxu0 0
        %2869 = vmatpush1.bf16.msra.mxu0 %v2850
        %2870 = vmatprep.subr.bf16.mxu0 0
        %2871 = vmatpush1.bf16.msra.mxu0 %v2849
        %2872 = vmatprep.subr.bf16.mxu0 0
        %2873 = vmatpush1.bf16.msra.mxu0 %v2848
        %2874 = vmatprep.subr.bf16.mxu0 0
        %2875 = vmatpush1.bf16.msra.mxu0 %v2847
        %2876 = vmatprep.subr.bf16.mxu0 0
        %2877 = vmatpush1.bf16.msra.mxu0 %v2846
        %2878 = vmatprep.subr.bf16.mxu0 0
        %2879 = vmatpush2.bf16.msra.mxu0 0
        %2880 = vmatprep.subr.bf16.mxu0 0
        %2881 = vmatpush2.bf16.msra.mxu0 0
        %2882 = vmatprep.subr.bf16.mxu0 0
        %2883 = vmatpush2.bf16.msra.mxu0 0
        %2884 = vmatprep.subr.bf16.mxu0 0
        %2885 = vmatpush2.bf16.msra.mxu0 0
        %2886 = vmatprep.subr.bf16.mxu0 0
        %2887 = vmatpush2.bf16.msra.mxu0 0
        %2888 = vmatprep.subr.bf16.mxu0 0
        %2889 = vmatpush2.bf16.msra.mxu0 0
        %2890 = vmatprep.subr.bf16.mxu0 0
        %2891 = vmatpush2.bf16.msra.mxu0 0
        %2892 = vmatprep.subr.bf16.mxu0 0
        %2893 = vmatpush2.bf16.msra.mxu0 0
        %2894 = vmatprep.mubr.bf16.mxu0 0
        %2895 = vmatmul.mubr.bf16.gmra.mxu0 %v2813
        %v2896 = vpop.f32.mrf.mxu0
        %v2897 = vadd.f32 0.0, %v2896
        %v2898 = vpop.f32.mrf.mxu0
        %v2899 = vpop.f32.mrf.mxu0
        %v2900 = vpop.f32.mrf.mxu0
        %2901 = vdwg.mxu0
        %v2908 = vunpack.c.l.b16 %v2807
        %v2909 = vunpack.c.l.b16 %v2808
        %v2910 = vunpack.c.l.b16 %v2809
        %v2911 = vunpack.c.l.b16 %v2810
        %v2912 = vunpack.c.l.b16 %v2811
        %v2913 = vunpack.c.l.b16 %v2812
        %v2914 = vpack.c.b16 %v2909, %v2908
        %v2915 = vpack.c.b16 %v2911, %v2910
        %v2916 = vpack.c.b16 %v2913, %v2912
        %v2936 = vunpack.c.l.b16 %v541
        %v2937 = vunpack.c.h.b16 %v541
        %v2938 = vunpack.c.l.b16 %v542
        %v2939 = vunpack.c.h.b16 %v542
        %v2940 = vunpack.c.l.b16 %v543
        %v2941 = vunpack.c.h.b16 %v543
        %v2942 = vunpack.c.l.b16 %v544
        %v2943 = vunpack.c.h.b16 %v544
        %v2944 = vunpack.c.l.b16 %v545
        %v2945 = vunpack.c.h.b16 %v545
        %v2946 = vunpack.c.l.b16 %v546
        %v2947 = vunpack.c.h.b16 %v546
        %v2948 = vunpack.c.l.b16 %v547
        %v2949 = vunpack.c.h.b16 %v547
        %v2950 = vunpack.c.l.b16 %v548
        %v2951 = vunpack.c.h.b16 %v548
        %v2952 = vunpack.c.l.b16 %v549
        %v2953 = vunpack.c.h.b16 %v549
        %v2954 = vunpack.c.l.b16 %v550
        %v2955 = vunpack.c.h.b16 %v550
        %v2956 = vunpack.c.l.b16 %v551
        %v2957 = vunpack.c.h.b16 %v551
        %v2958 = vunpack.c.l.b16 %v552
        %v2959 = vunpack.c.h.b16 %v552
        %v2960 = vunpack.c.l.b16 %v553
        %v2961 = vunpack.c.h.b16 %v553
        %v2962 = vunpack.c.l.b16 %v554
        %v2963 = vunpack.c.h.b16 %v554
        %v2964 = vunpack.c.l.b16 %v555
        %v2965 = vunpack.c.h.b16 %v555
        %v2966 = vunpack.c.l.b16 %v556
        %v2967 = vunpack.c.h.b16 %v556
        %v2968 = vpack.c.b16 %v2938, %v2936
        %v2969 = vpack.c.b16 %v2939, %v2937
        %v2970 = vpack.c.b16 %v2942, %v2940
        %v2971 = vpack.c.b16 %v2943, %v2941
        %v2972 = vpack.c.b16 %v2946, %v2944
        %v2973 = vpack.c.b16 %v2947, %v2945
        %v2974 = vpack.c.b16 %v2950, %v2948
        %v2975 = vpack.c.b16 %v2951, %v2949
        %v2976 = vpack.c.b16 %v2954, %v2952
        %v2977 = vpack.c.b16 %v2955, %v2953
        %v2978 = vpack.c.b16 %v2958, %v2956
        %v2979 = vpack.c.b16 %v2959, %v2957
        %v2980 = vpack.c.b16 %v2962, %v2960
        %v2981 = vpack.c.b16 %v2963, %v2961
        %v2982 = vpack.c.b16 %v2966, %v2964
        %v2983 = vpack.c.b16 %v2967, %v2965
        %3000 = vmatprep.subr.bf16.mxu0 %v2983
        %3001 = vmatpush1.bf16.msra.mxu0 %v2982
        %3002 = vmatprep.subr.bf16.mxu0 %v2981
        %3003 = vmatpush1.bf16.msra.mxu0 %v2980
        %3004 = vmatprep.subr.bf16.mxu0 %v2979
        %3005 = vmatpush1.bf16.msra.mxu0 %v2978
        %3006 = vmatprep.subr.bf16.mxu0 %v2977
        %3007 = vmatpush1.bf16.msra.mxu0 %v2976
        %3008 = vmatprep.subr.bf16.mxu0 %v2975
        %3009 = vmatpush1.bf16.msra.mxu0 %v2974
        %3010 = vmatprep.subr.bf16.mxu0 %v2973
        %3011 = vmatpush1.bf16.msra.mxu0 %v2972
        %3012 = vmatprep.subr.bf16.mxu0 %v2971
        %3013 = vmatpush1.bf16.msra.mxu0 %v2970
        %3014 = vmatprep.subr.bf16.mxu0 %v2969
        %3015 = vmatpush1.bf16.msra.mxu0 %v2968
        %3016 = vmatprep.subr.bf16.mxu0 0
        %3017 = vmatpush2.bf16.msra.mxu0 0
        %3018 = vmatprep.subr.bf16.mxu0 0
        %3019 = vmatpush2.bf16.msra.mxu0 0
        %3020 = vmatprep.subr.bf16.mxu0 0
        %3021 = vmatpush2.bf16.msra.mxu0 0
        %3022 = vmatprep.subr.bf16.mxu0 0
        %3023 = vmatpush2.bf16.msra.mxu0 0
        %3024 = vmatprep.subr.bf16.mxu0 0
        %3025 = vmatpush2.bf16.msra.mxu0 0
        %3026 = vmatprep.subr.bf16.mxu0 0
        %3027 = vmatpush2.bf16.msra.mxu0 0
        %3028 = vmatprep.subr.bf16.mxu0 0
        %3029 = vmatpush2.bf16.msra.mxu0 0
        %3030 = vmatprep.subr.bf16.mxu0 0
        %3031 = vmatpush2.bf16.msra.mxu0 0
        %3032 = vmatprep.mubr.bf16.mxu0 0
        %3033 = vmatmul.mubr.bf16.gmra.mxu0 %v2914
        %v3034 = vpop.f32.mrf.mxu0
        %v3035 = vadd.f32 0.0, %v3034
        %v3036 = vpop.f32.mrf.mxu0
        %v3037 = vadd.f32 0.0, %v3036
        %v3038 = vpop.f32.mrf.mxu0
        %v3039 = vadd.f32 0.0, %v3038
        %v3040 = vpop.f32.mrf.mxu0
        %v3041 = vadd.f32 0.0, %v3040
        %3042 = vmatprep.mubr.bf16.mxu0 0
        %3043 = vmatmul.mubr.bf16.gmra.mxu0 %v2915
        %v3044 = vpop.f32.mrf.mxu0
        %v3045 = vadd.f32 0.0, %v3044
        %v3046 = vpop.f32.mrf.mxu0
        %v3047 = vadd.f32 0.0, %v3046
        %v3048 = vpop.f32.mrf.mxu0
        %v3049 = vadd.f32 0.0, %v3048
        %v3050 = vpop.f32.mrf.mxu0
        %v3051 = vadd.f32 0.0, %v3050
        %3052 = vmatprep.mubr.bf16.mxu0 0
        %3053 = vmatmul.mubr.bf16.gmra.mxu0 %v2916
        %v3054 = vpop.f32.mrf.mxu0
        %v3055 = vadd.f32 0.0, %v3054
        %v3056 = vpop.f32.mrf.mxu0
        %v3057 = vadd.f32 0.0, %v3056
        %v3058 = vpop.f32.mrf.mxu0
        %v3059 = vadd.f32 0.0, %v3058
        %v3060 = vpop.f32.mrf.mxu0
        %v3061 = vadd.f32 0.0, %v3060
        %3062 = vdwg.mxu0
        %v3063 = vpack.c.bf16 %v2897, %v2897
        %v3064 = vpack.c.bf16 %v3039, %v3035
        %v3065 = vpack.c.bf16 %v3049, %v3045
        %v3066 = vpack.c.bf16 %v3059, %v3055
        %3067 = vmatprep.subr.bf16.mxu0 0
        %3068 = vmatpush1.bf16.xpose.msra.mxu0 0
        %3069 = vmatprep.subr.bf16.mxu0 0
        %3070 = vmatpush1.bf16.xpose.msra.mxu0 0
        %3071 = vmatprep.subr.bf16.mxu0 0
        %3072 = vmatpush1.bf16.xpose.msra.mxu0 0
        %3073 = vmatprep.subr.bf16.mxu0 0
        %3074 = vmatpush1.bf16.xpose.msra.mxu0 0
        %3075 = vmatprep.subr.bf16.mxu0 0
        %3076 = vmatpush1.bf16.xpose.msra.mxu0 0
        %3077 = vmatprep.subr.bf16.mxu0 0
        %3078 = vmatpush1.bf16.xpose.msra.mxu0 %v3066
        %3079 = vmatprep.subr.bf16.mxu0 0
        %3080 = vmatpush1.bf16.xpose.msra.mxu0 %v3065
        %3081 = vmatprep.subr.bf16.mxu0 0
        %3082 = vmatpush1.bf16.xpose.msra.mxu0 %v3064
        %3083 = vmatprep.subr.bf16.mxu0 0
        %3084 = vmatpush2.bf16.xpose.msra.mxu0 0
        %3085 = vmatprep.subr.bf16.mxu0 0
        %3086 = vmatpush2.bf16.xpose.msra.mxu0 0
        %3087 = vmatprep.subr.bf16.mxu0 0
        %3088 = vmatpush2.bf16.xpose.msra.mxu0 0
        %3089 = vmatprep.subr.bf16.mxu0 0
        %3090 = vmatpush2.bf16.xpose.msra.mxu0 0
        %3091 = vmatprep.subr.bf16.mxu0 0
        %3092 = vmatpush2.bf16.xpose.msra.mxu0 0
        %3093 = vmatprep.subr.bf16.mxu0 0
        %3094 = vmatpush2.bf16.xpose.msra.mxu0 0
        %3095 = vmatprep.subr.bf16.mxu0 0
        %3096 = vmatpush2.bf16.xpose.msra.mxu0 0
        %3097 = vmatprep.subr.bf16.mxu0 0
        %3098 = vmatpush2.bf16.xpose.msra.mxu0 0
        %3099 = vmatprep.mubr.bf16.mxu0 0
        %3100 = vmatmul.mubr.bf16.gmra.mxu0 %v3063
        %v3101 = vpop.f32.mrf.mxu0
        %v3102 = vadd.f32 0.0, %v3101
        %v3103 = vpop.f32.mrf.mxu0
        %v3104 = vpop.f32.mrf.mxu0
        %v3105 = vpop.f32.mrf.mxu0
        %3106 = vdwg.mxu0
        %v3107 = vmul.f32 %v3102, 0.088388346
        %v3108 = vadd.f32 %v3107, %v966
        %v3109 = vsel %vm2111, %v3108, -inf
        %3110 = vmax.xlane.f32.xlu0 %v3109
        %v3111 = vpop.xlane.xlu0 %3110
        %v3112 = vsub.f32 %v3108, %v3111
        %v3113 = vmul.f32 %v3112, 1.442695
        %v3114 = vpow.pop %v3113
        %v3115 = vsel %vm2111, %v3114, 0.0
        %3116 = vadd.xlane.f32.xlu0 %v3115
        %v3117 = vpop.xlane.xlu0 %3116
        %v3118 = vrcp.pop %v3117
        %v3119 = vmul.f32 %v3114, %v3118
        %v3120 = vpack.c.bf16 %v3119, %v3119
        %v3121 = vpack.c.bf16 %v3041, %v3037
        %v3122 = vpack.c.bf16 %v3051, %v3047
        %v3123 = vpack.c.bf16 %v3061, %v3057
        %v3125 = vsel %vm2111, %v3120, 0
        %3127 = vmatprep.subr.bf16.mxu0 0
        %3128 = vmatpush1.bf16.msra.mxu0 0
        %3129 = vmatprep.subr.bf16.mxu0 0
        %3130 = vmatpush1.bf16.msra.mxu0 0
        %3131 = vmatprep.subr.bf16.mxu0 0
        %3132 = vmatpush1.bf16.msra.mxu0 0
        %3133 = vmatprep.subr.bf16.mxu0 0
        %3134 = vmatpush1.bf16.msra.mxu0 0
        %3135 = vmatprep.subr.bf16.mxu0 0
        %3136 = vmatpush1.bf16.msra.mxu0 0
        %3137 = vmatprep.subr.bf16.mxu0 0
        %3138 = vmatpush1.bf16.msra.mxu0 %v3123
        %3139 = vmatprep.subr.bf16.mxu0 0
        %3140 = vmatpush1.bf16.msra.mxu0 %v3122
        %3141 = vmatprep.subr.bf16.mxu0 0
        %3142 = vmatpush1.bf16.msra.mxu0 %v3121
        %3143 = vmatprep.subr.bf16.mxu0 0
        %3144 = vmatpush2.bf16.msra.mxu0 0
        %3145 = vmatprep.subr.bf16.mxu0 0
        %3146 = vmatpush2.bf16.msra.mxu0 0
        %3147 = vmatprep.subr.bf16.mxu0 0
        %3148 = vmatpush2.bf16.msra.mxu0 0
        %3149 = vmatprep.subr.bf16.mxu0 0
        %3150 = vmatpush2.bf16.msra.mxu0 0
        %3151 = vmatprep.subr.bf16.mxu0 0
        %3152 = vmatpush2.bf16.msra.mxu0 0
        %3153 = vmatprep.subr.bf16.mxu0 0
        %3154 = vmatpush2.bf16.msra.mxu0 0
        %3155 = vmatprep.subr.bf16.mxu0 0
        %3156 = vmatpush2.bf16.msra.mxu0 0
        %3157 = vmatprep.subr.bf16.mxu0 0
        %3158 = vmatpush2.bf16.msra.mxu0 0
        %3159 = vmatprep.mubr.bf16.mxu0 0
        %3160 = vmatmul.mubr.bf16.gmra.mxu0 %v3125
        %v3161 = vpop.f32.mrf.mxu0
        %v3162 = vadd.f32 0.0, %v3161
        %v3163 = vpop.f32.mrf.mxu0
        %v3164 = vpop.f32.mrf.mxu0
        %v3165 = vpop.f32.mrf.mxu0
        %3166 = vdwg.mxu0
        %v3167 = vpack.c.bf16 %v3162, %v3162
        %v3184 = vunpack.c.l.b16 %v557
        %v3185 = vunpack.c.l.b16 %v558
        %v3186 = vunpack.c.l.b16 %v559
        %v3187 = vunpack.c.l.b16 %v560
        %v3188 = vunpack.c.l.b16 %v561
        %v3189 = vunpack.c.l.b16 %v562
        %v3190 = vunpack.c.l.b16 %v563
        %v3191 = vunpack.c.l.b16 %v564
        %v3192 = vunpack.c.l.b16 %v565
        %v3193 = vunpack.c.l.b16 %v566
        %v3194 = vunpack.c.l.b16 %v567
        %v3195 = vunpack.c.l.b16 %v568
        %v3196 = vunpack.c.l.b16 %v569
        %v3197 = vunpack.c.l.b16 %v570
        %v3198 = vunpack.c.l.b16 %v571
        %v3199 = vunpack.c.l.b16 %v572
        %v3200 = vpack.c.b16 %v3185, %v3184
        %v3201 = vpack.c.b16 %v3187, %v3186
        %v3202 = vpack.c.b16 %v3189, %v3188
        %v3203 = vpack.c.b16 %v3191, %v3190
        %v3204 = vpack.c.b16 %v3193, %v3192
        %v3205 = vpack.c.b16 %v3195, %v3194
        %v3206 = vpack.c.b16 %v3197, %v3196
        %v3207 = vpack.c.b16 %v3199, %v3198
        %3216 = vmatprep.subr.bf16.mxu0 0
        %3217 = vmatpush1.bf16.msra.mxu0 %v3207
        %3218 = vmatprep.subr.bf16.mxu0 0
        %3219 = vmatpush1.bf16.msra.mxu0 %v3206
        %3220 = vmatprep.subr.bf16.mxu0 0
        %3221 = vmatpush1.bf16.msra.mxu0 %v3205
        %3222 = vmatprep.subr.bf16.mxu0 0
        %3223 = vmatpush1.bf16.msra.mxu0 %v3204
        %3224 = vmatprep.subr.bf16.mxu0 0
        %3225 = vmatpush1.bf16.msra.mxu0 %v3203
        %3226 = vmatprep.subr.bf16.mxu0 0
        %3227 = vmatpush1.bf16.msra.mxu0 %v3202
        %3228 = vmatprep.subr.bf16.mxu0 0
        %3229 = vmatpush1.bf16.msra.mxu0 %v3201
        %3230 = vmatprep.subr.bf16.mxu0 0
        %3231 = vmatpush1.bf16.msra.mxu0 %v3200
        %3232 = vmatprep.subr.bf16.mxu0 0
        %3233 = vmatpush2.bf16.msra.mxu0 0
        %3234 = vmatprep.subr.bf16.mxu0 0
        %3235 = vmatpush2.bf16.msra.mxu0 0
        %3236 = vmatprep.subr.bf16.mxu0 0
        %3237 = vmatpush2.bf16.msra.mxu0 0
        %3238 = vmatprep.subr.bf16.mxu0 0
        %3239 = vmatpush2.bf16.msra.mxu0 0
        %3240 = vmatprep.subr.bf16.mxu0 0
        %3241 = vmatpush2.bf16.msra.mxu0 0
        %3242 = vmatprep.subr.bf16.mxu0 0
        %3243 = vmatpush2.bf16.msra.mxu0 0
        %3244 = vmatprep.subr.bf16.mxu0 0
        %3245 = vmatpush2.bf16.msra.mxu0 0
        %3246 = vmatprep.subr.bf16.mxu0 0
        %3247 = vmatpush2.bf16.msra.mxu0 0
        %3248 = vmatprep.mubr.bf16.mxu0 0
        %3249 = vmatmul.mubr.bf16.gmra.mxu0 %v3167
        %v3250 = vpop.f32.mrf.mxu0
        %v3251 = vadd.f32 0.0, %v3250
        %v3252 = vpop.f32.mrf.mxu0
        %v3253 = vpop.f32.mrf.mxu0
        %v3254 = vpop.f32.mrf.mxu0
        %3255 = vdwg.mxu0
        %v3256 = vadd.f32 %v2806, %v3251
        %v3257 = vpack.c.bf16 %v3256, %v3256
        %v3274 = vunpack.c.l.b16 %v509
        %v3275 = vunpack.c.h.b16 %v509
        %v3276 = vunpack.c.l.b16 %v510
        %v3277 = vunpack.c.h.b16 %v510
        %v3278 = vunpack.c.l.b16 %v511
        %v3279 = vunpack.c.h.b16 %v511
        %v3280 = vunpack.c.l.b16 %v512
        %v3281 = vunpack.c.h.b16 %v512
        %v3282 = vunpack.c.l.b16 %v513
        %v3283 = vunpack.c.h.b16 %v513
        %v3284 = vunpack.c.l.b16 %v514
        %v3285 = vunpack.c.h.b16 %v514
        %v3286 = vunpack.c.l.b16 %v515
        %v3287 = vunpack.c.h.b16 %v515
        %v3288 = vunpack.c.l.b16 %v516
        %v3289 = vunpack.c.h.b16 %v516
        %v3290 = vunpack.c.l.b16 %v517
        %v3291 = vunpack.c.h.b16 %v517
        %v3292 = vunpack.c.l.b16 %v518
        %v3293 = vunpack.c.h.b16 %v518
        %v3294 = vunpack.c.l.b16 %v519
        %v3295 = vunpack.c.h.b16 %v519
        %v3296 = vunpack.c.l.b16 %v520
        %v3297 = vunpack.c.h.b16 %v520
        %v3298 = vunpack.c.l.b16 %v521
        %v3299 = vunpack.c.h.b16 %v521
        %v3300 = vunpack.c.l.b16 %v522
        %v3301 = vunpack.c.h.b16 %v522
        %v3302 = vunpack.c.l.b16 %v523
        %v3303 = vunpack.c.h.b16 %v523
        %v3304 = vunpack.c.l.b16 %v524
        %v3305 = vunpack.c.h.b16 %v524
        %v3306 = vpack.c.b16 %v3276, %v3274
        %v3307 = vpack.c.b16 %v3277, %v3275
        %v3308 = vpack.c.b16 %v3280, %v3278
        %v3309 = vpack.c.b16 %v3281, %v3279
        %v3310 = vpack.c.b16 %v3284, %v3282
        %v3311 = vpack.c.b16 %v3285, %v3283
        %v3312 = vpack.c.b16 %v3288, %v3286
        %v3313 = vpack.c.b16 %v3289, %v3287
        %v3314 = vpack.c.b16 %v3292, %v3290
        %v3315 = vpack.c.b16 %v3293, %v3291
        %v3316 = vpack.c.b16 %v3296, %v3294
        %v3317 = vpack.c.b16 %v3297, %v3295
        %v3318 = vpack.c.b16 %v3300, %v3298
        %v3319 = vpack.c.b16 %v3301, %v3299
        %v3320 = vpack.c.b16 %v3304, %v3302
        %v3321 = vpack.c.b16 %v3305, %v3303
        %3338 = vmatprep.subr.bf16.mxu0 %v3321
        %3339 = vmatpush1.bf16.msra.mxu0 %v3320
        %3340 = vmatprep.subr.bf16.mxu0 %v3319
        %3341 = vmatpush1.bf16.msra.mxu0 %v3318
        %3342 = vmatprep.subr.bf16.mxu0 %v3317
        %3343 = vmatpush1.bf16.msra.mxu0 %v3316
        %3344 = vmatprep.subr.bf16.mxu0 %v3315
        %3345 = vmatpush1.bf16.msra.mxu0 %v3314
        %3346 = vmatprep.subr.bf16.mxu0 %v3313
        %3347 = vmatpush1.bf16.msra.mxu0 %v3312
        %3348 = vmatprep.subr.bf16.mxu0 %v3311
        %3349 = vmatpush1.bf16.msra.mxu0 %v3310
        %3350 = vmatprep.subr.bf16.mxu0 %v3309
        %3351 = vmatpush1.bf16.msra.mxu0 %v3308
        %3352 = vmatprep.subr.bf16.mxu0 %v3307
        %3353 = vmatpush1.bf16.msra.mxu0 %v3306
        %3354 = vmatprep.subr.bf16.mxu0 0
        %3355 = vmatpush2.bf16.msra.mxu0 0
        %3356 = vmatprep.subr.bf16.mxu0 0
        %3357 = vmatpush2.bf16.msra.mxu0 0
        %3358 = vmatprep.subr.bf16.mxu0 0
        %3359 = vmatpush2.bf16.msra.mxu0 0
        %3360 = vmatprep.subr.bf16.mxu0 0
        %3361 = vmatpush2.bf16.msra.mxu0 0
        %3362 = vmatprep.subr.bf16.mxu0 0
        %3363 = vmatpush2.bf16.msra.mxu0 0
        %3364 = vmatprep.subr.bf16.mxu0 0
        %3365 = vmatpush2.bf16.msra.mxu0 0
        %3366 = vmatprep.subr.bf16.mxu0 0
        %3367 = vmatpush2.bf16.msra.mxu0 0
        %3368 = vmatprep.subr.bf16.mxu0 0
        %3369 = vmatpush2.bf16.msra.mxu0 0
        %3370 = vmatprep.mubr.bf16.mxu0 0
        %3371 = vmatmul.mubr.bf16.gmra.mxu0 %v3257
        %v3372 = vpop.f32.mrf.mxu0
        %v3373 = vadd.f32 0.0, %v3372
        %v3374 = vpop.f32.mrf.mxu0
        %v3375 = vadd.f32 0.0, %v3374
        %v3376 = vpop.f32.mrf.mxu0
        %v3377 = vpop.f32.mrf.mxu0
        %3378 = vdwg.mxu0
        %v3379 = vmax.f32 %v3373, 0.0
        %v3380 = vmax.f32 %v3375, 0.0
        %v3381 = vpack.c.bf16 %v3379, %v3379
        %v3382 = vpack.c.bf16 %v3380, %v3380
        %v3415 = vunpack.c.l.b16 %v605
        %v3416 = vunpack.c.l.b16 %v606
        %v3417 = vunpack.c.l.b16 %v607
        %v3418 = vunpack.c.l.b16 %v608
        %v3419 = vunpack.c.l.b16 %v609
        %v3420 = vunpack.c.l.b16 %v610
        %v3421 = vunpack.c.l.b16 %v611
        %v3422 = vunpack.c.l.b16 %v612
        %v3423 = vunpack.c.l.b16 %v613
        %v3424 = vunpack.c.l.b16 %v614
        %v3425 = vunpack.c.l.b16 %v615
        %v3426 = vunpack.c.l.b16 %v616
        %v3427 = vunpack.c.l.b16 %v617
        %v3428 = vunpack.c.l.b16 %v618
        %v3429 = vunpack.c.l.b16 %v619
        %v3430 = vunpack.c.l.b16 %v620
        %v3431 = vunpack.c.l.b16 %v621
        %v3432 = vunpack.c.l.b16 %v622
        %v3433 = vunpack.c.l.b16 %v623
        %v3434 = vunpack.c.l.b16 %v624
        %v3435 = vunpack.c.l.b16 %v625
        %v3436 = vunpack.c.l.b16 %v626
        %v3437 = vunpack.c.l.b16 %v627
        %v3438 = vunpack.c.l.b16 %v628
        %v3439 = vunpack.c.l.b16 %v629
        %v3440 = vunpack.c.l.b16 %v630
        %v3441 = vunpack.c.l.b16 %v631
        %v3442 = vunpack.c.l.b16 %v632
        %v3443 = vunpack.c.l.b16 %v633
        %v3444 = vunpack.c.l.b16 %v634
        %v3445 = vunpack.c.l.b16 %v635
        %v3446 = vunpack.c.l.b16 %v636
        %v3447 = vpack.c.b16 %v3416, %v3415
        %v3448 = vpack.c.b16 %v3418, %v3417
        %v3449 = vpack.c.b16 %v3420, %v3419
        %v3450 = vpack.c.b16 %v3422, %v3421
        %v3451 = vpack.c.b16 %v3424, %v3423
        %v3452 = vpack.c.b16 %v3426, %v3425
        %v3453 = vpack.c.b16 %v3428, %v3427
        %v3454 = vpack.c.b16 %v3430, %v3429
        %v3455 = vpack.c.b16 %v3432, %v3431
        %v3456 = vpack.c.b16 %v3434, %v3433
        %v3457 = vpack.c.b16 %v3436, %v3435
        %v3458 = vpack.c.b16 %v3438, %v3437
        %v3459 = vpack.c.b16 %v3440, %v3439
        %v3460 = vpack.c.b16 %v3442, %v3441
        %v3461 = vpack.c.b16 %v3444, %v3443
        %v3462 = vpack.c.b16 %v3446, %v3445
        %3479 = vmatprep.subr.bf16.mxu0 0
        %3480 = vmatpush1.bf16.msra.mxu0 %v3454
        %3481 = vmatprep.subr.bf16.mxu0 0
        %3482 = vmatpush1.bf16.msra.mxu0 %v3453
        %3483 = vmatprep.subr.bf16.mxu0 0
        %3484 = vmatpush1.bf16.msra.mxu0 %v3452
        %3485 = vmatprep.subr.bf16.mxu0 0
        %3486 = vmatpush1.bf16.msra.mxu0 %v3451
        %3487 = vmatprep.subr.bf16.mxu0 0
        %3488 = vmatpush1.bf16.msra.mxu0 %v3450
        %3489 = vmatprep.subr.bf16.mxu0 0
        %3490 = vmatpush1.bf16.msra.mxu0 %v3449
        %3491 = vmatprep.subr.bf16.mxu0 0
        %3492 = vmatpush1.bf16.msra.mxu0 %v3448
        %3493 = vmatprep.subr.bf16.mxu0 0
        %3494 = vmatpush1.bf16.msra.mxu0 %v3447
        %3495 = vmatprep.subr.bf16.mxu0 0
        %3496 = vmatpush2.bf16.msra.mxu0 %v3462
        %3497 = vmatprep.subr.bf16.mxu0 0
        %3498 = vmatpush2.bf16.msra.mxu0 %v3461
        %3499 = vmatprep.subr.bf16.mxu0 0
        %3500 = vmatpush2.bf16.msra.mxu0 %v3460
        %3501 = vmatprep.subr.bf16.mxu0 0
        %3502 = vmatpush2.bf16.msra.mxu0 %v3459
        %3503 = vmatprep.subr.bf16.mxu0 0
        %3504 = vmatpush2.bf16.msra.mxu0 %v3458
        %3505 = vmatprep.subr.bf16.mxu0 0
        %3506 = vmatpush2.bf16.msra.mxu0 %v3457
        %3507 = vmatprep.subr.bf16.mxu0 0
        %3508 = vmatpush2.bf16.msra.mxu0 %v3456
        %3509 = vmatprep.subr.bf16.mxu0 0
        %3510 = vmatpush2.bf16.msra.mxu0 %v3455
        %3511 = vmatprep.mubr.bf16.mxu0 %v3382
        %3512 = vmatmul.mubr.bf16.gmra.mxu0 %v3381
        %v3513 = vpop.f32.mrf.mxu0
        %v3514 = vadd.f32 0.0, %v3513
        %v3515 = vpop.f32.mrf.mxu0
        %v3516 = vpop.f32.mrf.mxu0
        %v3517 = vpop.f32.mrf.mxu0
        %3518 = vdwg.mxu0
        %v3519 = vadd.f32 %v3256, %v3514
        %v3520 = vpack.c.bf16 %v3519, %v3519
        %v3553 = vunpack.c.l.b16 %v637
        %v3554 = vunpack.c.l.b16 %v638
        %v3555 = vunpack.c.l.b16 %v639
        %v3556 = vunpack.c.l.b16 %v640
        %v3557 = vunpack.c.l.b16 %v641
        %v3558 = vunpack.c.l.b16 %v642
        %v3559 = vunpack.c.l.b16 %v643
        %v3560 = vunpack.c.l.b16 %v644
        %v3561 = vunpack.c.l.b16 %v645
        %v3562 = vunpack.c.l.b16 %v646
        %v3563 = vunpack.c.l.b16 %v647
        %v3564 = vunpack.c.l.b16 %v648
        %v3565 = vunpack.c.l.b16 %v649
        %v3566 = vunpack.c.l.b16 %v650
        %v3567 = vunpack.c.l.b16 %v651
        %v3568 = vunpack.c.l.b16 %v652
        %v3569 = vunpack.c.l.b16 %v653
        %v3570 = vunpack.c.l.b16 %v654
        %v3571 = vunpack.c.l.b16 %v655
        %v3572 = vunpack.c.l.b16 %v656
        %v3573 = vunpack.c.l.b16 %v657
        %v3574 = vunpack.c.l.b16 %v658
        %v3575 = vunpack.c.l.b16 %v659
        %v3576 = vunpack.c.l.b16 %v660
        %v3577 = vunpack.c.l.b16 %v661
        %v3578 = vunpack.c.l.b16 %v662
        %v3579 = vunpack.c.l.b16 %v663
        %v3580 = vunpack.c.l.b16 %v664
        %v3581 = vunpack.c.l.b16 %v665
        %v3582 = vunpack.c.l.b16 %v666
        %v3583 = vunpack.c.l.b16 %v667
        %v3584 = vunpack.c.l.b16 %v668
        %v3585 = vpack.c.b16 %v3554, %v3553
        %v3586 = vpack.c.b16 %v3556, %v3555
        %v3587 = vpack.c.b16 %v3558, %v3557
        %v3588 = vpack.c.b16 %v3560, %v3559
        %v3589 = vpack.c.b16 %v3562, %v3561
        %v3590 = vpack.c.b16 %v3564, %v3563
        %v3591 = vpack.c.b16 %v3566, %v3565
        %v3592 = vpack.c.b16 %v3568, %v3567
        %v3593 = vpack.c.b16 %v3570, %v3569
        %v3594 = vpack.c.b16 %v3572, %v3571
        %v3595 = vpack.c.b16 %v3574, %v3573
        %v3596 = vpack.c.b16 %v3576, %v3575
        %v3597 = vpack.c.b16 %v3578, %v3577
        %v3598 = vpack.c.b16 %v3580, %v3579
        %v3599 = vpack.c.b16 %v3582, %v3581
        %v3600 = vpack.c.b16 %v3584, %v3583
        %3617 = vmatprep.subr.bf16.mxu0 0
        %3618 = vmatpush1.bf16.xpose.msra.mxu0 %v3592
        %3619 = vmatprep.subr.bf16.mxu0 0
        %3620 = vmatpush1.bf16.xpose.msra.mxu0 %v3591
        %3621 = vmatprep.subr.bf16.mxu0 0
        %3622 = vmatpush1.bf16.xpose.msra.mxu0 %v3590
        %3623 = vmatprep.subr.bf16.mxu0 0
        %3624 = vmatpush1.bf16.xpose.msra.mxu0 %v3589
        %3625 = vmatprep.subr.bf16.mxu0 0
        %3626 = vmatpush1.bf16.xpose.msra.mxu0 %v3588
        %3627 = vmatprep.subr.bf16.mxu0 0
        %3628 = vmatpush1.bf16.xpose.msra.mxu0 %v3587
        %3629 = vmatprep.subr.bf16.mxu0 0
        %3630 = vmatpush1.bf16.xpose.msra.mxu0 %v3586
        %3631 = vmatprep.subr.bf16.mxu0 0
        %3632 = vmatpush1.bf16.xpose.msra.mxu0 %v3585
        %3633 = vmatprep.subr.bf16.mxu0 0
        %3634 = vmatpush2.bf16.xpose.msra.mxu0 %v3600
        %3635 = vmatprep.subr.bf16.mxu0 0
        %3636 = vmatpush2.bf16.xpose.msra.mxu0 %v3599
        %3637 = vmatprep.subr.bf16.mxu0 0
        %3638 = vmatpush2.bf16.xpose.msra.mxu0 %v3598
        %3639 = vmatprep.subr.bf16.mxu0 0
        %3640 = vmatpush2.bf16.xpose.msra.mxu0 %v3597
        %3641 = vmatprep.subr.bf16.mxu0 0
        %3642 = vmatpush2.bf16.xpose.msra.mxu0 %v3596
        %3643 = vmatprep.subr.bf16.mxu0 0
        %3644 = vmatpush2.bf16.xpose.msra.mxu0 %v3595
        %3645 = vmatprep.subr.bf16.mxu0 0
        %3646 = vmatpush2.bf16.xpose.msra.mxu0 %v3594
        %3647 = vmatprep.subr.bf16.mxu0 0
        %3648 = vmatpush2.bf16.xpose.msra.mxu0 %v3593
        %3649 = vmatprep.mubr.bf16.mxu0 0
        %3650 = vmatmul.mubr.bf16.gmra.mxu0 %v3520
        %v3651 = vpop.f32.mrf.mxu0
        %v3652 = vadd.f32 0.0, %v3651
        %v3653 = vpop.f32.mrf.mxu0
        %v3654 = vadd.f32 0.0, %v3653
        %v3655 = vpop.f32.mrf.mxu0
        %v3656 = vpop.f32.mrf.mxu0
        %3657 = vdwg.mxu0
        %v3658 = vld [vmem:[%s388] sm:$0xff]
        %v3659 = vadd.s32 %v2598, 128
        %3660 = vset.pattern.permute.xlu0 0
        %3661 = vperm.xlu0 %3660, %v3658
        %v3662 = vpop.permute.xlu0 %3661
        %vm3663 = vcmp.eq.s32.totalorder %v2598, %v3662
        %vm3664 = vcmp.eq.s32.totalorder %v3659, %v3662
        %v3665 = vsel %vm3663, %v3652, 0.0
        %v3666 = vsel %vm3664, %v3654, 0.0
        %v3667 = vadd.f32 %v3665, %v3666
        %3668 = vadd.xlane.f32.xlu0 %v3667
        %v3669 = vpop.xlane.xlu0 %3668
        %v3670 = vmax.f32 %v3652, %v3654
        %3671 = vmax.xlane.f32.xlu0 %v3670
        %v3672 = vpop.xlane.xlu0 %3671
        %v3673 = vsub.f32 %v3652, %v3672
        %v3674 = vsub.f32 %v3654, %v3672
        %v3675 = vmul.f32 %v3673, 1.442695
        %v3676 = vpow.pop %v3675
        %v3677 = vmul.f32 %v3674, 1.442695
        %v3678 = vpow.pop %v3677
        %v3679 = vadd.f32 %v3676, %v3678
        %3680 = vadd.xlane.f32.xlu0 %v3679
        %v3681 = vpop.xlane.xlu0 %3680
        %v3682 = vlog2.pop %v3681
        %v3683 = vmul.f32 %v3682, 0.6931472
        %v3684 = vadd.f32 %v3683, %v3672
        %v3685 = vld [vmem:[%s392] sm:$0xff]
        %v3686 = vsub.f32 %v3684, %v3669
        %v3687 = vmul.f32 %v3686, %v3685
        %vm3688 = vcmask 7168
        %v3689 = vsel %vm3688, %v3687, 0.0
        %3690 = vadd.xlane.f32.xlu0 %v3689
        %v3691 = vpop.xlane.xlu0 %3690
        %v3692 = vrot.slane %v3691, 4
        %v3693 = vadd.f32 %v3691, %v3692
        %v3694 = vrot.slane %v3693, 2
        %v3695 = vadd.f32 %v3693, %v3694
        %v3696 = vrot.slane %v3695, 1
        %v3697 = vadd.f32 %v3695, %v3696
        %s3698 = vtos %v3697
        %v3699 = vstv %s3698
        %v3700 = vsel %vm3688, %v3685, 0.0
        %3701 = vadd.xlane.f32.xlu0 %v3700
        %v3702 = vpop.xlane.xlu0 %3701
        %v3703 = vrot.slane %v3702, 4
        %v3704 = vadd.f32 %v3702, %v3703
        %v3705 = vrot.slane %v3704, 2
        %v3706 = vadd.f32 %v3704, %v3705
        %v3707 = vrot.slane %v3706, 1
        %v3708 = vadd.f32 %v3706, %v3707
        %s3709 = vtos %v3708
        %v3710 = vstv %s3709
        %v3711 = vsel %vm3688, %v3699, %v3710
        %vm3712 = vcmask 8192
        %3713 = vst.msk [vmem:[%s395] sm:$0x1] %vm3712, %v3711
        %p3714 = scmp.lt.s32.totalorder %s20, 1
        %s3715 = scalar_select %p3714, %s20, 1
        %s3716 = scalar_lea.vmem %s8, %s3715
        // Predicated region
        $region57: #{double_model_forward.1} parent=51 // pred_check
          %p3717 = pneg %p236
        $region58: #{double_model_forward.1} parent=51 // pred_check_branch
          %3719 = sbr.rel (%p3717) target = $region60
        $region59: #{double_model_forward.1} parent=51 // pred_region
          _
        $region60: #{double_model_forward.1} parent=51 // pred_fallthru
          _
      $region52: #{double_model_forward.1} parent=5 // pred_fallthru
        _
      %p3720 = scmp.le.s32.totalorder 2, %s15
      // Predicated region
      $region61: #{double_model_forward.1} parent=5 // pred_check
        %p3721 = pneg %p3720
      $region62: #{double_model_forward.1} parent=5 // pred_check_branch
        %3723 = sbr.rel (%p3721) target = $region64
      $region63: #{double_model_forward.1} parent=5 // pred_region
        %s3724 = ssub.s32 %s15, 2
        // Predicated region
        $region65: #{double_model_forward.1} parent=63 // pred_check
          %p3725 = pneg %p242
        $region66: #{double_model_forward.1} parent=63 // pred_check_branch
          %3727 = sbr.rel (%p3725) target = $region68
        $region67: #{double_model_forward.1} parent=63 // pred_region
          %p3728 = scmp.lt.s32.totalorder %s21, 1
          %s3729 = scalar_select %p3728, %s21, 1
          %s3730 = scalar_lea.vmem %s8, %s3729
        $region68: #{double_model_forward.1} parent=63 // pred_fallthru
          _
      $region64: #{double_model_forward.1} parent=5 // pred_fallthru
        _
    $region6: #{double_model_forward.1} parent=1 // loop_footer
      %s19 = sadd.s32 1, %s15
    $region7: #{double_model_forward.1} parent=1 // loop_footer_branch
      %14 = sbr.rel target = $region3
    $region8: #{double_model_forward.1} parent=1 // loop_exit
      _
    %3731 = vsyncpa [#allocation5], 1
    %s3732 = scalar_lea.sflag [#allocation5], 1
    %3733 = vsyncpa %s3732, 1

</llo_original>
